<compile_context>
chip_gen: v7x
topology: tpu7x:2x2x1
jax: 0.10.0
libtpu: 0.0.40
codegen_flags: <defaults>
</compile_context>

<pallas_src>
import functools
import math

import jax
import jax.numpy as jnp
from jax import lax
from jax.experimental import pallas as pl
from jax.experimental.pallas import tpu as pltpu

_BN_EPS = 1e-5
_LOG2 = math.log(2.0)
_VMEM_LIMIT = 48 * 1024 * 1024       # > default scoped limit, < v7x 64 MiB physical
_FUSED_A_BUDGET = 24 * 1024 * 1024   # fuse encoder layers when (I+A) fits VMEM


def _ceil_to(x, m):
    return ((x + m - 1) // m) * m


def _softplus(z):
    # numerically stable softplus, plain VPU/EUP ops
    return jnp.maximum(z, 0.0) + jnp.log1p(jnp.exp(-jnp.abs(z)))


def _cparams(sems):
    return pltpu.CompilerParams(dimension_semantics=tuple(sems),
                                vmem_limit_bytes=_VMEM_LIMIT)


def _const_spec(shape):
    rank = len(shape)
    return pl.BlockSpec(shape, lambda *_: (0,) * rank)


def _ff(x, w1, b1, w2, b2, w3, b3, ws, bs):
    """FF block: 3x(Linear+ReLU) + linear shortcut; bf16 MXU, f32 accumulate."""
    xb = x.astype(jnp.bfloat16)
    h = jnp.maximum(jnp.dot(xb, w1, preferred_element_type=jnp.float32) + b1, 0.0)
    h = jnp.maximum(jnp.dot(h.astype(jnp.bfloat16), w2,
                            preferred_element_type=jnp.float32) + b2, 0.0)
    h = jnp.maximum(jnp.dot(h.astype(jnp.bfloat16), w3,
                            preferred_element_type=jnp.float32) + b3, 0.0)
    return h + jnp.dot(xb, ws, preferred_element_type=jnp.float32) + bs


# ----------------------------- Pallas kernels ------------------------------

def encoder_fused_kernel(num_layers, a_ref, x_ref, *refs):
    """All GIN layers in one pass: the int8 (I + A) matrix is DMA'd from HBM once,
    widened to bf16 once, and reused for every layer's aggregation matmul.
    Each layer: BatchNorm1d(relu(GIN_MLP((I + A) @ h))), eps=0, train-mode stats."""
    a = a_ref[...].astype(jnp.bfloat16)                 # int8 -> bf16 (exact 0/1/2)
    h = x_ref[...]                                      # bf16 [n, f_pad]
    for l in range(num_layers):
        w1, b1, w2, b2 = refs[4 * l: 4 * l + 4]
        agg = jnp.dot(a, h, preferred_element_type=jnp.float32)       # (I+A) @ h
        t = jnp.dot(agg.astype(jnp.bfloat16), w1[...],
                    preferred_element_type=jnp.float32) + b1[...]
        t = jnp.maximum(t, 0.0)                                       # MLP inner ReLU
        t = jnp.dot(t.astype(jnp.bfloat16), w2[...],
                    preferred_element_type=jnp.float32) + b2[...]
        t = jnp.maximum(t, 0.0)                                       # F.relu(conv(x))
        mean = jnp.mean(t, axis=0, keepdims=True)                     # BN (train mode)
        var = jnp.mean((t - mean) ** 2, axis=0, keepdims=True)
        bn = (t - mean) * lax.rsqrt(var + _BN_EPS)                    # weight=1, bias=0
        out_ref = refs[4 * num_layers + l]
        out_ref[...] = bn.astype(out_ref.dtype)                       # bf16 layer out
        h = bn.astype(jnp.bfloat16)


def gin_layer_kernel(a_ref, x_ref, w1_ref, b1_ref, w2_ref, b2_ref, out_ref, agg_ref):
    """Large-graph fallback: one GIN layer, (I+A) streamed as int8 column strips
    over a reduction grid with an f32 VMEM accumulator; MLP + BN at the last strip.
    # TODO(synk): v7x dual-core variant (row-parallel x strip-arbitrary 2D grid)."""
    k = pl.program_id(0)

    @pl.when(k == 0)
    def _():
        agg_ref[...] = jnp.zeros_like(agg_ref)

    agg_ref[...] += jnp.dot(a_ref[...].astype(jnp.bfloat16), x_ref[...],
                            preferred_element_type=jnp.float32)

    @pl.when(k == pl.num_programs(0) - 1)
    def _():
        agg = agg_ref[...]
        h = jnp.dot(agg.astype(jnp.bfloat16), w1_ref[...],
                    preferred_element_type=jnp.float32) + b1_ref[...]
        h = jnp.maximum(h, 0.0)
        h = jnp.dot(h.astype(jnp.bfloat16), w2_ref[...],
                    preferred_element_type=jnp.float32) + b2_ref[...]
        h = jnp.maximum(h, 0.0)
        mean = jnp.mean(h, axis=0, keepdims=True)
        var = jnp.mean((h - mean) ** 2, axis=0, keepdims=True)
        out_ref[...] = ((h - mean) * lax.rsqrt(var + _BN_EPS)).astype(out_ref.dtype)


def heads_kernel(p_ref, m_ref, lw1, lb1, lw2, lb2, lw3, lb3, lws, lbs,
                 l_out_ref, y_part_ref):
    """Row-parallel: per node-row tile compute the local FF head (l_enc tile) and a
    per-tile pooled partial (pool_strip @ m_tile); no cross-step state."""
    m = m_ref[...]                                              # bf16 (tile, d_pad)
    y_part_ref[0] = jnp.dot(p_ref[...], m, preferred_element_type=jnp.float32)
    l_out_ref[...] = _ff(m, lw1[...], lb1[...], lw2[...], lb2[...],
                         lw3[...], lb3[...], lws[...], lbs[...]).astype(l_out_ref.dtype)


def global_head_kernel(yp_ref, gw1, gb1, gw2, gb2, gw3, gb3, gws, gbs, g_out_ref):
    """Sum pooled partials (global_add_pool) and run the tiny global FF head."""
    y = yp_ref[0]
    for t in range(1, yp_ref.shape[0]):
        y = y + yp_ref[t]
    g_out_ref[...] = _ff(y, gw1[...], gb1[...], gw2[...], gb2[...],
                         gw3[...], gb3[...], gws[...], gbs[...]).astype(g_out_ref.dtype)


def fused_loss_kernel(num_graphs, pos_ref, l_tile_ref, l_all_ref, g_ref, adj_ref,
                      out_ref, acc_ref):
    """Fused JSD local/global loss + adjacency-reconstruction BCE.
    2D grid: rows 'parallel', columns (adjacency tiles) 'arbitrary'.  Per row tile
    the JSD terms run once (j==0), the BCE accumulates over column tiles in SMEM,
    and the three partial sums go to a lane-dense (1, 8, 128) output block."""
    i = pl.program_id(0)
    j = pl.program_id(1)
    nj = pl.num_programs(1)
    tm = l_tile_ref.shape[0]
    tn = adj_ref.shape[1]
    l_tile = l_tile_ref[...]                                    # bf16 (tm, d_pad)

    @pl.when(j == 0)
    def _():
        # local/global JSD expectations; l @ g^T via contracting last dims (no .T)
        res = lax.dot_general(l_tile, g_ref[...], (((1,), (1,)), ((), ())),
                              preferred_element_type=jnp.float32)    # (tm, g_pad)
        pos = pos_ref[...]                                           # one-hot, f32
        col = lax.broadcasted_iota(jnp.int32, res.shape, 1)
        neg = jnp.where(col < num_graphs, 1.0 - pos, 0.0)            # mask pad graphs
        sp = _softplus(-res)                    # one softplus; softplus(z) = sp + z
        acc_ref[0] = jnp.sum((_LOG2 - sp) * pos)                     # E_pos partial
        acc_ref[1] = jnp.sum((sp + res - _LOG2) * neg)               # E_neg partial
        acc_ref[2] = 0.0

    # ---- adjacency BCE on the (i, j) tile, in logits form (torch -100 clamp) ----
    start = pl.multiple_of(j * tn, tn)
    l_cols = l_all_ref[pl.ds(start, tn), :]                          # bf16 (tn, d_pad)
    z = lax.dot_general(l_tile, l_cols, (((1,), (1,)), ((), ())),
                        preferred_element_type=jnp.float32)          # (tm, tn)
    adj = adj_ref[...].astype(jnp.float32)                           # int8 -> f32
    row = i * tm + lax.broadcasted_iota(jnp.int32, z.shape, 0)
    col = start + lax.broadcasted_iota(jnp.int32, z.shape, 1)
    eye = row == col
    sp_n = _softplus(-z)                     # -log sigmoid(z); sp_n + z = -log(1-sig)
    term = jnp.where(eye, adj * 100.0,       # torch forces res=0 on the diagonal
                     adj * jnp.minimum(sp_n, 100.0)
                     + (1.0 - adj) * jnp.minimum(sp_n + z, 100.0))
    acc_ref[2] += jnp.sum(term)

    @pl.when(j == nj - 1)
    def _():
        lane = lax.broadcasted_iota(jnp.int32, (8, 128), 1)
        out_ref[0] = jnp.where(lane == 0, acc_ref[0],
                     jnp.where(lane == 1, acc_ref[1],
                     jnp.where(lane == 2, acc_ref[2], 0.0)))


# ------------------------------ call wrappers -------------------------------

def _encoder_fused(agg_i8, x_pad, enc_padded, n, h_pad):
    num_layers = len(enc_padded)
    f_pad = x_pad.shape[1]
    w_refs = [a for layer in enc_padded for a in layer]
    kernel = functools.partial(encoder_fused_kernel, num_layers)
    feats = pl.pallas_call(
        kernel,
        out_shape=tuple(jax.ShapeDtypeStruct((n, h_pad), jnp.bfloat16)
                        for _ in range(num_layers)),
        grid=(1,),
        in_specs=[pl.BlockSpec((n, n), lambda i: (0, 0)),        # int8 (I+A), resident
                  pl.BlockSpec((n, f_pad), lambda i: (0, 0))]
                 + [_const_spec(a.shape) for a in w_refs],
        out_specs=tuple(pl.BlockSpec((n, h_pad), lambda i: (0, 0))
                        for _ in range(num_layers)),
        compiler_params=_cparams(("arbitrary",)),
    )(agg_i8, x_pad, *w_refs)
    return list(feats)


def _gin_layer(agg_i8, h, w1, b1, w2, b2, k_tile):
    n, f_in = h.shape
    h_out = w2.shape[1]
    return pl.pallas_call(
        gin_layer_kernel,
        out_shape=jax.ShapeDtypeStruct((n, h_out), jnp.bfloat16),
        grid=(n // k_tile,),
        in_specs=[
            pl.BlockSpec((n, k_tile), lambda k: (0, k)),     # int8 (I+A) column strip
            pl.BlockSpec((k_tile, f_in), lambda k: (k, 0)),  # matching h rows (bf16)
            _const_spec((f_in, h_out)),
            _const_spec((1, h_out)),
            _const_spec((h_out, h_out)),
            _const_spec((1, h_out)),
        ],
        out_specs=pl.BlockSpec((n, h_out), lambda k: (0, 0)),
        scratch_shapes=[pltpu.VMEM((n, f_in), jnp.float32)],
        compiler_params=_cparams(("arbitrary",)),            # reduction over strips
    )(agg_i8, h, w1, b1, w2, b2)


def _heads(pool, m, local_ff, tile):
    n, d_pad = m.shape
    g_pad = pool.shape[0]
    ntiles = n // tile
    w_specs = [_const_spec(a.shape) for a in local_ff]
    l_enc, y_part = pl.pallas_call(
        heads_kernel,
        out_shape=(jax.ShapeDtypeStruct((n, d_pad), jnp.bfloat16),          # l_enc
                   jax.ShapeDtypeStruct((ntiles, g_pad, d_pad), jnp.float32)),
        grid=(ntiles,),
        in_specs=[pl.BlockSpec((g_pad, tile), lambda i: (0, i)),
                  pl.BlockSpec((tile, d_pad), lambda i: (i, 0))] + w_specs,
        out_specs=(pl.BlockSpec((tile, d_pad), lambda i: (i, 0)),
                   pl.BlockSpec((1, g_pad, d_pad), lambda i: (i, 0, 0))),
        compiler_params=_cparams(("parallel",)),             # independent row tiles
    )(pool, m, *local_ff)
    return l_enc, y_part


def _global_head(y_part, global_ff):
    ntiles, g_pad, d_pad = y_part.shape
    w_specs = [_const_spec(a.shape) for a in global_ff]
    return pl.pallas_call(
        global_head_kernel,
        out_shape=jax.ShapeDtypeStruct((g_pad, d_pad), jnp.bfloat16),
        grid=(1,),
        in_specs=[pl.BlockSpec((ntiles, g_pad, d_pad), lambda i: (0, 0, 0))] + w_specs,
        out_specs=pl.BlockSpec((g_pad, d_pad), lambda i: (0, 0)),
        compiler_params=_cparams(("arbitrary",)),
    )(y_part, *global_ff)


def _fused_loss(onehot, l_enc, g_enc, adj_i8, tm, tn, num_graphs):
    n, d_pad = l_enc.shape
    g_pad = g_enc.shape[0]
    ntr = n // tm
    kernel = functools.partial(fused_loss_kernel, num_graphs)
    partials = pl.pallas_call(
        kernel,
        out_shape=jax.ShapeDtypeStruct((ntr, 8, 128), jnp.float32),
        grid=(ntr, n // tn),
        in_specs=[
            pl.BlockSpec((tm, g_pad), lambda i, j: (i, 0)),   # one-hot pos-mask rows
            pl.BlockSpec((tm, d_pad), lambda i, j: (i, 0)),   # l_enc row tile (bf16)
            _const_spec((n, d_pad)),                          # l_enc rhs, VMEM resident
            _const_spec((g_pad, d_pad)),                      # g_enc (bf16, resident)
            pl.BlockSpec((tm, tn), lambda i, j: (i, j)),      # adjacency int8 tile
        ],
        out_specs=pl.BlockSpec((1, 8, 128), lambda i, j: (i, 0, 0)),
        scratch_shapes=[pltpu.SMEM((3,), jnp.float32)],
        compiler_params=_cparams(("parallel", "arbitrary")),
    )(onehot, l_enc, l_enc, g_enc, adj_i8)
    sums = jnp.sum(partials[:, 0, :], axis=0)
    e_pos = sums[0] / n
    # NOTE: matches the torch reference; num_graphs == 1 divides by zero there too.
    e_neg = sums[1] / (n * (num_graphs - 1))
    bce = sums[2] / (n * n)                                   # adj_loss_ (mean BCE)
    return e_neg - e_pos, bce                                 # local_global_loss_, bce


# ---------------------------- parameter helpers ------------------------------

def _xavier_uniform(key, fan_in, fan_out):
    bound = math.sqrt(6.0 / (fan_in + fan_out))
    # stored [in, out] (transposed w.r.t. torch [out, in]); identical xavier bound
    return jax.random.uniform(key, (fan_in, fan_out), jnp.float32, -bound, bound)


def _linear(key, fan_in, fan_out):
    return _xavier_uniform(key, fan_in, fan_out), jnp.zeros((1, fan_out), jnp.float32)


def init_params(key, num_features, hidden_dim, num_gc_layers):
    params = {"encoder": []}
    for i in range(num_gc_layers):
        key, k1, k2 = jax.random.split(key, 3)
        fin = num_features if i == 0 else hidden_dim
        w1, b1 = _linear(k1, fin, hidden_dim)
        w2, b2 = _linear(k2, hidden_dim, hidden_dim)
        params["encoder"].append({"w1": w1, "b1": b1, "w2": w2, "b2": b2})

    embedding_dim = hidden_dim * num_gc_layers

    def make_ff(k, dim):
        k1, k2, k3, k4 = jax.random.split(k, 4)
        w1, b1 = _linear(k1, dim, dim)
        w2, b2 = _linear(k2, dim, dim)
        w3, b3 = _linear(k3, dim, dim)
        ws, bs = _linear(k4, dim, dim)
        return (w1, b1, w2, b2, w3, b3, ws, bs)

    key, kl, kg = jax.random.split(key, 3)
    params["local_d"] = make_ff(kl, embedding_dim)
    params["global_d"] = make_ff(kg, embedding_dim)
    return params


# --------------------------- lane padding (exact) ----------------------------

def _pad2d(a, rows, cols):
    return jnp.pad(a, ((0, rows - a.shape[0]), (0, cols - a.shape[1])))


def _pad_encoder_layer(layer, f_in_pad, h_pad):
    return (_pad2d(layer["w1"], f_in_pad, h_pad).astype(jnp.bfloat16),
            _pad2d(layer["b1"], 1, h_pad),
            _pad2d(layer["w2"], h_pad, h_pad).astype(jnp.bfloat16),
            _pad2d(layer["b2"], 1, h_pad))


def _pad_ff(ff, d, d_pad):
    w1, b1, w2, b2, w3, b3, ws, bs = ff
    wp = lambda a: _pad2d(a, d_pad, d_pad).astype(jnp.bfloat16)
    bp = lambda a: _pad2d(a, 1, d_pad)
    return (wp(w1), bp(b1), wp(w2), bp(b2), wp(w3), bp(b3), wp(ws), bp(bs))


def _pick_row_tile(n, pref=128):
    for t in (pref, 128, 64, 32):
        if t <= n and n % t == 0 and t % 32 == 0:
            return t
    raise ValueError(f"no valid row tile for n={n}; pad N to a multiple of 32")


def _pick_lane_tile(n, pref=512):
    for t in (pref, 512, 256, 128):
        if t <= n and n % t == 0 and t % 128 == 0:
            return t
    raise ValueError(f"no valid lane tile for n={n}; pad N to a multiple of 128")


# -------------------------------- forward -----------------------------------

def gcn_infomax_forward(params, x, edge_index, batch, num_graphs,
                        gamma=0.1, prior=False, local=True, adj_loss=True,
                        row_tile=None, col_tile=None):
    n = x.shape[0]
    num_layers = len(params["encoder"])
    hidden = params["encoder"][0]["w2"].shape[1]
    d = num_layers * hidden
    f_pad = _ceil_to(x.shape[1], 128)
    h_pad = _ceil_to(hidden, 128)
    d_pad = _ceil_to(d, 128)
    g_pad = _ceil_to(num_graphs, 8)       # >=8 sublanes for the pooled matmul

    tm = row_tile if row_tile is not None else _pick_row_tile(n)
    tn = col_tile if col_tile is not None else _pick_lane_tile(n)
    if n % tm or tm % 32:
        raise ValueError(f"row tile {tm} must divide n={n} and be a multiple of 32")
    if n % tn or tn % 128:
        raise ValueError(f"col tile {tn} must divide n={n} and be a multiple of 128")

    src, dst = edge_index[0], edge_index[1]

    # GINConv aggregation with eps=0 folded into one operand: (I + A), stored int8 in
    # HBM and widened on-chip (values 0/1/2..., exact).  Adjacency target likewise.
    # TODO(synk): replace the dense N^2 matrices with an edge-list gather/segment-sum
    # (PrefetchScalarGridSpec) for large sparse graphs.
    agg_i8 = (jnp.zeros((n, n), jnp.int32).at[dst, src].add(1)
              + jnp.eye(n, dtype=jnp.int32)).astype(jnp.int8)
    adj_i8 = (jnp.zeros((n, n), jnp.int32)
              .at[src, dst].set(1).at[dst, src].set(1)).astype(jnp.int8)

    x_pad = jnp.pad(x.astype(jnp.float32),
                    ((0, 0), (0, f_pad - x.shape[1]))).astype(jnp.bfloat16)

    enc_padded = []
    f_in_pad = f_pad
    for layer in params["encoder"]:
        enc_padded.append(_pad_encoder_layer(layer, f_in_pad, h_pad))
        f_in_pad = h_pad

    # ----- encoder: fused single pass over (I+A) when it fits VMEM -----
    fused_vmem_est = 4 * n * n + 32 * n * h_pad
    if fused_vmem_est <= _FUSED_A_BUDGET:
        feats = _encoder_fused(agg_i8, x_pad, enc_padded, n, h_pad)
    else:
        feats = []
        h = x_pad
        for w in enc_padded:
            h = _gin_layer(agg_i8, h, *w, tn)
            feats.append(h)

    # compact concatenated embedding: only the first `hidden` columns of each padded
    # layer output are real -> m is d (=96) wide, padded once to a single 128-lane slab
    m = jnp.concatenate([f[:, :hidden] for f in feats], axis=1)
    if d_pad > d:
        m = jnp.pad(m, ((0, 0), (0, d_pad - d)))

    onehot = jax.nn.one_hot(batch, g_pad, dtype=jnp.float32)        # (n, g_pad)
    pool = onehot.T.astype(jnp.bfloat16)                            # (g_pad, n)

    local_ff = _pad_ff(params["local_d"], d, d_pad)
    global_ff = _pad_ff(params["global_d"], d, d_pad)

    # ----- discriminator heads: row-parallel local FF + pooled partials, tiny global FF -----
    l_enc, y_part = _heads(pool, m, local_ff, tn)
    g_enc = _global_head(y_part, global_ff)

    # TODO(synk): args.prior branch (torch.rand_like + PriorDiscriminator) stays
    # disabled (prior=False); torch's RNG stream has no bitwise Pallas equivalent.
    prior_term = jnp.float32(0.0)
    if not (local or adj_loss):
        return prior_term

    # ----- fused JSD local/global loss + adjacency reconstruction BCE -----
    jsd, bce = _fused_loss(onehot, l_enc, g_enc, adj_i8, tm, tn, num_graphs)

    total = prior_term
    if local:
        total = total + jsd
    if adj_loss:
        total = total + bce
    return total


# --------------------------------- main --------------------------------------

if __name__ == "__main__":
    key = jax.random.PRNGKey(0)
    num_features = 8       # dataset_num_features
    hidden_dim = 32
    num_gc_layers = 3      # embedding_dim = 96
    num_graphs = 2
    nodes_per_graph = 128
    N = num_graphs * nodes_per_graph   # 256 nodes -> multi-step heads / loss grids

    key, kx, kp = jax.random.split(key, 3)
    x = jax.random.normal(kx, (N, num_features), dtype=jnp.float32)

    # undirected ring graph inside each of the two graphs
    src, dst = [], []
    for g in range(num_graphs):
        base = g * nodes_per_graph
        for i in range(nodes_per_graph):
            a, b = base + i, base + (i + 1) % nodes_per_graph
            src += [a, b]
            dst += [b, a]
    edge_index = jnp.array([src, dst], dtype=jnp.int32)      # [2, 512]
    batch = jnp.repeat(jnp.arange(num_graphs, dtype=jnp.int32), nodes_per_graph)

    params = init_params(kp, num_features, hidden_dim, num_gc_layers)

    # explicit small tiles so the loss / heads grids run multiple steps
    loss = gcn_infomax_forward(params, x, edge_index, batch, num_graphs,
                               row_tile=64, col_tile=128)
    loss = jax.block_until_ready(loss)
    assert jnp.isfinite(loss)
    print("KERNEL_OK")
</pallas_src>

<mosaic_0001>
module attributes {stable_mosaic.version = 11 : i64} {
  func.func @encoder_fused_kernel(%arg0: i32, %arg1: memref<256x256xi8, #tpu.memory_space<vmem>>, %arg2: memref<256x128xbf16, #tpu.memory_space<vmem>>, %arg3: memref<128x128xbf16, #tpu.memory_space<vmem>>, %arg4: memref<1x128xf32, #tpu.memory_space<vmem>>, %arg5: memref<128x128xbf16, #tpu.memory_space<vmem>>, %arg6: memref<1x128xf32, #tpu.memory_space<vmem>>, %arg7: memref<128x128xbf16, #tpu.memory_space<vmem>>, %arg8: memref<1x128xf32, #tpu.memory_space<vmem>>, %arg9: memref<128x128xbf16, #tpu.memory_space<vmem>>, %arg10: memref<1x128xf32, #tpu.memory_space<vmem>>, %arg11: memref<128x128xbf16, #tpu.memory_space<vmem>>, %arg12: memref<1x128xf32, #tpu.memory_space<vmem>>, %arg13: memref<128x128xbf16, #tpu.memory_space<vmem>>, %arg14: memref<1x128xf32, #tpu.memory_space<vmem>>, %arg15: memref<256x128xbf16, #tpu.memory_space<vmem>>, %arg16: memref<256x128xbf16, #tpu.memory_space<vmem>>, %arg17: memref<256x128xbf16, #tpu.memory_space<vmem>>) attributes {dimension_semantics = [#tpu.dimension_semantics<arbitrary>], iteration_bounds = array<i64: 1>, scalar_prefetch = 0 : i64, scratch_operands = 0 : i64, tpu.core_type = #tpu.core_type<tc>, window_params = [{pipeline_mode = #tpu.pipeline_mode<synchronous>, transform_indices = @transform_0, window_bounds = array<i64: 256, 256>}, {pipeline_mode = #tpu.pipeline_mode<synchronous>, transform_indices = @transform_1, window_bounds = array<i64: 256, 128>}, {pipeline_mode = #tpu.pipeline_mode<synchronous>, transform_indices = @transform_2, window_bounds = array<i64: 128, 128>}, {pipeline_mode = #tpu.pipeline_mode<synchronous>, transform_indices = @transform_3, window_bounds = array<i64: 1, 128>}, {pipeline_mode = #tpu.pipeline_mode<synchronous>, transform_indices = @transform_4, window_bounds = array<i64: 128, 128>}, {pipeline_mode = #tpu.pipeline_mode<synchronous>, transform_indices = @transform_5, window_bounds = array<i64: 1, 128>}, {pipeline_mode = #tpu.pipeline_mode<synchronous>, transform_indices = @transform_6, window_bounds = array<i64: 128, 128>}, {pipeline_mode = #tpu.pipeline_mode<synchronous>, transform_indices = @transform_7, window_bounds = array<i64: 1, 128>}, {pipeline_mode = #tpu.pipeline_mode<synchronous>, transform_indices = @transform_8, window_bounds = array<i64: 128, 128>}, {pipeline_mode = #tpu.pipeline_mode<synchronous>, transform_indices = @transform_9, window_bounds = array<i64: 1, 128>}, {pipeline_mode = #tpu.pipeline_mode<synchronous>, transform_indices = @transform_10, window_bounds = array<i64: 128, 128>}, {pipeline_mode = #tpu.pipeline_mode<synchronous>, transform_indices = @transform_11, window_bounds = array<i64: 1, 128>}, {pipeline_mode = #tpu.pipeline_mode<synchronous>, transform_indices = @transform_12, window_bounds = array<i64: 128, 128>}, {pipeline_mode = #tpu.pipeline_mode<synchronous>, transform_indices = @transform_13, window_bounds = array<i64: 1, 128>}, {pipeline_mode = #tpu.pipeline_mode<synchronous>, transform_indices = @transform_14, window_bounds = array<i64: 256, 128>}, {pipeline_mode = #tpu.pipeline_mode<synchronous>, transform_indices = @transform_15, window_bounds = array<i64: 256, 128>}, {pipeline_mode = #tpu.pipeline_mode<synchronous>, transform_indices = @transform_16, window_bounds = array<i64: 256, 128>}]} {
    %c0 = arith.constant 0 : index
    %c0_0 = arith.constant 0 : index
    %0 = vector.load %arg1[%c0, %c0_0] : memref<256x256xi8, #tpu.memory_space<vmem>>, vector<256x256xi8>
    %1 = arith.sitofp %0 : vector<256x256xi8> to vector<256x256xbf16>
    %c0_1 = arith.constant 0 : index
    %c0_2 = arith.constant 0 : index
    %2 = vector.load %arg2[%c0_1, %c0_2] : memref<256x128xbf16, #tpu.memory_space<vmem>>, vector<256x128xbf16>
    %cst = arith.constant dense<0.000000e+00> : vector<256x128xf32>
    %3 = tpu.matmul %1, %2, %cst {dimension_numbers = #tpu.dot_dimension_numbers<[1], [0], [0], [1], [0, 0, 1, 1], [], []>} : vector<256x256xbf16>, vector<256x128xbf16>, vector<256x128xf32> -> vector<256x128xf32>
    %4 = arith.truncf %3 : vector<256x128xf32> to vector<256x128xbf16>
    %c0_3 = arith.constant 0 : index
    %c0_4 = arith.constant 0 : index
    %5 = vector.load %arg3[%c0_3, %c0_4] : memref<128x128xbf16, #tpu.memory_space<vmem>>, vector<128x128xbf16>
    %cst_5 = arith.constant dense<0.000000e+00> : vector<256x128xf32>
    %6 = tpu.matmul %4, %5, %cst_5 {dimension_numbers = #tpu.dot_dimension_numbers<[1], [0], [0], [1], [0, 0, 1, 1], [], []>} : vector<256x128xbf16>, vector<128x128xbf16>, vector<256x128xf32> -> vector<256x128xf32>
    %c0_6 = arith.constant 0 : index
    %c0_7 = arith.constant 0 : index
    %7 = vector.load %arg4[%c0_6, %c0_7] : memref<1x128xf32, #tpu.memory_space<vmem>>, vector<1x128xf32>
    %8 = vector.broadcast %7 : vector<1x128xf32> to vector<256x128xf32>
    %9 = arith.addf %6, %8 : vector<256x128xf32>
    %cst_8 = arith.constant 0.000000e+00 : f32
    %10 = vector.broadcast %cst_8 : f32 to vector<256x128xf32>
    %11 = arith.maximumf %9, %10 : vector<256x128xf32>
    %12 = arith.truncf %11 : vector<256x128xf32> to vector<256x128xbf16>
    %c0_9 = arith.constant 0 : index
    %c0_10 = arith.constant 0 : index
    %13 = vector.load %arg5[%c0_9, %c0_10] : memref<128x128xbf16, #tpu.memory_space<vmem>>, vector<128x128xbf16>
    %cst_11 = arith.constant dense<0.000000e+00> : vector<256x128xf32>
    %14 = tpu.matmul %12, %13, %cst_11 {dimension_numbers = #tpu.dot_dimension_numbers<[1], [0], [0], [1], [0, 0, 1, 1], [], []>} : vector<256x128xbf16>, vector<128x128xbf16>, vector<256x128xf32> -> vector<256x128xf32>
    %c0_12 = arith.constant 0 : index
    %c0_13 = arith.constant 0 : index
    %15 = vector.load %arg6[%c0_12, %c0_13] : memref<1x128xf32, #tpu.memory_space<vmem>>, vector<1x128xf32>
    %16 = vector.broadcast %15 : vector<1x128xf32> to vector<256x128xf32>
    %17 = arith.addf %14, %16 : vector<256x128xf32>
    %cst_14 = arith.constant 0.000000e+00 : f32
    %18 = vector.broadcast %cst_14 : f32 to vector<256x128xf32>
    %19 = arith.maximumf %17, %18 : vector<256x128xf32>
    %cst_15 = arith.constant dense<0.000000e+00> : vector<128xf32>
    %20 = vector.multi_reduction <add>, %19, %cst_15 [0] : vector<256x128xf32> to vector<128xf32>
    %21 = vector.shape_cast %20 : vector<128xf32> to vector<1x128xf32>
    %cst_16 = arith.constant 2.560000e+02 : f32
    %22 = vector.broadcast %cst_16 : f32 to vector<1x128xf32>
    %23 = arith.divf %21, %22 : vector<1x128xf32>
    %24 = vector.broadcast %23 : vector<1x128xf32> to vector<256x128xf32>
    %25 = arith.subf %19, %24 : vector<256x128xf32>
    %26 = arith.mulf %25, %25 : vector<256x128xf32>
    %cst_17 = arith.constant dense<0.000000e+00> : vector<128xf32>
    %27 = vector.multi_reduction <add>, %26, %cst_17 [0] : vector<256x128xf32> to vector<128xf32>
    %28 = vector.shape_cast %27 : vector<128xf32> to vector<1x128xf32>
    %cst_18 = arith.constant 2.560000e+02 : f32
    %29 = vector.broadcast %cst_18 : f32 to vector<1x128xf32>
    %30 = arith.divf %28, %29 : vector<1x128xf32>
    %31 = vector.broadcast %23 : vector<1x128xf32> to vector<256x128xf32>
    %32 = arith.subf %19, %31 : vector<256x128xf32>
    %cst_19 = arith.constant 9.99999974E-6 : f32
    %33 = vector.broadcast %cst_19 : f32 to vector<1x128xf32>
    %34 = arith.addf %30, %33 : vector<1x128xf32>
    %35 = math.rsqrt %34 : vector<1x128xf32>
    %36 = vector.broadcast %35 : vector<1x128xf32> to vector<256x128xf32>
    %37 = arith.mulf %32, %36 : vector<256x128xf32>
    %38 = arith.truncf %37 : vector<256x128xf32> to vector<256x128xbf16>
    %c0_20 = arith.constant 0 : index
    %c0_21 = arith.constant 0 : index
    %39 = vector.load %arg15[%c0_20, %c0_21] : memref<256x128xbf16, #tpu.memory_space<vmem>>, vector<256x128xbf16>
    tpu.vector_store %arg15[%c0_20, %c0_21], %38 {strides = array<i32>} : memref<256x128xbf16, #tpu.memory_space<vmem>>, vector<256x128xbf16>,
    %40 = arith.truncf %37 : vector<256x128xf32> to vector<256x128xbf16>
    %cst_22 = arith.constant dense<0.000000e+00> : vector<256x128xf32>
    %41 = tpu.matmul %1, %40, %cst_22 {dimension_numbers = #tpu.dot_dimension_numbers<[1], [0], [0], [1], [0, 0, 1, 1], [], []>} : vector<256x256xbf16>, vector<256x128xbf16>, vector<256x128xf32> -> vector<256x128xf32>
    %42 = arith.truncf %41 : vector<256x128xf32> to vector<256x128xbf16>
    %c0_23 = arith.constant 0 : index
    %c0_24 = arith.constant 0 : index
    %43 = vector.load %arg7[%c0_23, %c0_24] : memref<128x128xbf16, #tpu.memory_space<vmem>>, vector<128x128xbf16>
    %cst_25 = arith.constant dense<0.000000e+00> : vector<256x128xf32>
    %44 = tpu.matmul %42, %43, %cst_25 {dimension_numbers = #tpu.dot_dimension_numbers<[1], [0], [0], [1], [0, 0, 1, 1], [], []>} : vector<256x128xbf16>, vector<128x128xbf16>, vector<256x128xf32> -> vector<256x128xf32>
    %c0_26 = arith.constant 0 : index
    %c0_27 = arith.constant 0 : index
    %45 = vector.load %arg8[%c0_26, %c0_27] : memref<1x128xf32, #tpu.memory_space<vmem>>, vector<1x128xf32>
    %46 = vector.broadcast %45 : vector<1x128xf32> to vector<256x128xf32>
    %47 = arith.addf %44, %46 : vector<256x128xf32>
    %cst_28 = arith.constant 0.000000e+00 : f32
    %48 = vector.broadcast %cst_28 : f32 to vector<256x128xf32>
    %49 = arith.maximumf %47, %48 : vector<256x128xf32>
    %50 = arith.truncf %49 : vector<256x128xf32> to vector<256x128xbf16>
    %c0_29 = arith.constant 0 : index
    %c0_30 = arith.constant 0 : index
    %51 = vector.load %arg9[%c0_29, %c0_30] : memref<128x128xbf16, #tpu.memory_space<vmem>>, vector<128x128xbf16>
    %cst_31 = arith.constant dense<0.000000e+00> : vector<256x128xf32>
    %52 = tpu.matmul %50, %51, %cst_31 {dimension_numbers = #tpu.dot_dimension_numbers<[1], [0], [0], [1], [0, 0, 1, 1], [], []>} : vector<256x128xbf16>, vector<128x128xbf16>, vector<256x128xf32> -> vector<256x128xf32>
    %c0_32 = arith.constant 0 : index
    %c0_33 = arith.constant 0 : index
    %53 = vector.load %arg10[%c0_32, %c0_33] : memref<1x128xf32, #tpu.memory_space<vmem>>, vector<1x128xf32>
    %54 = vector.broadcast %53 : vector<1x128xf32> to vector<256x128xf32>
    %55 = arith.addf %52, %54 : vector<256x128xf32>
    %cst_34 = arith.constant 0.000000e+00 : f32
    %56 = vector.broadcast %cst_34 : f32 to vector<256x128xf32>
    %57 = arith.maximumf %55, %56 : vector<256x128xf32>
    %cst_35 = arith.constant dense<0.000000e+00> : vector<128xf32>
    %58 = vector.multi_reduction <add>, %57, %cst_35 [0] : vector<256x128xf32> to vector<128xf32>
    %59 = vector.shape_cast %58 : vector<128xf32> to vector<1x128xf32>
    %cst_36 = arith.constant 2.560000e+02 : f32
    %60 = vector.broadcast %cst_36 : f32 to vector<1x128xf32>
    %61 = arith.divf %59, %60 : vector<1x128xf32>
    %62 = vector.broadcast %61 : vector<1x128xf32> to vector<256x128xf32>
    %63 = arith.subf %57, %62 : vector<256x128xf32>
    %64 = arith.mulf %63, %63 : vector<256x128xf32>
    %cst_37 = arith.constant dense<0.000000e+00> : vector<128xf32>
    %65 = vector.multi_reduction <add>, %64, %cst_37 [0] : vector<256x128xf32> to vector<128xf32>
    %66 = vector.shape_cast %65 : vector<128xf32> to vector<1x128xf32>
    %cst_38 = arith.constant 2.560000e+02 : f32
    %67 = vector.broadcast %cst_38 : f32 to vector<1x128xf32>
    %68 = arith.divf %66, %67 : vector<1x128xf32>
    %69 = vector.broadcast %61 : vector<1x128xf32> to vector<256x128xf32>
    %70 = arith.subf %57, %69 : vector<256x128xf32>
    %cst_39 = arith.constant 9.99999974E-6 : f32
    %71 = vector.broadcast %cst_39 : f32 to vector<1x128xf32>
    %72 = arith.addf %68, %71 : vector<1x128xf32>
    %73 = math.rsqrt %72 : vector<1x128xf32>
    %74 = vector.broadcast %73 : vector<1x128xf32> to vector<256x128xf32>
    %75 = arith.mulf %70, %74 : vector<256x128xf32>
    %76 = arith.truncf %75 : vector<256x128xf32> to vector<256x128xbf16>
    %c0_40 = arith.constant 0 : index
    %c0_41 = arith.constant 0 : index
    %77 = vector.load %arg16[%c0_40, %c0_41] : memref<256x128xbf16, #tpu.memory_space<vmem>>, vector<256x128xbf16>
    tpu.vector_store %arg16[%c0_40, %c0_41], %76 {strides = array<i32>} : memref<256x128xbf16, #tpu.memory_space<vmem>>, vector<256x128xbf16>,
    %78 = arith.truncf %75 : vector<256x128xf32> to vector<256x128xbf16>
    %cst_42 = arith.constant dense<0.000000e+00> : vector<256x128xf32>
    %79 = tpu.matmul %1, %78, %cst_42 {dimension_numbers = #tpu.dot_dimension_numbers<[1], [0], [0], [1], [0, 0, 1, 1], [], []>} : vector<256x256xbf16>, vector<256x128xbf16>, vector<256x128xf32> -> vector<256x128xf32>
    %80 = arith.truncf %79 : vector<256x128xf32> to vector<256x128xbf16>
    %c0_43 = arith.constant 0 : index
    %c0_44 = arith.constant 0 : index
    %81 = vector.load %arg11[%c0_43, %c0_44] : memref<128x128xbf16, #tpu.memory_space<vmem>>, vector<128x128xbf16>
    %cst_45 = arith.constant dense<0.000000e+00> : vector<256x128xf32>
    %82 = tpu.matmul %80, %81, %cst_45 {dimension_numbers = #tpu.dot_dimension_numbers<[1], [0], [0], [1], [0, 0, 1, 1], [], []>} : vector<256x128xbf16>, vector<128x128xbf16>, vector<256x128xf32> -> vector<256x128xf32>
    %c0_46 = arith.constant 0 : index
    %c0_47 = arith.constant 0 : index
    %83 = vector.load %arg12[%c0_46, %c0_47] : memref<1x128xf32, #tpu.memory_space<vmem>>, vector<1x128xf32>
    %84 = vector.broadcast %83 : vector<1x128xf32> to vector<256x128xf32>
    %85 = arith.addf %82, %84 : vector<256x128xf32>
    %cst_48 = arith.constant 0.000000e+00 : f32
    %86 = vector.broadcast %cst_48 : f32 to vector<256x128xf32>
    %87 = arith.maximumf %85, %86 : vector<256x128xf32>
    %88 = arith.truncf %87 : vector<256x128xf32> to vector<256x128xbf16>
    %c0_49 = arith.constant 0 : index
    %c0_50 = arith.constant 0 : index
    %89 = vector.load %arg13[%c0_49, %c0_50] : memref<128x128xbf16, #tpu.memory_space<vmem>>, vector<128x128xbf16>
    %cst_51 = arith.constant dense<0.000000e+00> : vector<256x128xf32>
    %90 = tpu.matmul %88, %89, %cst_51 {dimension_numbers = #tpu.dot_dimension_numbers<[1], [0], [0], [1], [0, 0, 1, 1], [], []>} : vector<256x128xbf16>, vector<128x128xbf16>, vector<256x128xf32> -> vector<256x128xf32>
    %c0_52 = arith.constant 0 : index
    %c0_53 = arith.constant 0 : index
    %91 = vector.load %arg14[%c0_52, %c0_53] : memref<1x128xf32, #tpu.memory_space<vmem>>, vector<1x128xf32>
    %92 = vector.broadcast %91 : vector<1x128xf32> to vector<256x128xf32>
    %93 = arith.addf %90, %92 : vector<256x128xf32>
    %cst_54 = arith.constant 0.000000e+00 : f32
    %94 = vector.broadcast %cst_54 : f32 to vector<256x128xf32>
    %95 = arith.maximumf %93, %94 : vector<256x128xf32>
    %cst_55 = arith.constant dense<0.000000e+00> : vector<128xf32>
    %96 = vector.multi_reduction <add>, %95, %cst_55 [0] : vector<256x128xf32> to vector<128xf32>
    %97 = vector.shape_cast %96 : vector<128xf32> to vector<1x128xf32>
    %cst_56 = arith.constant 2.560000e+02 : f32
    %98 = vector.broadcast %cst_56 : f32 to vector<1x128xf32>
    %99 = arith.divf %97, %98 : vector<1x128xf32>
    %100 = vector.broadcast %99 : vector<1x128xf32> to vector<256x128xf32>
    %101 = arith.subf %95, %100 : vector<256x128xf32>
    %102 = arith.mulf %101, %101 : vector<256x128xf32>
    %cst_57 = arith.constant dense<0.000000e+00> : vector<128xf32>
    %103 = vector.multi_reduction <add>, %102, %cst_57 [0] : vector<256x128xf32> to vector<128xf32>
    %104 = vector.shape_cast %103 : vector<128xf32> to vector<1x128xf32>
    %cst_58 = arith.constant 2.560000e+02 : f32
    %105 = vector.broadcast %cst_58 : f32 to vector<1x128xf32>
    %106 = arith.divf %104, %105 : vector<1x128xf32>
    %107 = vector.broadcast %99 : vector<1x128xf32> to vector<256x128xf32>
    %108 = arith.subf %95, %107 : vector<256x128xf32>
    %cst_59 = arith.constant 9.99999974E-6 : f32
    %109 = vector.broadcast %cst_59 : f32 to vector<1x128xf32>
    %110 = arith.addf %106, %109 : vector<1x128xf32>
    %111 = math.rsqrt %110 : vector<1x128xf32>
    %112 = vector.broadcast %111 : vector<1x128xf32> to vector<256x128xf32>
    %113 = arith.mulf %108, %112 : vector<256x128xf32>
    %114 = arith.truncf %113 : vector<256x128xf32> to vector<256x128xbf16>
    %c0_60 = arith.constant 0 : index
    %c0_61 = arith.constant 0 : index
    %115 = vector.load %arg17[%c0_60, %c0_61] : memref<256x128xbf16, #tpu.memory_space<vmem>>, vector<256x128xbf16>
    tpu.vector_store %arg17[%c0_60, %c0_61], %114 {strides = array<i32>} : memref<256x128xbf16, #tpu.memory_space<vmem>>, vector<256x128xbf16>,
    return
  }
  func.func @transform_0(%arg0: i32) -> (i32, i32) {
    %c0_i32 = arith.constant 0 : i32
    %c0_i32_0 = arith.constant 0 : i32
    %c0_i32_1 = arith.constant 0 : i32
    return %c0_i32, %c0_i32_0 : i32, i32
  }
  func.func @transform_1(%arg0: i32) -> (i32, i32) {
    %c0_i32 = arith.constant 0 : i32
    %c0_i32_0 = arith.constant 0 : i32
    %c0_i32_1 = arith.constant 0 : i32
    return %c0_i32, %c0_i32_0 : i32, i32
  }
  func.func @transform_2(%arg0: i32) -> (i32, i32) {
    %c0_i32 = arith.constant 0 : i32
    %c0_i32_0 = arith.constant 0 : i32
    %c0_i32_1 = arith.constant 0 : i32
    return %c0_i32, %c0_i32_0 : i32, i32
  }
  func.func @transform_3(%arg0: i32) -> (i32, i32) {
    %c0_i32 = arith.constant 0 : i32
    %c0_i32_0 = arith.constant 0 : i32
    %c0_i32_1 = arith.constant 0 : i32
    return %c0_i32, %c0_i32_0 : i32, i32
  }
  func.func @transform_4(%arg0: i32) -> (i32, i32) {
    %c0_i32 = arith.constant 0 : i32
    %c0_i32_0 = arith.constant 0 : i32
    %c0_i32_1 = arith.constant 0 : i32
    return %c0_i32, %c0_i32_0 : i32, i32
  }
  func.func @transform_5(%arg0: i32) -> (i32, i32) {
    %c0_i32 = arith.constant 0 : i32
    %c0_i32_0 = arith.constant 0 : i32
    %c0_i32_1 = arith.constant 0 : i32
    return %c0_i32, %c0_i32_0 : i32, i32
  }
  func.func @transform_6(%arg0: i32) -> (i32, i32) {
    %c0_i32 = arith.constant 0 : i32
    %c0_i32_0 = arith.constant 0 : i32
    %c0_i32_1 = arith.constant 0 : i32
    return %c0_i32, %c0_i32_0 : i32, i32
  }
  func.func @transform_7(%arg0: i32) -> (i32, i32) {
    %c0_i32 = arith.constant 0 : i32
    %c0_i32_0 = arith.constant 0 : i32
    %c0_i32_1 = arith.constant 0 : i32
    return %c0_i32, %c0_i32_0 : i32, i32
  }
  func.func @transform_8(%arg0: i32) -> (i32, i32) {
    %c0_i32 = arith.constant 0 : i32
    %c0_i32_0 = arith.constant 0 : i32
    %c0_i32_1 = arith.constant 0 : i32
    return %c0_i32, %c0_i32_0 : i32, i32
  }
  func.func @transform_9(%arg0: i32) -> (i32, i32) {
    %c0_i32 = arith.constant 0 : i32
    %c0_i32_0 = arith.constant 0 : i32
    %c0_i32_1 = arith.constant 0 : i32
    return %c0_i32, %c0_i32_0 : i32, i32
  }
  func.func @transform_10(%arg0: i32) -> (i32, i32) {
    %c0_i32 = arith.constant 0 : i32
    %c0_i32_0 = arith.constant 0 : i32
    %c0_i32_1 = arith.constant 0 : i32
    return %c0_i32, %c0_i32_0 : i32, i32
  }
  func.func @transform_11(%arg0: i32) -> (i32, i32) {
    %c0_i32 = arith.constant 0 : i32
    %c0_i32_0 = arith.constant 0 : i32
    %c0_i32_1 = arith.constant 0 : i32
    return %c0_i32, %c0_i32_0 : i32, i32
  }
  func.func @transform_12(%arg0: i32) -> (i32, i32) {
    %c0_i32 = arith.constant 0 : i32
    %c0_i32_0 = arith.constant 0 : i32
    %c0_i32_1 = arith.constant 0 : i32
    return %c0_i32, %c0_i32_0 : i32, i32
  }
  func.func @transform_13(%arg0: i32) -> (i32, i32) {
    %c0_i32 = arith.constant 0 : i32
    %c0_i32_0 = arith.constant 0 : i32
    %c0_i32_1 = arith.constant 0 : i32
    return %c0_i32, %c0_i32_0 : i32, i32
  }
  func.func @transform_14(%arg0: i32) -> (i32, i32) {
    %c0_i32 = arith.constant 0 : i32
    %c0_i32_0 = arith.constant 0 : i32
    %c0_i32_1 = arith.constant 0 : i32
    return %c0_i32, %c0_i32_0 : i32, i32
  }
  func.func @transform_15(%arg0: i32) -> (i32, i32) {
    %c0_i32 = arith.constant 0 : i32
    %c0_i32_0 = arith.constant 0 : i32
    %c0_i32_1 = arith.constant 0 : i32
    return %c0_i32, %c0_i32_0 : i32, i32
  }
  func.func @transform_16(%arg0: i32) -> (i32, i32) {
    %c0_i32 = arith.constant 0 : i32
    %c0_i32_0 = arith.constant 0 : i32
    %c0_i32_1 = arith.constant 0 : i32
    return %c0_i32, %c0_i32_0 : i32, i32
  }
}

</mosaic_0001>

<llo_original>
// kernel: tpu_custom_call.1
$region0: #{tpu_custom_call.1}
  #allocation0 [shape = 'u32[]', space=smem, size = 0x4, offset = 0x4, fixed_abs, tag = 'smem constant byte address 0x4 - core index']
  #allocation1 [shape = 'u32[144,128]{1,0:T(1,128)}', space=vmem, size = 0x12000, scoped, tag = 'internal scratch']
  %s0 = inlined_call_operand.hbm [shape: s8[256,256], index: 0, kind: input, shape index: {}]
  %s1 = inlined_call_operand.hbm [shape: bf16[256,128], index: 1, kind: input, shape index: {}]
  %s2 = inlined_call_operand.hbm [shape: bf16[128,128], index: 2, kind: input, shape index: {}]
  %s3 = inlined_call_operand.vmem [shape: f32[1,128], index: 3, kind: input, shape index: {}]
  %s4 = inlined_call_operand.hbm [shape: bf16[128,128], index: 4, kind: input, shape index: {}]
  %s5 = inlined_call_operand.vmem [shape: f32[1,128], index: 5, kind: input, shape index: {}]
  %s6 = inlined_call_operand.hbm [shape: bf16[128,128], index: 6, kind: input, shape index: {}]
  %s7 = inlined_call_operand.vmem [shape: f32[1,128], index: 7, kind: input, shape index: {}]
  %s8 = inlined_call_operand.hbm [shape: bf16[128,128], index: 8, kind: input, shape index: {}]
  %s9 = inlined_call_operand.vmem [shape: f32[1,128], index: 9, kind: input, shape index: {}]
  %s10 = inlined_call_operand.hbm [shape: bf16[128,128], index: 10, kind: input, shape index: {}]
  %s11 = inlined_call_operand.vmem [shape: f32[1,128], index: 11, kind: input, shape index: {}]
  %s12 = inlined_call_operand.hbm [shape: bf16[128,128], index: 12, kind: input, shape index: {}]
  %s13 = inlined_call_operand.vmem [shape: f32[1,128], index: 13, kind: input, shape index: {}]
  %s14 = inlined_call_operand.hbm [shape: bf16[256,128], index: 14, kind: output, shape index: {0}]
  %s15 = inlined_call_operand.hbm [shape: bf16[256,128], index: 15, kind: output, shape index: {1}]
  %s16 = inlined_call_operand.hbm [shape: bf16[256,128], index: 16, kind: output, shape index: {2}]
  %17 = xla_tuple %s14, %s15, %s16
  %s18 = sld [smem:[#allocation0]]
  $region114: #{tpu_custom_call.1} parent=0
    _
  %s20 = ssub.s32 1, %s18
  %s21 = scalar_select 0, %s20, %s18
  $region1: #{tpu_custom_call.1} parent=0
    #allocation2 [shape = 'u8[65536]{0}', space=vmem, size = 0x10000, scoped, tag = 'input window, operand 0, single buffered']
    #allocation3 [shape = 's32[1]{0}', space=sflag, size = 0x4, scoped, tag = 'scoped memory for tpu_custom_call.1']
    #allocation4 [shape = 's32[1]{0}', space=sflag, size = 0x4, scoped, tag = 'scoped memory for tpu_custom_call.1']
    #allocation5 [shape = 'u8[65536]{0}', space=vmem, size = 0x10000, scoped, tag = 'input window, operand 1, single buffered']
    #allocation6 [shape = 's32[1]{0}', space=sflag, size = 0x4, scoped, tag = 'scoped memory for tpu_custom_call.1']
    #allocation7 [shape = 'u8[32768]{0}', space=vmem, size = 0x8000, scoped, tag = 'input window, operand 2, single buffered']
    #allocation8 [shape = 'u8[32768]{0}', space=vmem, size = 0x8000, scoped, tag = 'input window, operand 4, single buffered']
    #allocation9 [shape = 's32[1]{0}', space=sflag, size = 0x4, scoped, tag = 'scoped memory for tpu_custom_call.1']
    #allocation10 [shape = 'u8[32768]{0}', space=vmem, size = 0x8000, scoped, tag = 'input window, operand 6, single buffered']
    #allocation11 [shape = 'u8[32768]{0}', space=vmem, size = 0x8000, scoped, tag = 'input window, operand 8, single buffered']
    #allocation12 [shape = 's32[1]{0}', space=sflag, size = 0x4, scoped, tag = 'scoped memory for tpu_custom_call.1']
    #allocation13 [shape = 'u8[32768]{0}', space=vmem, size = 0x8000, scoped, tag = 'input window, operand 10, single buffered']
    #allocation14 [shape = 'u8[32768]{0}', space=vmem, size = 0x8000, scoped, tag = 'input window, operand 12, single buffered']
    #allocation15 [shape = 's32[1]{0}', space=sflag, size = 0x4, scoped, tag = 'scoped memory for tpu_custom_call.1']
    #allocation16 [shape = 'u8[65536]{0}', space=vmem, size = 0x10000, scoped, tag = 'output window, operand 0, single buffered']
    #allocation17 [shape = 'u8[65536]{0}', space=vmem, size = 0x10000, scoped, tag = 'output window, operand 1, single buffered']
    #allocation18 [shape = 's32[1]{0}', space=sflag, size = 0x4, scoped, tag = 'scoped memory for tpu_custom_call.1']
    #allocation19 [shape = 'u8[65536]{0}', space=vmem, size = 0x10000, scoped, tag = 'output window, operand 2, single buffered']
    %22 = vsyncpa [#allocation3], 0
    %23 = vsyncpa [#allocation6], 0
    %24 = vsyncpa [#allocation9], 0
    %25 = vsyncpa [#allocation12], 0
    %26 = vsyncpa [#allocation15], 0
    %27 = vsyncpa [#allocation4], 0
    %28 = vsyncpa [#allocation18], 0
    // Predicated region
    $region2: #{tpu_custom_call.1} parent=1 // pred_check
      _
    $region3: #{tpu_custom_call.1} parent=1 // pred_check_branch
      %30 = sbr.rel (0) target = $region5
    $region4: #{tpu_custom_call.1} parent=1 // pred_region
      %s32 = ssub.s32 2048, 2048
      %33 = vsyncadd [#allocation3], %s32
      %s34 = sshll.u32 [#allocation2], 4
      %s35 = int_to_ptr.vmem [resolvable:$true] %s34
      %40 = dma.hbm_to_vmem [thread:$0]  %s0, 2048, %s35, [#allocation3], 256, 256, 16
    $region5: #{tpu_custom_call.1} parent=1 // pred_fallthru
      _
    // Predicated region
    $region6: #{tpu_custom_call.1} parent=1 // pred_check
      _
    $region7: #{tpu_custom_call.1} parent=1 // pred_check_branch
      %42 = sbr.rel (0) target = $region9
    $region8: #{tpu_custom_call.1} parent=1 // pred_region
      %s44 = ssub.s32 2048, 2048
      %45 = vsyncadd [#allocation6], %s44
      %s46 = sshll.u32 [#allocation5], 4
      %s47 = int_to_ptr.vmem [resolvable:$true] %s46
      %52 = dma.hbm_to_vmem [thread:$0]  %s1, 2048, %s47, [#allocation6], 64, 64, 4
    $region9: #{tpu_custom_call.1} parent=1 // pred_fallthru
      _
    // Predicated region
    $region10: #{tpu_custom_call.1} parent=1 // pred_check
      _
    $region11: #{tpu_custom_call.1} parent=1 // pred_check_branch
      %54 = sbr.rel (0) target = $region13
    $region12: #{tpu_custom_call.1} parent=1 // pred_region
      %s56 = ssub.s32 1024, 1024
      %57 = vsyncadd [#allocation6], %s56
      %s58 = sshll.u32 [#allocation7], 4
      %s59 = int_to_ptr.vmem [resolvable:$true] %s58
      %64 = dma.hbm_to_vmem [thread:$0]  %s2, 1024, %s59, [#allocation6], 64, 64, 4
    $region13: #{tpu_custom_call.1} parent=1 // pred_fallthru
      _
    // Predicated region
    $region14: #{tpu_custom_call.1} parent=1 // pred_check
      _
    $region15: #{tpu_custom_call.1} parent=1 // pred_check_branch
      %66 = sbr.rel (0) target = $region17
    $region16: #{tpu_custom_call.1} parent=1 // pred_region
      _
    $region17: #{tpu_custom_call.1} parent=1 // pred_fallthru
      _
    // Predicated region
    $region18: #{tpu_custom_call.1} parent=1 // pred_check
      _
    $region19: #{tpu_custom_call.1} parent=1 // pred_check_branch
      %68 = sbr.rel (0) target = $region21
    $region20: #{tpu_custom_call.1} parent=1 // pred_region
      %s70 = ssub.s32 1024, 1024
      %71 = vsyncadd [#allocation9], %s70
      %s72 = sshll.u32 [#allocation8], 4
      %s73 = int_to_ptr.vmem [resolvable:$true] %s72
      %78 = dma.hbm_to_vmem [thread:$0]  %s4, 1024, %s73, [#allocation9], 64, 64, 4
    $region21: #{tpu_custom_call.1} parent=1 // pred_fallthru
      _
    // Predicated region
    $region22: #{tpu_custom_call.1} parent=1 // pred_check
      _
    $region23: #{tpu_custom_call.1} parent=1 // pred_check_branch
      %80 = sbr.rel (0) target = $region25
    $region24: #{tpu_custom_call.1} parent=1 // pred_region
      _
    $region25: #{tpu_custom_call.1} parent=1 // pred_fallthru
      _
    // Predicated region
    $region26: #{tpu_custom_call.1} parent=1 // pred_check
      _
    $region27: #{tpu_custom_call.1} parent=1 // pred_check_branch
      %82 = sbr.rel (0) target = $region29
    $region28: #{tpu_custom_call.1} parent=1 // pred_region
      %s84 = ssub.s32 1024, 1024
      %85 = vsyncadd [#allocation9], %s84
      %s86 = sshll.u32 [#allocation10], 4
      %s87 = int_to_ptr.vmem [resolvable:$true] %s86
      %92 = dma.hbm_to_vmem [thread:$0]  %s6, 1024, %s87, [#allocation9], 64, 64, 4
    $region29: #{tpu_custom_call.1} parent=1 // pred_fallthru
      _
    // Predicated region
    $region30: #{tpu_custom_call.1} parent=1 // pred_check
      _
    $region31: #{tpu_custom_call.1} parent=1 // pred_check_branch
      %94 = sbr.rel (0) target = $region33
    $region32: #{tpu_custom_call.1} parent=1 // pred_region
      _
    $region33: #{tpu_custom_call.1} parent=1 // pred_fallthru
      _
    // Predicated region
    $region34: #{tpu_custom_call.1} parent=1 // pred_check
      _
    $region35: #{tpu_custom_call.1} parent=1 // pred_check_branch
      %96 = sbr.rel (0) target = $region37
    $region36: #{tpu_custom_call.1} parent=1 // pred_region
      %s98 = ssub.s32 1024, 1024
      %99 = vsyncadd [#allocation12], %s98
      %s100 = sshll.u32 [#allocation11], 4
      %s101 = int_to_ptr.vmem [resolvable:$true] %s100
      %106 = dma.hbm_to_vmem [thread:$0]  %s8, 1024, %s101, [#allocation12], 64, 64, 4
    $region37: #{tpu_custom_call.1} parent=1 // pred_fallthru
      _
    // Predicated region
    $region38: #{tpu_custom_call.1} parent=1 // pred_check
      _
    $region39: #{tpu_custom_call.1} parent=1 // pred_check_branch
      %108 = sbr.rel (0) target = $region41
    $region40: #{tpu_custom_call.1} parent=1 // pred_region
      _
    $region41: #{tpu_custom_call.1} parent=1 // pred_fallthru
      _
    // Predicated region
    $region42: #{tpu_custom_call.1} parent=1 // pred_check
      _
    $region43: #{tpu_custom_call.1} parent=1 // pred_check_branch
      %110 = sbr.rel (0) target = $region45
    $region44: #{tpu_custom_call.1} parent=1 // pred_region
      %s112 = ssub.s32 1024, 1024
      %113 = vsyncadd [#allocation12], %s112
      %s114 = sshll.u32 [#allocation13], 4
      %s115 = int_to_ptr.vmem [resolvable:$true] %s114
      %120 = dma.hbm_to_vmem [thread:$0]  %s10, 1024, %s115, [#allocation12], 64, 64, 4
    $region45: #{tpu_custom_call.1} parent=1 // pred_fallthru
      _
    // Predicated region
    $region46: #{tpu_custom_call.1} parent=1 // pred_check
      _
    $region47: #{tpu_custom_call.1} parent=1 // pred_check_branch
      %122 = sbr.rel (0) target = $region49
    $region48: #{tpu_custom_call.1} parent=1 // pred_region
      _
    $region49: #{tpu_custom_call.1} parent=1 // pred_fallthru
      _
    // Predicated region
    $region50: #{tpu_custom_call.1} parent=1 // pred_check
      _
    $region51: #{tpu_custom_call.1} parent=1 // pred_check_branch
      %124 = sbr.rel (0) target = $region53
    $region52: #{tpu_custom_call.1} parent=1 // pred_region
      %s126 = ssub.s32 1024, 1024
      %127 = vsyncadd [#allocation15], %s126
      %s128 = sshll.u32 [#allocation14], 4
      %s129 = int_to_ptr.vmem [resolvable:$true] %s128
      %134 = dma.hbm_to_vmem [thread:$0]  %s12, 1024, %s129, [#allocation15], 64, 64, 4
    $region53: #{tpu_custom_call.1} parent=1 // pred_fallthru
      _
    // Predicated region
    $region54: #{tpu_custom_call.1} parent=1 // pred_check
      _
    $region55: #{tpu_custom_call.1} parent=1 // pred_check_branch
      %136 = sbr.rel (0) target = $region57
    $region56: #{tpu_custom_call.1} parent=1 // pred_region
      _
    $region57: #{tpu_custom_call.1} parent=1 // pred_fallthru
      _
    // Predicated region
    $region58: #{tpu_custom_call.1} parent=1 // pred_check
      _
    $region59: #{tpu_custom_call.1} parent=1 // pred_check_branch
      %138 = sbr.rel (0) target = $region61
    $region60: #{tpu_custom_call.1} parent=1 // pred_region
      %139 = dma.done [#allocation3], 2048
    $region61: #{tpu_custom_call.1} parent=1 // pred_fallthru
      _
    // Predicated region
    $region62: #{tpu_custom_call.1} parent=1 // pred_check
      _
    $region63: #{tpu_custom_call.1} parent=1 // pred_check_branch
      %141 = sbr.rel (0) target = $region65
    $region64: #{tpu_custom_call.1} parent=1 // pred_region
      %142 = dma.done [#allocation6], 2048
    $region65: #{tpu_custom_call.1} parent=1 // pred_fallthru
      _
    // Predicated region
    $region66: #{tpu_custom_call.1} parent=1 // pred_check
      _
    $region67: #{tpu_custom_call.1} parent=1 // pred_check_branch
      %144 = sbr.rel (0) target = $region69
    $region68: #{tpu_custom_call.1} parent=1 // pred_region
      %145 = dma.done [#allocation6], 1024
    $region69: #{tpu_custom_call.1} parent=1 // pred_fallthru
      _
    // Predicated region
    $region70: #{tpu_custom_call.1} parent=1 // pred_check
      _
    $region71: #{tpu_custom_call.1} parent=1 // pred_check_branch
      %147 = sbr.rel (0) target = $region73
    $region72: #{tpu_custom_call.1} parent=1 // pred_region
      %148 = dma.done [#allocation9], 1024
    $region73: #{tpu_custom_call.1} parent=1 // pred_fallthru
      _
    // Predicated region
    $region74: #{tpu_custom_call.1} parent=1 // pred_check
      _
    $region75: #{tpu_custom_call.1} parent=1 // pred_check_branch
      %150 = sbr.rel (0) target = $region77
    $region76: #{tpu_custom_call.1} parent=1 // pred_region
      %151 = dma.done [#allocation9], 1024
    $region77: #{tpu_custom_call.1} parent=1 // pred_fallthru
      _
    // Predicated region
    $region78: #{tpu_custom_call.1} parent=1 // pred_check
      _
    $region79: #{tpu_custom_call.1} parent=1 // pred_check_branch
      %153 = sbr.rel (0) target = $region81
    $region80: #{tpu_custom_call.1} parent=1 // pred_region
      %154 = dma.done [#allocation12], 1024
    $region81: #{tpu_custom_call.1} parent=1 // pred_fallthru
      _
    // Predicated region
    $region82: #{tpu_custom_call.1} parent=1 // pred_check
      _
    $region83: #{tpu_custom_call.1} parent=1 // pred_check_branch
      %156 = sbr.rel (0) target = $region85
    $region84: #{tpu_custom_call.1} parent=1 // pred_region
      %157 = dma.done [#allocation12], 1024
    $region85: #{tpu_custom_call.1} parent=1 // pred_fallthru
      _
    // Predicated region
    $region86: #{tpu_custom_call.1} parent=1 // pred_check
      _
    $region87: #{tpu_custom_call.1} parent=1 // pred_check_branch
      %159 = sbr.rel (0) target = $region89
    $region88: #{tpu_custom_call.1} parent=1 // pred_region
      %160 = dma.done [#allocation15], 1024
    $region89: #{tpu_custom_call.1} parent=1 // pred_fallthru
      _
    %v162 = vld [vmem:[#allocation2] sm:$0xff]
    %v163 = vld [vmem:[#allocation2 + $0x8] sm:$0xff]
    %v164 = vld [vmem:[#allocation2 + $0x10] sm:$0xff]
    %v165 = vld [vmem:[#allocation2 + $0x18] sm:$0xff]
    %v166 = vld [vmem:[#allocation2 + $0x20] sm:$0xff]
    %v167 = vld [vmem:[#allocation2 + $0x28] sm:$0xff]
    %v168 = vld [vmem:[#allocation2 + $0x30] sm:$0xff]
    %v169 = vld [vmem:[#allocation2 + $0x38] sm:$0xff]
    %v170 = vld [vmem:[#allocation2 + $0x40] sm:$0xff]
    %v171 = vld [vmem:[#allocation2 + $0x48] sm:$0xff]
    %v172 = vld [vmem:[#allocation2 + $0x50] sm:$0xff]
    %v173 = vld [vmem:[#allocation2 + $0x58] sm:$0xff]
    %v174 = vld [vmem:[#allocation2 + $0x60] sm:$0xff]
    %v175 = vld [vmem:[#allocation2 + $0x68] sm:$0xff]
    %v176 = vld [vmem:[#allocation2 + $0x70] sm:$0xff]
    %v177 = vld [vmem:[#allocation2 + $0x78] sm:$0xff]
    %v178 = vunpack.c.l.s8.bf16 %v162
    %v179 = vunpack.c.l.s8.bf16 %v163
    %v180 = vunpack.c.h.s8.bf16 %v162
    %v181 = vunpack.c.h.s8.bf16 %v163
    %v182 = vunpack.c.l.s8.bf16 %v164
    %v183 = vunpack.c.l.s8.bf16 %v165
    %v184 = vunpack.c.h.s8.bf16 %v164
    %v185 = vunpack.c.h.s8.bf16 %v165
    %v186 = vunpack.c.l.s8.bf16 %v166
    %v187 = vunpack.c.l.s8.bf16 %v167
    %v188 = vunpack.c.h.s8.bf16 %v166
    %v189 = vunpack.c.h.s8.bf16 %v167
    %v190 = vunpack.c.l.s8.bf16 %v168
    %v191 = vunpack.c.l.s8.bf16 %v169
    %v192 = vunpack.c.h.s8.bf16 %v168
    %v193 = vunpack.c.h.s8.bf16 %v169
    %v194 = vunpack.c.l.s8.bf16 %v170
    %v195 = vunpack.c.l.s8.bf16 %v171
    %v196 = vunpack.c.h.s8.bf16 %v170
    %v197 = vunpack.c.h.s8.bf16 %v171
    %v198 = vunpack.c.l.s8.bf16 %v172
    %v199 = vunpack.c.l.s8.bf16 %v173
    %v200 = vunpack.c.h.s8.bf16 %v172
    %v201 = vunpack.c.h.s8.bf16 %v173
    %v202 = vunpack.c.l.s8.bf16 %v174
    %v203 = vunpack.c.l.s8.bf16 %v175
    %v204 = vunpack.c.h.s8.bf16 %v174
    %v205 = vunpack.c.h.s8.bf16 %v175
    %v206 = vunpack.c.l.s8.bf16 %v176
    %v207 = vunpack.c.l.s8.bf16 %v177
    %v208 = vunpack.c.h.s8.bf16 %v176
    %v209 = vunpack.c.h.s8.bf16 %v177
    %v210 = vld [vmem:[#allocation5] sm:$0xf]
    %v211 = vld [vmem:[#allocation5 + $0x4] sm:$0xf]
    %v212 = vld [vmem:[#allocation5 + $0x8] sm:$0xf]
    %v213 = vld [vmem:[#allocation5 + $0xc] sm:$0xf]
    %v214 = vld [vmem:[#allocation5 + $0x10] sm:$0xf]
    %v215 = vld [vmem:[#allocation5 + $0x14] sm:$0xf]
    %v216 = vld [vmem:[#allocation5 + $0x18] sm:$0xf]
    %v217 = vld [vmem:[#allocation5 + $0x1c] sm:$0xf]
    %v218 = vld [vmem:[#allocation5 + $0x20] sm:$0xf]
    %v219 = vld [vmem:[#allocation5 + $0x24] sm:$0xf]
    %v220 = vld [vmem:[#allocation5 + $0x28] sm:$0xf]
    %v221 = vld [vmem:[#allocation5 + $0x2c] sm:$0xf]
    %v222 = vld [vmem:[#allocation5 + $0x30] sm:$0xf]
    %v223 = vld [vmem:[#allocation5 + $0x34] sm:$0xf]
    %v224 = vld [vmem:[#allocation5 + $0x38] sm:$0xf]
    %v225 = vld [vmem:[#allocation5 + $0x3c] sm:$0xf]
    %v226 = vld [vmem:[#allocation5 + $0x40] sm:$0xf]
    %v227 = vld [vmem:[#allocation5 + $0x44] sm:$0xf]
    %v228 = vld [vmem:[#allocation5 + $0x48] sm:$0xf]
    %v229 = vld [vmem:[#allocation5 + $0x4c] sm:$0xf]
    %v230 = vld [vmem:[#allocation5 + $0x50] sm:$0xf]
    %v231 = vld [vmem:[#allocation5 + $0x54] sm:$0xf]
    %v232 = vld [vmem:[#allocation5 + $0x58] sm:$0xf]
    %v233 = vld [vmem:[#allocation5 + $0x5c] sm:$0xf]
    %v234 = vld [vmem:[#allocation5 + $0x60] sm:$0xf]
    %v235 = vld [vmem:[#allocation5 + $0x64] sm:$0xf]
    %v236 = vld [vmem:[#allocation5 + $0x68] sm:$0xf]
    %v237 = vld [vmem:[#allocation5 + $0x6c] sm:$0xf]
    %v238 = vld [vmem:[#allocation5 + $0x70] sm:$0xf]
    %v239 = vld [vmem:[#allocation5 + $0x74] sm:$0xf]
    %v240 = vld [vmem:[#allocation5 + $0x78] sm:$0xf]
    %v241 = vld [vmem:[#allocation5 + $0x7c] sm:$0xf]
    %v274 = vunpack.c.l.b16 %v210
    %v275 = vunpack.c.l.b16 %v211
    %v276 = vunpack.c.l.b16 %v212
    %v277 = vunpack.c.l.b16 %v213
    %v278 = vunpack.c.l.b16 %v214
    %v279 = vunpack.c.l.b16 %v215
    %v280 = vunpack.c.l.b16 %v216
    %v281 = vunpack.c.l.b16 %v217
    %v282 = vunpack.c.l.b16 %v218
    %v283 = vunpack.c.l.b16 %v219
    %v284 = vunpack.c.l.b16 %v220
    %v285 = vunpack.c.l.b16 %v221
    %v286 = vunpack.c.l.b16 %v222
    %v287 = vunpack.c.l.b16 %v223
    %v288 = vunpack.c.l.b16 %v224
    %v289 = vunpack.c.l.b16 %v225
    %v290 = vunpack.c.l.b16 %v226
    %v291 = vunpack.c.l.b16 %v227
    %v292 = vunpack.c.l.b16 %v228
    %v293 = vunpack.c.l.b16 %v229
    %v294 = vunpack.c.l.b16 %v230
    %v295 = vunpack.c.l.b16 %v231
    %v296 = vunpack.c.l.b16 %v232
    %v297 = vunpack.c.l.b16 %v233
    %v298 = vunpack.c.l.b16 %v234
    %v299 = vunpack.c.l.b16 %v235
    %v300 = vunpack.c.l.b16 %v236
    %v301 = vunpack.c.l.b16 %v237
    %v302 = vunpack.c.l.b16 %v238
    %v303 = vunpack.c.l.b16 %v239
    %v304 = vunpack.c.l.b16 %v240
    %v305 = vunpack.c.l.b16 %v241
    %v306 = vpack.c.b16 %v275, %v274
    %v307 = vpack.c.b16 %v277, %v276
    %v308 = vpack.c.b16 %v279, %v278
    %v309 = vpack.c.b16 %v281, %v280
    %v310 = vpack.c.b16 %v283, %v282
    %v311 = vpack.c.b16 %v285, %v284
    %v312 = vpack.c.b16 %v287, %v286
    %v313 = vpack.c.b16 %v289, %v288
    %v314 = vpack.c.b16 %v291, %v290
    %v315 = vpack.c.b16 %v293, %v292
    %v316 = vpack.c.b16 %v295, %v294
    %v317 = vpack.c.b16 %v297, %v296
    %v318 = vpack.c.b16 %v299, %v298
    %v319 = vpack.c.b16 %v301, %v300
    %v320 = vpack.c.b16 %v303, %v302
    %v321 = vpack.c.b16 %v305, %v304
    %338 = vmatprep.subr.bf16.mxu0 0
    %339 = vmatpush1.bf16.msra.mxu0 %v306
    %340 = vmatprep.subr.bf16.mxu0 0
    %341 = vmatpush1.bf16.msra.mxu0 %v307
    %342 = vmatprep.subr.bf16.mxu0 0
    %343 = vmatpush1.bf16.msra.mxu0 %v308
    %344 = vmatprep.subr.bf16.mxu0 0
    %345 = vmatpush1.bf16.msra.mxu0 %v309
    %346 = vmatprep.subr.bf16.mxu0 0
    %347 = vmatpush1.bf16.msra.mxu0 %v310
    %348 = vmatprep.subr.bf16.mxu0 0
    %349 = vmatpush1.bf16.msra.mxu0 %v311
    %350 = vmatprep.subr.bf16.mxu0 0
    %351 = vmatpush1.bf16.msra.mxu0 %v312
    %352 = vmatprep.subr.bf16.mxu0 0
    %353 = vmatpush1.bf16.msra.mxu0 %v313
    %354 = vmatprep.subr.bf16.mxu0 0
    %355 = vmatpush1.bf16.msra.mxu0 %v314
    %356 = vmatprep.subr.bf16.mxu0 0
    %357 = vmatpush1.bf16.msra.mxu0 %v315
    %358 = vmatprep.subr.bf16.mxu0 0
    %359 = vmatpush1.bf16.msra.mxu0 %v316
    %360 = vmatprep.subr.bf16.mxu0 0
    %361 = vmatpush1.bf16.msra.mxu0 %v317
    %362 = vmatprep.subr.bf16.mxu0 0
    %363 = vmatpush1.bf16.msra.mxu0 %v318
    %364 = vmatprep.subr.bf16.mxu0 0
    %365 = vmatpush1.bf16.msra.mxu0 %v319
    %366 = vmatprep.subr.bf16.mxu0 0
    %367 = vmatpush1.bf16.msra.mxu0 %v320
    %368 = vmatprep.subr.bf16.mxu0 0
    %369 = vmatpush1.bf16.msra.mxu0 %v321
    %370 = vmatprep.mubr.bf16.mxu0 %v179
    %371 = vmatmul.mubr.bf16.gmra.mrb[0].mxu0 %v178
    %v372 = vpop.f32.mrb[0].mxu0
    %v373 = vadd.f32 0.0, %v372
    %v374 = vpop.f32.mrb[0].mxu0
    %v375 = vpop.f32.mrb[0].mxu0
    %v376 = vadd.f32 0.0, %v375
    %v377 = vpop.f32.mrb[0].mxu0
    %378 = vmatprep.mubr.bf16.mxu0 %v181
    %379 = vmatmul.mubr.bf16.gmra.mrb[0].mxu0 %v180
    %v380 = vpop.f32.mrb[0].mxu0
    %v381 = vadd.f32 0.0, %v380
    %v382 = vpop.f32.mrb[0].mxu0
    %v383 = vpop.f32.mrb[0].mxu0
    %v384 = vadd.f32 0.0, %v383
    %v385 = vpop.f32.mrb[0].mxu0
    %386 = vmatprep.mubr.bf16.mxu0 %v183
    %387 = vmatmul.mubr.bf16.gmra.mrb[0].mxu0 %v182
    %v388 = vpop.f32.mrb[0].mxu0
    %v389 = vadd.f32 0.0, %v388
    %v390 = vpop.f32.mrb[0].mxu0
    %v391 = vpop.f32.mrb[0].mxu0
    %v392 = vadd.f32 0.0, %v391
    %v393 = vpop.f32.mrb[0].mxu0
    %394 = vmatprep.mubr.bf16.mxu0 %v185
    %395 = vmatmul.mubr.bf16.gmra.mrb[0].mxu0 %v184
    %v396 = vpop.f32.mrb[0].mxu0
    %v397 = vadd.f32 0.0, %v396
    %v398 = vpop.f32.mrb[0].mxu0
    %v399 = vpop.f32.mrb[0].mxu0
    %v400 = vadd.f32 0.0, %v399
    %v401 = vpop.f32.mrb[0].mxu0
    %402 = vmatprep.mubr.bf16.mxu0 %v187
    %403 = vmatmul.mubr.bf16.gmra.mrb[0].mxu0 %v186
    %v404 = vpop.f32.mrb[0].mxu0
    %v405 = vadd.f32 0.0, %v404
    %v406 = vpop.f32.mrb[0].mxu0
    %v407 = vpop.f32.mrb[0].mxu0
    %v408 = vadd.f32 0.0, %v407
    %v409 = vpop.f32.mrb[0].mxu0
    %410 = vmatprep.mubr.bf16.mxu0 %v189
    %411 = vmatmul.mubr.bf16.gmra.mrb[0].mxu0 %v188
    %v412 = vpop.f32.mrb[0].mxu0
    %v413 = vadd.f32 0.0, %v412
    %v414 = vpop.f32.mrb[0].mxu0
    %v415 = vpop.f32.mrb[0].mxu0
    %v416 = vadd.f32 0.0, %v415
    %v417 = vpop.f32.mrb[0].mxu0
    %418 = vmatprep.mubr.bf16.mxu0 %v191
    %419 = vmatmul.mubr.bf16.gmra.mrb[0].mxu0 %v190
    %v420 = vpop.f32.mrb[0].mxu0
    %v421 = vadd.f32 0.0, %v420
    %v422 = vpop.f32.mrb[0].mxu0
    %v423 = vpop.f32.mrb[0].mxu0
    %v424 = vadd.f32 0.0, %v423
    %v425 = vpop.f32.mrb[0].mxu0
    %426 = vmatprep.mubr.bf16.mxu0 %v193
    %427 = vmatmul.mubr.bf16.gmra.mrb[0].mxu0 %v192
    %v428 = vpop.f32.mrb[0].mxu0
    %v429 = vadd.f32 0.0, %v428
    %v430 = vpop.f32.mrb[0].mxu0
    %v431 = vpop.f32.mrb[0].mxu0
    %v432 = vadd.f32 0.0, %v431
    %v433 = vpop.f32.mrb[0].mxu0
    %434 = vmatprep.mubr.bf16.mxu0 %v195
    %435 = vmatmul.mubr.bf16.gmra.mrb[0].mxu0 %v194
    %v436 = vpop.f32.mrb[0].mxu0
    %v437 = vadd.f32 0.0, %v436
    %v438 = vpop.f32.mrb[0].mxu0
    %v439 = vpop.f32.mrb[0].mxu0
    %v440 = vadd.f32 0.0, %v439
    %v441 = vpop.f32.mrb[0].mxu0
    %442 = vmatprep.mubr.bf16.mxu0 %v197
    %443 = vmatmul.mubr.bf16.gmra.mrb[0].mxu0 %v196
    %v444 = vpop.f32.mrb[0].mxu0
    %v445 = vadd.f32 0.0, %v444
    %v446 = vpop.f32.mrb[0].mxu0
    %v447 = vpop.f32.mrb[0].mxu0
    %v448 = vadd.f32 0.0, %v447
    %v449 = vpop.f32.mrb[0].mxu0
    %450 = vmatprep.mubr.bf16.mxu0 %v199
    %451 = vmatmul.mubr.bf16.gmra.mrb[0].mxu0 %v198
    %v452 = vpop.f32.mrb[0].mxu0
    %v453 = vadd.f32 0.0, %v452
    %v454 = vpop.f32.mrb[0].mxu0
    %v455 = vpop.f32.mrb[0].mxu0
    %v456 = vadd.f32 0.0, %v455
    %v457 = vpop.f32.mrb[0].mxu0
    %458 = vmatprep.mubr.bf16.mxu0 %v201
    %459 = vmatmul.mubr.bf16.gmra.mrb[0].mxu0 %v200
    %v460 = vpop.f32.mrb[0].mxu0
    %v461 = vadd.f32 0.0, %v460
    %v462 = vpop.f32.mrb[0].mxu0
    %v463 = vpop.f32.mrb[0].mxu0
    %v464 = vadd.f32 0.0, %v463
    %v465 = vpop.f32.mrb[0].mxu0
    %466 = vmatprep.mubr.bf16.mxu0 %v203
    %467 = vmatmul.mubr.bf16.gmra.mrb[0].mxu0 %v202
    %v468 = vpop.f32.mrb[0].mxu0
    %v469 = vadd.f32 0.0, %v468
    %v470 = vpop.f32.mrb[0].mxu0
    %v471 = vpop.f32.mrb[0].mxu0
    %v472 = vadd.f32 0.0, %v471
    %v473 = vpop.f32.mrb[0].mxu0
    %474 = vmatprep.mubr.bf16.mxu0 %v205
    %475 = vmatmul.mubr.bf16.gmra.mrb[0].mxu0 %v204
    %v476 = vpop.f32.mrb[0].mxu0
    %v477 = vadd.f32 0.0, %v476
    %v478 = vpop.f32.mrb[0].mxu0
    %v479 = vpop.f32.mrb[0].mxu0
    %v480 = vadd.f32 0.0, %v479
    %v481 = vpop.f32.mrb[0].mxu0
    %482 = vmatprep.mubr.bf16.mxu0 %v207
    %483 = vmatmul.mubr.bf16.gmra.mrb[0].mxu0 %v206
    %v484 = vpop.f32.mrb[0].mxu0
    %v485 = vadd.f32 0.0, %v484
    %v486 = vpop.f32.mrb[0].mxu0
    %v487 = vpop.f32.mrb[0].mxu0
    %v488 = vadd.f32 0.0, %v487
    %v489 = vpop.f32.mrb[0].mxu0
    %490 = vmatprep.mubr.bf16.mxu0 %v209
    %491 = vmatmul.mubr.bf16.gmra.mrb[0].mxu0 %v208
    %v492 = vpop.f32.mrb[0].mxu0
    %v493 = vadd.f32 0.0, %v492
    %v494 = vpop.f32.mrb[0].mxu0
    %v495 = vpop.f32.mrb[0].mxu0
    %v496 = vadd.f32 0.0, %v495
    %v497 = vpop.f32.mrb[0].mxu0
    %498 = vdwg.mxu0
    %v499 = vpack.c.bf16 %v376, %v373
    %v500 = vpack.c.bf16 %v384, %v381
    %v501 = vpack.c.bf16 %v392, %v389
    %v502 = vpack.c.bf16 %v400, %v397
    %v503 = vpack.c.bf16 %v408, %v405
    %v504 = vpack.c.bf16 %v416, %v413
    %v505 = vpack.c.bf16 %v424, %v421
    %v506 = vpack.c.bf16 %v432, %v429
    %v507 = vpack.c.bf16 %v440, %v437
    %v508 = vpack.c.bf16 %v448, %v445
    %v509 = vpack.c.bf16 %v456, %v453
    %v510 = vpack.c.bf16 %v464, %v461
    %v511 = vpack.c.bf16 %v472, %v469
    %v512 = vpack.c.bf16 %v480, %v477
    %v513 = vpack.c.bf16 %v488, %v485
    %v514 = vpack.c.bf16 %v496, %v493
    %v515 = vld [vmem:[#allocation7] sm:$0xf]
    %v516 = vld [vmem:[#allocation7 + $0x4] sm:$0xf]
    %v517 = vld [vmem:[#allocation7 + $0x8] sm:$0xf]
    %v518 = vld [vmem:[#allocation7 + $0xc] sm:$0xf]
    %v519 = vld [vmem:[#allocation7 + $0x10] sm:$0xf]
    %v520 = vld [vmem:[#allocation7 + $0x14] sm:$0xf]
    %v521 = vld [vmem:[#allocation7 + $0x18] sm:$0xf]
    %v522 = vld [vmem:[#allocation7 + $0x1c] sm:$0xf]
    %v523 = vld [vmem:[#allocation7 + $0x20] sm:$0xf]
    %v524 = vld [vmem:[#allocation7 + $0x24] sm:$0xf]
    %v525 = vld [vmem:[#allocation7 + $0x28] sm:$0xf]
    %v526 = vld [vmem:[#allocation7 + $0x2c] sm:$0xf]
    %v527 = vld [vmem:[#allocation7 + $0x30] sm:$0xf]
    %v528 = vld [vmem:[#allocation7 + $0x34] sm:$0xf]
    %v529 = vld [vmem:[#allocation7 + $0x38] sm:$0xf]
    %v530 = vld [vmem:[#allocation7 + $0x3c] sm:$0xf]
    %v531 = vld [vmem:[%s3] sm:$0x1]
    %v533 = vlaneseq
    %v534 = vshrl.u32 %v533, 7
    %v535 = vsub.s32 0, %v534
    %v536 = vrot.slane %v531, %v535
    %v554 = vunpack.c.l.b16 %v515
    %v555 = vunpack.c.l.b16 %v516
    %v556 = vunpack.c.l.b16 %v517
    %v557 = vunpack.c.l.b16 %v518
    %v558 = vunpack.c.l.b16 %v519
    %v559 = vunpack.c.l.b16 %v520
    %v560 = vunpack.c.l.b16 %v521
    %v561 = vunpack.c.l.b16 %v522
    %v562 = vunpack.c.l.b16 %v523
    %v563 = vunpack.c.l.b16 %v524
    %v564 = vunpack.c.l.b16 %v525
    %v565 = vunpack.c.l.b16 %v526
    %v566 = vunpack.c.l.b16 %v527
    %v567 = vunpack.c.l.b16 %v528
    %v568 = vunpack.c.l.b16 %v529
    %v569 = vunpack.c.l.b16 %v530
    %v570 = vpack.c.b16 %v555, %v554
    %v571 = vpack.c.b16 %v557, %v556
    %v572 = vpack.c.b16 %v559, %v558
    %v573 = vpack.c.b16 %v561, %v560
    %v574 = vpack.c.b16 %v563, %v562
    %v575 = vpack.c.b16 %v565, %v564
    %v576 = vpack.c.b16 %v567, %v566
    %v577 = vpack.c.b16 %v569, %v568
    %586 = vmatprep.subr.bf16.mxu0 0
    %587 = vmatpush1.bf16.msra.mxu0 %v570
    %588 = vmatprep.subr.bf16.mxu0 0
    %589 = vmatpush1.bf16.msra.mxu0 %v571
    %590 = vmatprep.subr.bf16.mxu0 0
    %591 = vmatpush1.bf16.msra.mxu0 %v572
    %592 = vmatprep.subr.bf16.mxu0 0
    %593 = vmatpush1.bf16.msra.mxu0 %v573
    %594 = vmatprep.subr.bf16.mxu0 0
    %595 = vmatpush1.bf16.msra.mxu0 %v574
    %596 = vmatprep.subr.bf16.mxu0 0
    %597 = vmatpush1.bf16.msra.mxu0 %v575
    %598 = vmatprep.subr.bf16.mxu0 0
    %599 = vmatpush1.bf16.msra.mxu0 %v576
    %600 = vmatprep.subr.bf16.mxu0 0
    %601 = vmatpush1.bf16.msra.mxu0 %v577
    %602 = vmatprep.subr.bf16.mxu0 0
    %603 = vmatpush1.bf16.msra.mxu0 0
    %604 = vmatprep.subr.bf16.mxu0 0
    %605 = vmatpush1.bf16.msra.mxu0 0
    %606 = vmatprep.subr.bf16.mxu0 0
    %607 = vmatpush1.bf16.msra.mxu0 0
    %608 = vmatprep.subr.bf16.mxu0 0
    %609 = vmatpush1.bf16.msra.mxu0 0
    %610 = vmatprep.subr.bf16.mxu0 0
    %611 = vmatpush1.bf16.msra.mxu0 0
    %612 = vmatprep.subr.bf16.mxu0 0
    %613 = vmatpush1.bf16.msra.mxu0 0
    %614 = vmatprep.subr.bf16.mxu0 0
    %615 = vmatpush1.bf16.msra.mxu0 0
    %616 = vmatprep.subr.bf16.mxu0 0
    %617 = vmatpush1.bf16.msra.mxu0 0
    %618 = vmatprep.mubr.bf16.mxu0 0
    %619 = vmatmul.mubr.bf16.gmra.mrb[0].mxu0 %v499
    %v620 = vpop.f32.mrb[0].mxu0
    %v621 = vadd.f32 %v536, %v620
    %v622 = vpop.f32.mrb[0].mxu0
    %v623 = vpop.f32.mrb[0].mxu0
    %v624 = vadd.f32 %v536, %v623
    %v625 = vpop.f32.mrb[0].mxu0
    %626 = vmatprep.mubr.bf16.mxu0 0
    %627 = vmatmul.mubr.bf16.gmra.mrb[0].mxu0 %v500
    %v628 = vpop.f32.mrb[0].mxu0
    %v629 = vadd.f32 %v536, %v628
    %v630 = vpop.f32.mrb[0].mxu0
    %v631 = vpop.f32.mrb[0].mxu0
    %v632 = vadd.f32 %v536, %v631
    %v633 = vpop.f32.mrb[0].mxu0
    %634 = vmatprep.mubr.bf16.mxu0 0
    %635 = vmatmul.mubr.bf16.gmra.mrb[0].mxu0 %v501
    %v636 = vpop.f32.mrb[0].mxu0
    %v637 = vadd.f32 %v536, %v636
    %v638 = vpop.f32.mrb[0].mxu0
    %v639 = vpop.f32.mrb[0].mxu0
    %v640 = vadd.f32 %v536, %v639
    %v641 = vpop.f32.mrb[0].mxu0
    %642 = vmatprep.mubr.bf16.mxu0 0
    %643 = vmatmul.mubr.bf16.gmra.mrb[0].mxu0 %v502
    %v644 = vpop.f32.mrb[0].mxu0
    %v645 = vadd.f32 %v536, %v644
    %v646 = vpop.f32.mrb[0].mxu0
    %v647 = vpop.f32.mrb[0].mxu0
    %v648 = vadd.f32 %v536, %v647
    %v649 = vpop.f32.mrb[0].mxu0
    %650 = vmatprep.mubr.bf16.mxu0 0
    %651 = vmatmul.mubr.bf16.gmra.mrb[0].mxu0 %v503
    %v652 = vpop.f32.mrb[0].mxu0
    %v653 = vadd.f32 %v536, %v652
    %v654 = vpop.f32.mrb[0].mxu0
    %v655 = vpop.f32.mrb[0].mxu0
    %v656 = vadd.f32 %v536, %v655
    %v657 = vpop.f32.mrb[0].mxu0
    %658 = vmatprep.mubr.bf16.mxu0 0
    %659 = vmatmul.mubr.bf16.gmra.mrb[0].mxu0 %v504
    %v660 = vpop.f32.mrb[0].mxu0
    %v661 = vadd.f32 %v536, %v660
    %v662 = vpop.f32.mrb[0].mxu0
    %v663 = vpop.f32.mrb[0].mxu0
    %v664 = vadd.f32 %v536, %v663
    %v665 = vpop.f32.mrb[0].mxu0
    %666 = vmatprep.mubr.bf16.mxu0 0
    %667 = vmatmul.mubr.bf16.gmra.mrb[0].mxu0 %v505
    %v668 = vpop.f32.mrb[0].mxu0
    %v669 = vadd.f32 %v536, %v668
    %v670 = vpop.f32.mrb[0].mxu0
    %v671 = vpop.f32.mrb[0].mxu0
    %v672 = vadd.f32 %v536, %v671
    %v673 = vpop.f32.mrb[0].mxu0
    %674 = vmatprep.mubr.bf16.mxu0 0
    %675 = vmatmul.mubr.bf16.gmra.mrb[0].mxu0 %v506
    %v676 = vpop.f32.mrb[0].mxu0
    %v677 = vadd.f32 %v536, %v676
    %v678 = vpop.f32.mrb[0].mxu0
    %v679 = vpop.f32.mrb[0].mxu0
    %v680 = vadd.f32 %v536, %v679
    %v681 = vpop.f32.mrb[0].mxu0
    %682 = vmatprep.mubr.bf16.mxu0 0
    %683 = vmatmul.mubr.bf16.gmra.mrb[0].mxu0 %v507
    %v684 = vpop.f32.mrb[0].mxu0
    %v685 = vadd.f32 %v536, %v684
    %v686 = vpop.f32.mrb[0].mxu0
    %v687 = vpop.f32.mrb[0].mxu0
    %v688 = vadd.f32 %v536, %v687
    %v689 = vpop.f32.mrb[0].mxu0
    %690 = vmatprep.mubr.bf16.mxu0 0
    %691 = vmatmul.mubr.bf16.gmra.mrb[0].mxu0 %v508
    %v692 = vpop.f32.mrb[0].mxu0
    %v693 = vadd.f32 %v536, %v692
    %v694 = vpop.f32.mrb[0].mxu0
    %v695 = vpop.f32.mrb[0].mxu0
    %v696 = vadd.f32 %v536, %v695
    %v697 = vpop.f32.mrb[0].mxu0
    %698 = vmatprep.mubr.bf16.mxu0 0
    %699 = vmatmul.mubr.bf16.gmra.mrb[0].mxu0 %v509
    %v700 = vpop.f32.mrb[0].mxu0
    %v701 = vadd.f32 %v536, %v700
    %v702 = vpop.f32.mrb[0].mxu0
    %v703 = vpop.f32.mrb[0].mxu0
    %v704 = vadd.f32 %v536, %v703
    %v705 = vpop.f32.mrb[0].mxu0
    %706 = vmatprep.mubr.bf16.mxu0 0
    %707 = vmatmul.mubr.bf16.gmra.mrb[0].mxu0 %v510
    %v708 = vpop.f32.mrb[0].mxu0
    %v709 = vadd.f32 %v536, %v708
    %v710 = vpop.f32.mrb[0].mxu0
    %v711 = vpop.f32.mrb[0].mxu0
    %v712 = vadd.f32 %v536, %v711
    %v713 = vpop.f32.mrb[0].mxu0
    %714 = vmatprep.mubr.bf16.mxu0 0
    %715 = vmatmul.mubr.bf16.gmra.mrb[0].mxu0 %v511
    %v716 = vpop.f32.mrb[0].mxu0
    %v717 = vadd.f32 %v536, %v716
    %v718 = vpop.f32.mrb[0].mxu0
    %v719 = vpop.f32.mrb[0].mxu0
    %v720 = vadd.f32 %v536, %v719
    %v721 = vpop.f32.mrb[0].mxu0
    %722 = vmatprep.mubr.bf16.mxu0 0
    %723 = vmatmul.mubr.bf16.gmra.mrb[0].mxu0 %v512
    %v724 = vpop.f32.mrb[0].mxu0
    %v725 = vadd.f32 %v536, %v724
    %v726 = vpop.f32.mrb[0].mxu0
    %v727 = vpop.f32.mrb[0].mxu0
    %v728 = vadd.f32 %v536, %v727
    %v729 = vpop.f32.mrb[0].mxu0
    %730 = vmatprep.mubr.bf16.mxu0 0
    %731 = vmatmul.mubr.bf16.gmra.mrb[0].mxu0 %v513
    %v732 = vpop.f32.mrb[0].mxu0
    %v733 = vadd.f32 %v536, %v732
    %v734 = vpop.f32.mrb[0].mxu0
    %v735 = vpop.f32.mrb[0].mxu0
    %v736 = vadd.f32 %v536, %v735
    %v737 = vpop.f32.mrb[0].mxu0
    %738 = vmatprep.mubr.bf16.mxu0 0
    %739 = vmatmul.mubr.bf16.gmra.mrb[0].mxu0 %v514
    %v740 = vpop.f32.mrb[0].mxu0
    %v741 = vadd.f32 %v536, %v740
    %v742 = vpop.f32.mrb[0].mxu0
    %v743 = vpop.f32.mrb[0].mxu0
    %v744 = vadd.f32 %v536, %v743
    %v745 = vpop.f32.mrb[0].mxu0
    %746 = vdwg.mxu0
    %v747 = vmax.f32 %v621, 0.0
    %v748 = vmax.f32 %v624, 0.0
    %v749 = vmax.f32 %v629, 0.0
    %v750 = vmax.f32 %v632, 0.0
    %v751 = vmax.f32 %v637, 0.0
    %v752 = vmax.f32 %v640, 0.0
    %v753 = vmax.f32 %v645, 0.0
    %v754 = vmax.f32 %v648, 0.0
    %v755 = vmax.f32 %v653, 0.0
    %v756 = vmax.f32 %v656, 0.0
    %v757 = vmax.f32 %v661, 0.0
    %v758 = vmax.f32 %v664, 0.0
    %v759 = vmax.f32 %v669, 0.0
    %v760 = vmax.f32 %v672, 0.0
    %v761 = vmax.f32 %v677, 0.0
    %v762 = vmax.f32 %v680, 0.0
    %v763 = vmax.f32 %v685, 0.0
    %v764 = vmax.f32 %v688, 0.0
    %v765 = vmax.f32 %v693, 0.0
    %v766 = vmax.f32 %v696, 0.0
    %v767 = vmax.f32 %v701, 0.0
    %v768 = vmax.f32 %v704, 0.0
    %v769 = vmax.f32 %v709, 0.0
    %v770 = vmax.f32 %v712, 0.0
    %v771 = vmax.f32 %v717, 0.0
    %v772 = vmax.f32 %v720, 0.0
    %v773 = vmax.f32 %v725, 0.0
    %v774 = vmax.f32 %v728, 0.0
    %v775 = vmax.f32 %v733, 0.0
    %v776 = vmax.f32 %v736, 0.0
    %v777 = vmax.f32 %v741, 0.0
    %v778 = vmax.f32 %v744, 0.0
    %v779 = vpack.c.bf16 %v748, %v747
    %v780 = vpack.c.bf16 %v750, %v749
    %v781 = vpack.c.bf16 %v752, %v751
    %v782 = vpack.c.bf16 %v754, %v753
    %v783 = vpack.c.bf16 %v756, %v755
    %v784 = vpack.c.bf16 %v758, %v757
    %v785 = vpack.c.bf16 %v760, %v759
    %v786 = vpack.c.bf16 %v762, %v761
    %v787 = vpack.c.bf16 %v764, %v763
    %v788 = vpack.c.bf16 %v766, %v765
    %v789 = vpack.c.bf16 %v768, %v767
    %v790 = vpack.c.bf16 %v770, %v769
    %v791 = vpack.c.bf16 %v772, %v771
    %v792 = vpack.c.bf16 %v774, %v773
    %v793 = vpack.c.bf16 %v776, %v775
    %v794 = vpack.c.bf16 %v778, %v777
    %v795 = vld [vmem:[#allocation8] sm:$0xf]
    %v796 = vld [vmem:[#allocation8 + $0x4] sm:$0xf]
    %v797 = vld [vmem:[#allocation8 + $0x8] sm:$0xf]
    %v798 = vld [vmem:[#allocation8 + $0xc] sm:$0xf]
    %v799 = vld [vmem:[#allocation8 + $0x10] sm:$0xf]
    %v800 = vld [vmem:[#allocation8 + $0x14] sm:$0xf]
    %v801 = vld [vmem:[#allocation8 + $0x18] sm:$0xf]
    %v802 = vld [vmem:[#allocation8 + $0x1c] sm:$0xf]
    %v803 = vld [vmem:[#allocation8 + $0x20] sm:$0xf]
    %v804 = vld [vmem:[#allocation8 + $0x24] sm:$0xf]
    %v805 = vld [vmem:[#allocation8 + $0x28] sm:$0xf]
    %v806 = vld [vmem:[#allocation8 + $0x2c] sm:$0xf]
    %v807 = vld [vmem:[#allocation8 + $0x30] sm:$0xf]
    %v808 = vld [vmem:[#allocation8 + $0x34] sm:$0xf]
    %v809 = vld [vmem:[#allocation8 + $0x38] sm:$0xf]
    %v810 = vld [vmem:[#allocation8 + $0x3c] sm:$0xf]
    %v811 = vld [vmem:[%s5] sm:$0x1]
    %v813 = vlaneseq
    %v814 = vshrl.u32 %v813, 7
    %v815 = vsub.s32 0, %v814
    %v816 = vrot.slane %v811, %v815
    %v834 = vunpack.c.l.b16 %v795
    %v835 = vunpack.c.l.b16 %v796
    %v836 = vunpack.c.l.b16 %v797
    %v837 = vunpack.c.l.b16 %v798
    %v838 = vunpack.c.l.b16 %v799
    %v839 = vunpack.c.l.b16 %v800
    %v840 = vunpack.c.l.b16 %v801
    %v841 = vunpack.c.l.b16 %v802
    %v842 = vunpack.c.l.b16 %v803
    %v843 = vunpack.c.l.b16 %v804
    %v844 = vunpack.c.l.b16 %v805
    %v845 = vunpack.c.l.b16 %v806
    %v846 = vunpack.c.l.b16 %v807
    %v847 = vunpack.c.l.b16 %v808
    %v848 = vunpack.c.l.b16 %v809
    %v849 = vunpack.c.l.b16 %v810
    %v850 = vpack.c.b16 %v835, %v834
    %v851 = vpack.c.b16 %v837, %v836
    %v852 = vpack.c.b16 %v839, %v838
    %v853 = vpack.c.b16 %v841, %v840
    %v854 = vpack.c.b16 %v843, %v842
    %v855 = vpack.c.b16 %v845, %v844
    %v856 = vpack.c.b16 %v847, %v846
    %v857 = vpack.c.b16 %v849, %v848
    %866 = vmatprep.subr.bf16.mxu0 0
    %867 = vmatpush1.bf16.msra.mxu0 %v850
    %868 = vmatprep.subr.bf16.mxu0 0
    %869 = vmatpush1.bf16.msra.mxu0 %v851
    %870 = vmatprep.subr.bf16.mxu0 0
    %871 = vmatpush1.bf16.msra.mxu0 %v852
    %872 = vmatprep.subr.bf16.mxu0 0
    %873 = vmatpush1.bf16.msra.mxu0 %v853
    %874 = vmatprep.subr.bf16.mxu0 0
    %875 = vmatpush1.bf16.msra.mxu0 %v854
    %876 = vmatprep.subr.bf16.mxu0 0
    %877 = vmatpush1.bf16.msra.mxu0 %v855
    %878 = vmatprep.subr.bf16.mxu0 0
    %879 = vmatpush1.bf16.msra.mxu0 %v856
    %880 = vmatprep.subr.bf16.mxu0 0
    %881 = vmatpush1.bf16.msra.mxu0 %v857
    %882 = vmatprep.subr.bf16.mxu0 0
    %883 = vmatpush1.bf16.msra.mxu0 0
    %884 = vmatprep.subr.bf16.mxu0 0
    %885 = vmatpush1.bf16.msra.mxu0 0
    %886 = vmatprep.subr.bf16.mxu0 0
    %887 = vmatpush1.bf16.msra.mxu0 0
    %888 = vmatprep.subr.bf16.mxu0 0
    %889 = vmatpush1.bf16.msra.mxu0 0
    %890 = vmatprep.subr.bf16.mxu0 0
    %891 = vmatpush1.bf16.msra.mxu0 0
    %892 = vmatprep.subr.bf16.mxu0 0
    %893 = vmatpush1.bf16.msra.mxu0 0
    %894 = vmatprep.subr.bf16.mxu0 0
    %895 = vmatpush1.bf16.msra.mxu0 0
    %896 = vmatprep.subr.bf16.mxu0 0
    %897 = vmatpush1.bf16.msra.mxu0 0
    %898 = vmatprep.mubr.bf16.mxu0 0
    %899 = vmatmul.mubr.bf16.gmra.mrb[0].mxu0 %v779
    %v900 = vpop.f32.mrb[0].mxu0
    %v901 = vadd.f32 %v816, %v900
    %v902 = vpop.f32.mrb[0].mxu0
    %v903 = vpop.f32.mrb[0].mxu0
    %v904 = vadd.f32 %v816, %v903
    %v905 = vpop.f32.mrb[0].mxu0
    %906 = vmatprep.mubr.bf16.mxu0 0
    %907 = vmatmul.mubr.bf16.gmra.mrb[0].mxu0 %v780
    %v908 = vpop.f32.mrb[0].mxu0
    %v909 = vadd.f32 %v816, %v908
    %v910 = vpop.f32.mrb[0].mxu0
    %v911 = vpop.f32.mrb[0].mxu0
    %v912 = vadd.f32 %v816, %v911
    %v913 = vpop.f32.mrb[0].mxu0
    %914 = vmatprep.mubr.bf16.mxu0 0
    %915 = vmatmul.mubr.bf16.gmra.mrb[0].mxu0 %v781
    %v916 = vpop.f32.mrb[0].mxu0
    %v917 = vadd.f32 %v816, %v916
    %v918 = vpop.f32.mrb[0].mxu0
    %v919 = vpop.f32.mrb[0].mxu0
    %v920 = vadd.f32 %v816, %v919
    %v921 = vpop.f32.mrb[0].mxu0
    %922 = vmatprep.mubr.bf16.mxu0 0
    %923 = vmatmul.mubr.bf16.gmra.mrb[0].mxu0 %v782
    %v924 = vpop.f32.mrb[0].mxu0
    %v925 = vadd.f32 %v816, %v924
    %v926 = vpop.f32.mrb[0].mxu0
    %v927 = vpop.f32.mrb[0].mxu0
    %v928 = vadd.f32 %v816, %v927
    %v929 = vpop.f32.mrb[0].mxu0
    %930 = vmatprep.mubr.bf16.mxu0 0
    %931 = vmatmul.mubr.bf16.gmra.mrb[0].mxu0 %v783
    %v932 = vpop.f32.mrb[0].mxu0
    %v933 = vadd.f32 %v816, %v932
    %v934 = vpop.f32.mrb[0].mxu0
    %v935 = vpop.f32.mrb[0].mxu0
    %v936 = vadd.f32 %v816, %v935
    %v937 = vpop.f32.mrb[0].mxu0
    %938 = vmatprep.mubr.bf16.mxu0 0
    %939 = vmatmul.mubr.bf16.gmra.mrb[0].mxu0 %v784
    %v940 = vpop.f32.mrb[0].mxu0
    %v941 = vadd.f32 %v816, %v940
    %v942 = vpop.f32.mrb[0].mxu0
    %v943 = vpop.f32.mrb[0].mxu0
    %v944 = vadd.f32 %v816, %v943
    %v945 = vpop.f32.mrb[0].mxu0
    %946 = vmatprep.mubr.bf16.mxu0 0
    %947 = vmatmul.mubr.bf16.gmra.mrb[0].mxu0 %v785
    %v948 = vpop.f32.mrb[0].mxu0
    %v949 = vadd.f32 %v816, %v948
    %v950 = vpop.f32.mrb[0].mxu0
    %v951 = vpop.f32.mrb[0].mxu0
    %v952 = vadd.f32 %v816, %v951
    %v953 = vpop.f32.mrb[0].mxu0
    %954 = vmatprep.mubr.bf16.mxu0 0
    %955 = vmatmul.mubr.bf16.gmra.mrb[0].mxu0 %v786
    %v956 = vpop.f32.mrb[0].mxu0
    %v957 = vadd.f32 %v816, %v956
    %v958 = vpop.f32.mrb[0].mxu0
    %v959 = vpop.f32.mrb[0].mxu0
    %v960 = vadd.f32 %v816, %v959
    %v961 = vpop.f32.mrb[0].mxu0
    %962 = vmatprep.mubr.bf16.mxu0 0
    %963 = vmatmul.mubr.bf16.gmra.mrb[0].mxu0 %v787
    %v964 = vpop.f32.mrb[0].mxu0
    %v965 = vadd.f32 %v816, %v964
    %v966 = vpop.f32.mrb[0].mxu0
    %v967 = vpop.f32.mrb[0].mxu0
    %v968 = vadd.f32 %v816, %v967
    %v969 = vpop.f32.mrb[0].mxu0
    %970 = vmatprep.mubr.bf16.mxu0 0
    %971 = vmatmul.mubr.bf16.gmra.mrb[0].mxu0 %v788
    %v972 = vpop.f32.mrb[0].mxu0
    %v973 = vadd.f32 %v816, %v972
    %v974 = vpop.f32.mrb[0].mxu0
    %v975 = vpop.f32.mrb[0].mxu0
    %v976 = vadd.f32 %v816, %v975
    %v977 = vpop.f32.mrb[0].mxu0
    %978 = vmatprep.mubr.bf16.mxu0 0
    %979 = vmatmul.mubr.bf16.gmra.mrb[0].mxu0 %v789
    %v980 = vpop.f32.mrb[0].mxu0
    %v981 = vadd.f32 %v816, %v980
    %v982 = vpop.f32.mrb[0].mxu0
    %v983 = vpop.f32.mrb[0].mxu0
    %v984 = vadd.f32 %v816, %v983
    %v985 = vpop.f32.mrb[0].mxu0
    %986 = vmatprep.mubr.bf16.mxu0 0
    %987 = vmatmul.mubr.bf16.gmra.mrb[0].mxu0 %v790
    %v988 = vpop.f32.mrb[0].mxu0
    %v989 = vadd.f32 %v816, %v988
    %v990 = vpop.f32.mrb[0].mxu0
    %v991 = vpop.f32.mrb[0].mxu0
    %v992 = vadd.f32 %v816, %v991
    %v993 = vpop.f32.mrb[0].mxu0
    %994 = vmatprep.mubr.bf16.mxu0 0
    %995 = vmatmul.mubr.bf16.gmra.mrb[0].mxu0 %v791
    %v996 = vpop.f32.mrb[0].mxu0
    %v997 = vadd.f32 %v816, %v996
    %v998 = vpop.f32.mrb[0].mxu0
    %v999 = vpop.f32.mrb[0].mxu0
    %v1000 = vadd.f32 %v816, %v999
    %v1001 = vpop.f32.mrb[0].mxu0
    %1002 = vmatprep.mubr.bf16.mxu0 0
    %1003 = vmatmul.mubr.bf16.gmra.mrb[0].mxu0 %v792
    %v1004 = vpop.f32.mrb[0].mxu0
    %v1005 = vadd.f32 %v816, %v1004
    %v1006 = vpop.f32.mrb[0].mxu0
    %v1007 = vpop.f32.mrb[0].mxu0
    %v1008 = vadd.f32 %v816, %v1007
    %v1009 = vpop.f32.mrb[0].mxu0
    %1010 = vmatprep.mubr.bf16.mxu0 0
    %1011 = vmatmul.mubr.bf16.gmra.mrb[0].mxu0 %v793
    %v1012 = vpop.f32.mrb[0].mxu0
    %v1013 = vadd.f32 %v816, %v1012
    %v1014 = vpop.f32.mrb[0].mxu0
    %v1015 = vpop.f32.mrb[0].mxu0
    %v1016 = vadd.f32 %v816, %v1015
    %v1017 = vpop.f32.mrb[0].mxu0
    %1018 = vmatprep.mubr.bf16.mxu0 0
    %1019 = vmatmul.mubr.bf16.gmra.mrb[0].mxu0 %v794
    %v1020 = vpop.f32.mrb[0].mxu0
    %v1021 = vadd.f32 %v816, %v1020
    %v1022 = vpop.f32.mrb[0].mxu0
    %v1023 = vpop.f32.mrb[0].mxu0
    %v1024 = vadd.f32 %v816, %v1023
    %v1025 = vpop.f32.mrb[0].mxu0
    %1026 = vdwg.mxu0
    %v1027 = vmax.f32 %v901, 0.0
    %v1028 = vmax.f32 %v904, 0.0
    %v1029 = vmax.f32 %v909, 0.0
    %v1030 = vmax.f32 %v912, 0.0
    %v1031 = vmax.f32 %v917, 0.0
    %v1032 = vmax.f32 %v920, 0.0
    %v1033 = vmax.f32 %v925, 0.0
    %v1034 = vmax.f32 %v928, 0.0
    %v1035 = vmax.f32 %v933, 0.0
    %v1036 = vmax.f32 %v936, 0.0
    %v1037 = vmax.f32 %v941, 0.0
    %v1038 = vmax.f32 %v944, 0.0
    %v1039 = vmax.f32 %v949, 0.0
    %v1040 = vmax.f32 %v952, 0.0
    %v1041 = vmax.f32 %v957, 0.0
    %v1042 = vmax.f32 %v960, 0.0
    %v1043 = vmax.f32 %v965, 0.0
    %v1044 = vmax.f32 %v968, 0.0
    %v1045 = vmax.f32 %v973, 0.0
    %v1046 = vmax.f32 %v976, 0.0
    %v1047 = vmax.f32 %v981, 0.0
    %v1048 = vmax.f32 %v984, 0.0
    %v1049 = vmax.f32 %v989, 0.0
    %v1050 = vmax.f32 %v992, 0.0
    %v1051 = vmax.f32 %v997, 0.0
    %v1052 = vmax.f32 %v1000, 0.0
    %v1053 = vmax.f32 %v1005, 0.0
    %v1054 = vmax.f32 %v1008, 0.0
    %v1055 = vmax.f32 %v1013, 0.0
    %v1056 = vmax.f32 %v1016, 0.0
    %v1057 = vmax.f32 %v1021, 0.0
    %v1058 = vmax.f32 %v1024, 0.0
    %v1059 = vadd.f32 %v1027, %v1028
    %v1060 = vadd.f32 %v1059, %v1029
    %v1061 = vadd.f32 %v1060, %v1030
    %v1062 = vadd.f32 %v1061, %v1031
    %v1063 = vadd.f32 %v1062, %v1032
    %v1064 = vadd.f32 %v1063, %v1033
    %v1065 = vadd.f32 %v1064, %v1034
    %v1066 = vadd.f32 %v1065, %v1035
    %v1067 = vadd.f32 %v1066, %v1036
    %v1068 = vadd.f32 %v1067, %v1037
    %v1069 = vadd.f32 %v1068, %v1038
    %v1070 = vadd.f32 %v1069, %v1039
    %v1071 = vadd.f32 %v1070, %v1040
    %v1072 = vadd.f32 %v1071, %v1041
    %v1073 = vadd.f32 %v1072, %v1042
    %v1074 = vadd.f32 %v1073, %v1043
    %v1075 = vadd.f32 %v1074, %v1044
    %v1076 = vadd.f32 %v1075, %v1045
    %v1077 = vadd.f32 %v1076, %v1046
    %v1078 = vadd.f32 %v1077, %v1047
    %v1079 = vadd.f32 %v1078, %v1048
    %v1080 = vadd.f32 %v1079, %v1049
    %v1081 = vadd.f32 %v1080, %v1050
    %v1082 = vadd.f32 %v1081, %v1051
    %v1083 = vadd.f32 %v1082, %v1052
    %v1084 = vadd.f32 %v1083, %v1053
    %v1085 = vadd.f32 %v1084, %v1054
    %v1086 = vadd.f32 %v1085, %v1055
    %v1087 = vadd.f32 %v1086, %v1056
    %v1088 = vadd.f32 %v1087, %v1057
    %v1089 = vadd.f32 %v1088, %v1058
    %v1090 = vrot.slane %v1089, 4
    %v1091 = vadd.f32 %v1089, %v1090
    %v1092 = vrot.slane %v1091, 2
    %v1093 = vadd.f32 %v1091, %v1092
    %v1094 = vrot.slane %v1093, 1
    %v1095 = vadd.f32 %v1093, %v1094
    %v1096 = vrcp.pop 256.0
    %v1097 = vmul.f32 %v1095, %v1096
    %v1098 = vsub.f32 %v1027, %v1097
    %v1099 = vsub.f32 %v1028, %v1097
    %v1100 = vsub.f32 %v1029, %v1097
    %v1101 = vsub.f32 %v1030, %v1097
    %v1102 = vsub.f32 %v1031, %v1097
    %v1103 = vsub.f32 %v1032, %v1097
    %v1104 = vsub.f32 %v1033, %v1097
    %v1105 = vsub.f32 %v1034, %v1097
    %v1106 = vsub.f32 %v1035, %v1097
    %v1107 = vsub.f32 %v1036, %v1097
    %v1108 = vsub.f32 %v1037, %v1097
    %v1109 = vsub.f32 %v1038, %v1097
    %v1110 = vsub.f32 %v1039, %v1097
    %v1111 = vsub.f32 %v1040, %v1097
    %v1112 = vsub.f32 %v1041, %v1097
    %v1113 = vsub.f32 %v1042, %v1097
    %v1114 = vsub.f32 %v1043, %v1097
    %v1115 = vsub.f32 %v1044, %v1097
    %v1116 = vsub.f32 %v1045, %v1097
    %v1117 = vsub.f32 %v1046, %v1097
    %v1118 = vsub.f32 %v1047, %v1097
    %v1119 = vsub.f32 %v1048, %v1097
    %v1120 = vsub.f32 %v1049, %v1097
    %v1121 = vsub.f32 %v1050, %v1097
    %v1122 = vsub.f32 %v1051, %v1097
    %v1123 = vsub.f32 %v1052, %v1097
    %v1124 = vsub.f32 %v1053, %v1097
    %v1125 = vsub.f32 %v1054, %v1097
    %v1126 = vsub.f32 %v1055, %v1097
    %v1127 = vsub.f32 %v1056, %v1097
    %v1128 = vsub.f32 %v1057, %v1097
    %v1129 = vsub.f32 %v1058, %v1097
    %v1130 = vmul.f32 %v1098, %v1098
    %v1131 = vmul.f32 %v1099, %v1099
    %v1132 = vmul.f32 %v1100, %v1100
    %v1133 = vmul.f32 %v1101, %v1101
    %v1134 = vmul.f32 %v1102, %v1102
    %v1135 = vmul.f32 %v1103, %v1103
    %v1136 = vmul.f32 %v1104, %v1104
    %v1137 = vmul.f32 %v1105, %v1105
    %v1138 = vmul.f32 %v1106, %v1106
    %v1139 = vmul.f32 %v1107, %v1107
    %v1140 = vmul.f32 %v1108, %v1108
    %v1141 = vmul.f32 %v1109, %v1109
    %v1142 = vmul.f32 %v1110, %v1110
    %v1143 = vmul.f32 %v1111, %v1111
    %v1144 = vmul.f32 %v1112, %v1112
    %v1145 = vmul.f32 %v1113, %v1113
    %v1146 = vmul.f32 %v1114, %v1114
    %v1147 = vmul.f32 %v1115, %v1115
    %v1148 = vmul.f32 %v1116, %v1116
    %v1149 = vmul.f32 %v1117, %v1117
    %v1150 = vmul.f32 %v1118, %v1118
    %v1151 = vmul.f32 %v1119, %v1119
    %v1152 = vmul.f32 %v1120, %v1120
    %v1153 = vmul.f32 %v1121, %v1121
    %v1154 = vmul.f32 %v1122, %v1122
    %v1155 = vmul.f32 %v1123, %v1123
    %v1156 = vmul.f32 %v1124, %v1124
    %v1157 = vmul.f32 %v1125, %v1125
    %v1158 = vmul.f32 %v1126, %v1126
    %v1159 = vmul.f32 %v1127, %v1127
    %v1160 = vmul.f32 %v1128, %v1128
    %v1161 = vmul.f32 %v1129, %v1129
    %v1162 = vadd.f32 %v1130, %v1131
    %v1163 = vadd.f32 %v1162, %v1132
    %v1164 = vadd.f32 %v1163, %v1133
    %v1165 = vadd.f32 %v1164, %v1134
    %v1166 = vadd.f32 %v1165, %v1135
    %v1167 = vadd.f32 %v1166, %v1136
    %v1168 = vadd.f32 %v1167, %v1137
    %v1169 = vadd.f32 %v1168, %v1138
    %v1170 = vadd.f32 %v1169, %v1139
    %v1171 = vadd.f32 %v1170, %v1140
    %v1172 = vadd.f32 %v1171, %v1141
    %v1173 = vadd.f32 %v1172, %v1142
    %v1174 = vadd.f32 %v1173, %v1143
    %v1175 = vadd.f32 %v1174, %v1144
    %v1176 = vadd.f32 %v1175, %v1145
    %v1177 = vadd.f32 %v1176, %v1146
    %v1178 = vadd.f32 %v1177, %v1147
    %v1179 = vadd.f32 %v1178, %v1148
    %v1180 = vadd.f32 %v1179, %v1149
    %v1181 = vadd.f32 %v1180, %v1150
    %v1182 = vadd.f32 %v1181, %v1151
    %v1183 = vadd.f32 %v1182, %v1152
    %v1184 = vadd.f32 %v1183, %v1153
    %v1185 = vadd.f32 %v1184, %v1154
    %v1186 = vadd.f32 %v1185, %v1155
    %v1187 = vadd.f32 %v1186, %v1156
    %v1188 = vadd.f32 %v1187, %v1157
    %v1189 = vadd.f32 %v1188, %v1158
    %v1190 = vadd.f32 %v1189, %v1159
    %v1191 = vadd.f32 %v1190, %v1160
    %v1192 = vadd.f32 %v1191, %v1161
    %v1193 = vrot.slane %v1192, 4
    %v1194 = vadd.f32 %v1192, %v1193
    %v1195 = vrot.slane %v1194, 2
    %v1196 = vadd.f32 %v1194, %v1195
    %v1197 = vrot.slane %v1196, 1
    %v1198 = vadd.f32 %v1196, %v1197
    %v1199 = vmul.f32 %v1198, %v1096
    %v1200 = vadd.f32 %v1199, 1e-05
    %v1201 = vrsqrt.pop %v1200
    %v1202 = vmul.f32 %v1098, %v1201
    %v1203 = vmul.f32 %v1099, %v1201
    %v1204 = vmul.f32 %v1100, %v1201
    %v1205 = vmul.f32 %v1101, %v1201
    %v1206 = vmul.f32 %v1102, %v1201
    %v1207 = vmul.f32 %v1103, %v1201
    %v1208 = vmul.f32 %v1104, %v1201
    %v1209 = vmul.f32 %v1105, %v1201
    %v1210 = vmul.f32 %v1106, %v1201
    %v1211 = vmul.f32 %v1107, %v1201
    %v1212 = vmul.f32 %v1108, %v1201
    %v1213 = vmul.f32 %v1109, %v1201
    %v1214 = vmul.f32 %v1110, %v1201
    %v1215 = vmul.f32 %v1111, %v1201
    %v1216 = vmul.f32 %v1112, %v1201
    %v1217 = vmul.f32 %v1113, %v1201
    %v1218 = vmul.f32 %v1114, %v1201
    %v1219 = vmul.f32 %v1115, %v1201
    %v1220 = vmul.f32 %v1116, %v1201
    %v1221 = vmul.f32 %v1117, %v1201
    %v1222 = vmul.f32 %v1118, %v1201
    %v1223 = vmul.f32 %v1119, %v1201
    %v1224 = vmul.f32 %v1120, %v1201
    %v1225 = vmul.f32 %v1121, %v1201
    %v1226 = vmul.f32 %v1122, %v1201
    %v1227 = vmul.f32 %v1123, %v1201
    %v1228 = vmul.f32 %v1124, %v1201
    %v1229 = vmul.f32 %v1125, %v1201
    %v1230 = vmul.f32 %v1126, %v1201
    %v1231 = vmul.f32 %v1127, %v1201
    %v1232 = vmul.f32 %v1128, %v1201
    %v1233 = vmul.f32 %v1129, %v1201
    %v1234 = vpack.c.bf16 %v1203, %v1202
    %v1235 = vpack.c.bf16 %v1205, %v1204
    %v1236 = vpack.c.bf16 %v1207, %v1206
    %v1237 = vpack.c.bf16 %v1209, %v1208
    %v1238 = vpack.c.bf16 %v1211, %v1210
    %v1239 = vpack.c.bf16 %v1213, %v1212
    %v1240 = vpack.c.bf16 %v1215, %v1214
    %v1241 = vpack.c.bf16 %v1217, %v1216
    %v1242 = vpack.c.bf16 %v1219, %v1218
    %v1243 = vpack.c.bf16 %v1221, %v1220
    %v1244 = vpack.c.bf16 %v1223, %v1222
    %v1245 = vpack.c.bf16 %v1225, %v1224
    %v1246 = vpack.c.bf16 %v1227, %v1226
    %v1247 = vpack.c.bf16 %v1229, %v1228
    %v1248 = vpack.c.bf16 %v1231, %v1230
    %v1249 = vpack.c.bf16 %v1233, %v1232
    %v1266 = vunpack.c.l.b16 %v1234
    %v1267 = vunpack.c.h.b16 %v1234
    %v1268 = vunpack.c.l.b16 %v1235
    %v1269 = vunpack.c.h.b16 %v1235
    %v1270 = vunpack.c.l.b16 %v1236
    %v1271 = vunpack.c.h.b16 %v1236
    %v1272 = vunpack.c.l.b16 %v1237
    %v1273 = vunpack.c.h.b16 %v1237
    %v1274 = vunpack.c.l.b16 %v1238
    %v1275 = vunpack.c.h.b16 %v1238
    %v1276 = vunpack.c.l.b16 %v1239
    %v1277 = vunpack.c.h.b16 %v1239
    %v1278 = vunpack.c.l.b16 %v1240
    %v1279 = vunpack.c.h.b16 %v1240
    %v1280 = vunpack.c.l.b16 %v1241
    %v1281 = vunpack.c.h.b16 %v1241
    %v1282 = vunpack.c.l.b16 %v1242
    %v1283 = vunpack.c.h.b16 %v1242
    %v1284 = vunpack.c.l.b16 %v1243
    %v1285 = vunpack.c.h.b16 %v1243
    %v1286 = vunpack.c.l.b16 %v1244
    %v1287 = vunpack.c.h.b16 %v1244
    %v1288 = vunpack.c.l.b16 %v1245
    %v1289 = vunpack.c.h.b16 %v1245
    %v1290 = vunpack.c.l.b16 %v1246
    %v1291 = vunpack.c.h.b16 %v1246
    %v1292 = vunpack.c.l.b16 %v1247
    %v1293 = vunpack.c.h.b16 %v1247
    %v1294 = vunpack.c.l.b16 %v1248
    %v1295 = vunpack.c.h.b16 %v1248
    %v1296 = vunpack.c.l.b16 %v1249
    %v1297 = vunpack.c.h.b16 %v1249
    %v1298 = vpack.c.b16 %v1266, %v1266
    %v1299 = vpack.c.b16 %v1267, %v1267
    %v1300 = vpack.c.b16 %v1268, %v1268
    %v1301 = vpack.c.b16 %v1269, %v1269
    %v1302 = vpack.c.b16 %v1270, %v1270
    %v1303 = vpack.c.b16 %v1271, %v1271
    %v1304 = vpack.c.b16 %v1272, %v1272
    %v1305 = vpack.c.b16 %v1273, %v1273
    %v1306 = vpack.c.b16 %v1274, %v1274
    %v1307 = vpack.c.b16 %v1275, %v1275
    %v1308 = vpack.c.b16 %v1276, %v1276
    %v1309 = vpack.c.b16 %v1277, %v1277
    %v1310 = vpack.c.b16 %v1278, %v1278
    %v1311 = vpack.c.b16 %v1279, %v1279
    %v1312 = vpack.c.b16 %v1280, %v1280
    %v1313 = vpack.c.b16 %v1281, %v1281
    %v1314 = vpack.c.b16 %v1282, %v1282
    %v1315 = vpack.c.b16 %v1283, %v1283
    %v1316 = vpack.c.b16 %v1284, %v1284
    %v1317 = vpack.c.b16 %v1285, %v1285
    %v1318 = vpack.c.b16 %v1286, %v1286
    %v1319 = vpack.c.b16 %v1287, %v1287
    %v1320 = vpack.c.b16 %v1288, %v1288
    %v1321 = vpack.c.b16 %v1289, %v1289
    %v1322 = vpack.c.b16 %v1290, %v1290
    %v1323 = vpack.c.b16 %v1291, %v1291
    %v1324 = vpack.c.b16 %v1292, %v1292
    %v1325 = vpack.c.b16 %v1293, %v1293
    %v1326 = vpack.c.b16 %v1294, %v1294
    %v1327 = vpack.c.b16 %v1295, %v1295
    %v1328 = vpack.c.b16 %v1296, %v1296
    %v1329 = vpack.c.b16 %v1297, %v1297
    %1362 = vst [vmem:[#allocation16] sm:$0xf] %v1298
    %1363 = vst [vmem:[#allocation16 + $0x4] sm:$0xf] %v1299
    %1364 = vst [vmem:[#allocation16 + $0x8] sm:$0xf] %v1300
    %1365 = vst [vmem:[#allocation16 + $0xc] sm:$0xf] %v1301
    %1366 = vst [vmem:[#allocation16 + $0x10] sm:$0xf] %v1302
    %1367 = vst [vmem:[#allocation16 + $0x14] sm:$0xf] %v1303
    %1368 = vst [vmem:[#allocation16 + $0x18] sm:$0xf] %v1304
    %1369 = vst [vmem:[#allocation16 + $0x1c] sm:$0xf] %v1305
    %1370 = vst [vmem:[#allocation16 + $0x20] sm:$0xf] %v1306
    %1371 = vst [vmem:[#allocation16 + $0x24] sm:$0xf] %v1307
    %1372 = vst [vmem:[#allocation16 + $0x28] sm:$0xf] %v1308
    %1373 = vst [vmem:[#allocation16 + $0x2c] sm:$0xf] %v1309
    %1374 = vst [vmem:[#allocation16 + $0x30] sm:$0xf] %v1310
    %1375 = vst [vmem:[#allocation16 + $0x34] sm:$0xf] %v1311
    %1376 = vst [vmem:[#allocation16 + $0x38] sm:$0xf] %v1312
    %1377 = vst [vmem:[#allocation16 + $0x3c] sm:$0xf] %v1313
    %1378 = vst [vmem:[#allocation16 + $0x40] sm:$0xf] %v1314
    %1379 = vst [vmem:[#allocation16 + $0x44] sm:$0xf] %v1315
    %1380 = vst [vmem:[#allocation16 + $0x48] sm:$0xf] %v1316
    %1381 = vst [vmem:[#allocation16 + $0x4c] sm:$0xf] %v1317
    %1382 = vst [vmem:[#allocation16 + $0x50] sm:$0xf] %v1318
    %1383 = vst [vmem:[#allocation16 + $0x54] sm:$0xf] %v1319
    %1384 = vst [vmem:[#allocation16 + $0x58] sm:$0xf] %v1320
    %1385 = vst [vmem:[#allocation16 + $0x5c] sm:$0xf] %v1321
    %1386 = vst [vmem:[#allocation16 + $0x60] sm:$0xf] %v1322
    %1387 = vst [vmem:[#allocation16 + $0x64] sm:$0xf] %v1323
    %1388 = vst [vmem:[#allocation16 + $0x68] sm:$0xf] %v1324
    %1389 = vst [vmem:[#allocation16 + $0x6c] sm:$0xf] %v1325
    %1390 = vst [vmem:[#allocation16 + $0x70] sm:$0xf] %v1326
    %1391 = vst [vmem:[#allocation16 + $0x74] sm:$0xf] %v1327
    %1392 = vst [vmem:[#allocation16 + $0x78] sm:$0xf] %v1328
    %1393 = vst [vmem:[#allocation16 + $0x7c] sm:$0xf] %v1329
    %1394 = vmatprep.subr.bf16.mxu0 0
    %1395 = vmatpush1.bf16.msra.mxu0 %v1234
    %1396 = vmatprep.subr.bf16.mxu0 0
    %1397 = vmatpush1.bf16.msra.mxu0 %v1235
    %1398 = vmatprep.subr.bf16.mxu0 0
    %1399 = vmatpush1.bf16.msra.mxu0 %v1236
    %1400 = vmatprep.subr.bf16.mxu0 0
    %1401 = vmatpush1.bf16.msra.mxu0 %v1237
    %1402 = vmatprep.subr.bf16.mxu0 0
    %1403 = vmatpush1.bf16.msra.mxu0 %v1238
    %1404 = vmatprep.subr.bf16.mxu0 0
    %1405 = vmatpush1.bf16.msra.mxu0 %v1239
    %1406 = vmatprep.subr.bf16.mxu0 0
    %1407 = vmatpush1.bf16.msra.mxu0 %v1240
    %1408 = vmatprep.subr.bf16.mxu0 0
    %1409 = vmatpush1.bf16.msra.mxu0 %v1241
    %1410 = vmatprep.subr.bf16.mxu0 0
    %1411 = vmatpush1.bf16.msra.mxu0 %v1242
    %1412 = vmatprep.subr.bf16.mxu0 0
    %1413 = vmatpush1.bf16.msra.mxu0 %v1243
    %1414 = vmatprep.subr.bf16.mxu0 0
    %1415 = vmatpush1.bf16.msra.mxu0 %v1244
    %1416 = vmatprep.subr.bf16.mxu0 0
    %1417 = vmatpush1.bf16.msra.mxu0 %v1245
    %1418 = vmatprep.subr.bf16.mxu0 0
    %1419 = vmatpush1.bf16.msra.mxu0 %v1246
    %1420 = vmatprep.subr.bf16.mxu0 0
    %1421 = vmatpush1.bf16.msra.mxu0 %v1247
    %1422 = vmatprep.subr.bf16.mxu0 0
    %1423 = vmatpush1.bf16.msra.mxu0 %v1248
    %1424 = vmatprep.subr.bf16.mxu0 0
    %1425 = vmatpush1.bf16.msra.mxu0 %v1249
    %1426 = vmatprep.mubr.bf16.mxu0 %v179
    %1427 = vmatmul.mubr.bf16.gmra.mrb[0].mxu0 %v178
    %v1428 = vpop.f32.mrb[0].mxu0
    %v1429 = vadd.f32 0.0, %v1428
    %v1430 = vpop.f32.mrb[0].mxu0
    %v1431 = vpop.f32.mrb[0].mxu0
    %v1432 = vadd.f32 0.0, %v1431
    %v1433 = vpop.f32.mrb[0].mxu0
    %1434 = vmatprep.mubr.bf16.mxu0 %v181
    %1435 = vmatmul.mubr.bf16.gmra.mrb[0].mxu0 %v180
    %v1436 = vpop.f32.mrb[0].mxu0
    %v1437 = vadd.f32 0.0, %v1436
    %v1438 = vpop.f32.mrb[0].mxu0
    %v1439 = vpop.f32.mrb[0].mxu0
    %v1440 = vadd.f32 0.0, %v1439
    %v1441 = vpop.f32.mrb[0].mxu0
    %1442 = vmatprep.mubr.bf16.mxu0 %v183
    %1443 = vmatmul.mubr.bf16.gmra.mrb[0].mxu0 %v182
    %v1444 = vpop.f32.mrb[0].mxu0
    %v1445 = vadd.f32 0.0, %v1444
    %v1446 = vpop.f32.mrb[0].mxu0
    %v1447 = vpop.f32.mrb[0].mxu0
    %v1448 = vadd.f32 0.0, %v1447
    %v1449 = vpop.f32.mrb[0].mxu0
    %1450 = vmatprep.mubr.bf16.mxu0 %v185
    %1451 = vmatmul.mubr.bf16.gmra.mrb[0].mxu0 %v184
    %v1452 = vpop.f32.mrb[0].mxu0
    %v1453 = vadd.f32 0.0, %v1452
    %v1454 = vpop.f32.mrb[0].mxu0
    %v1455 = vpop.f32.mrb[0].mxu0
    %v1456 = vadd.f32 0.0, %v1455
    %v1457 = vpop.f32.mrb[0].mxu0
    %1458 = vmatprep.mubr.bf16.mxu0 %v187
    %1459 = vmatmul.mubr.bf16.gmra.mrb[0].mxu0 %v186
    %v1460 = vpop.f32.mrb[0].mxu0
    %v1461 = vadd.f32 0.0, %v1460
    %v1462 = vpop.f32.mrb[0].mxu0
    %v1463 = vpop.f32.mrb[0].mxu0
    %v1464 = vadd.f32 0.0, %v1463
    %v1465 = vpop.f32.mrb[0].mxu0
    %1466 = vmatprep.mubr.bf16.mxu0 %v189
    %1467 = vmatmul.mubr.bf16.gmra.mrb[0].mxu0 %v188
    %v1468 = vpop.f32.mrb[0].mxu0
    %v1469 = vadd.f32 0.0, %v1468
    %v1470 = vpop.f32.mrb[0].mxu0
    %v1471 = vpop.f32.mrb[0].mxu0
    %v1472 = vadd.f32 0.0, %v1471
    %v1473 = vpop.f32.mrb[0].mxu0
    %1474 = vmatprep.mubr.bf16.mxu0 %v191
    %1475 = vmatmul.mubr.bf16.gmra.mrb[0].mxu0 %v190
    %v1476 = vpop.f32.mrb[0].mxu0
    %v1477 = vadd.f32 0.0, %v1476
    %v1478 = vpop.f32.mrb[0].mxu0
    %v1479 = vpop.f32.mrb[0].mxu0
    %v1480 = vadd.f32 0.0, %v1479
    %v1481 = vpop.f32.mrb[0].mxu0
    %1482 = vmatprep.mubr.bf16.mxu0 %v193
    %1483 = vmatmul.mubr.bf16.gmra.mrb[0].mxu0 %v192
    %v1484 = vpop.f32.mrb[0].mxu0
    %v1485 = vadd.f32 0.0, %v1484
    %v1486 = vpop.f32.mrb[0].mxu0
    %v1487 = vpop.f32.mrb[0].mxu0
    %v1488 = vadd.f32 0.0, %v1487
    %v1489 = vpop.f32.mrb[0].mxu0
    %1490 = vmatprep.mubr.bf16.mxu0 %v195
    %1491 = vmatmul.mubr.bf16.gmra.mrb[0].mxu0 %v194
    %v1492 = vpop.f32.mrb[0].mxu0
    %v1493 = vadd.f32 0.0, %v1492
    %v1494 = vpop.f32.mrb[0].mxu0
    %v1495 = vpop.f32.mrb[0].mxu0
    %v1496 = vadd.f32 0.0, %v1495
    %v1497 = vpop.f32.mrb[0].mxu0
    %1498 = vmatprep.mubr.bf16.mxu0 %v197
    %1499 = vmatmul.mubr.bf16.gmra.mrb[0].mxu0 %v196
    %v1500 = vpop.f32.mrb[0].mxu0
    %v1501 = vadd.f32 0.0, %v1500
    %v1502 = vpop.f32.mrb[0].mxu0
    %v1503 = vpop.f32.mrb[0].mxu0
    %v1504 = vadd.f32 0.0, %v1503
    %v1505 = vpop.f32.mrb[0].mxu0
    %1506 = vmatprep.mubr.bf16.mxu0 %v199
    %1507 = vmatmul.mubr.bf16.gmra.mrb[0].mxu0 %v198
    %v1508 = vpop.f32.mrb[0].mxu0
    %v1509 = vadd.f32 0.0, %v1508
    %v1510 = vpop.f32.mrb[0].mxu0
    %v1511 = vpop.f32.mrb[0].mxu0
    %v1512 = vadd.f32 0.0, %v1511
    %v1513 = vpop.f32.mrb[0].mxu0
    %1514 = vmatprep.mubr.bf16.mxu0 %v201
    %1515 = vmatmul.mubr.bf16.gmra.mrb[0].mxu0 %v200
    %v1516 = vpop.f32.mrb[0].mxu0
    %v1517 = vadd.f32 0.0, %v1516
    %v1518 = vpop.f32.mrb[0].mxu0
    %v1519 = vpop.f32.mrb[0].mxu0
    %v1520 = vadd.f32 0.0, %v1519
    %v1521 = vpop.f32.mrb[0].mxu0
    %1522 = vmatprep.mubr.bf16.mxu0 %v203
    %1523 = vmatmul.mubr.bf16.gmra.mrb[0].mxu0 %v202
    %v1524 = vpop.f32.mrb[0].mxu0
    %v1525 = vadd.f32 0.0, %v1524
    %v1526 = vpop.f32.mrb[0].mxu0
    %v1527 = vpop.f32.mrb[0].mxu0
    %v1528 = vadd.f32 0.0, %v1527
    %v1529 = vpop.f32.mrb[0].mxu0
    %1530 = vmatprep.mubr.bf16.mxu0 %v205
    %1531 = vmatmul.mubr.bf16.gmra.mrb[0].mxu0 %v204
    %v1532 = vpop.f32.mrb[0].mxu0
    %v1533 = vadd.f32 0.0, %v1532
    %v1534 = vpop.f32.mrb[0].mxu0
    %v1535 = vpop.f32.mrb[0].mxu0
    %v1536 = vadd.f32 0.0, %v1535
    %v1537 = vpop.f32.mrb[0].mxu0
    %1538 = vmatprep.mubr.bf16.mxu0 %v207
    %1539 = vmatmul.mubr.bf16.gmra.mrb[0].mxu0 %v206
    %v1540 = vpop.f32.mrb[0].mxu0
    %v1541 = vadd.f32 0.0, %v1540
    %v1542 = vpop.f32.mrb[0].mxu0
    %v1543 = vpop.f32.mrb[0].mxu0
    %v1544 = vadd.f32 0.0, %v1543
    %v1545 = vpop.f32.mrb[0].mxu0
    %1546 = vmatprep.mubr.bf16.mxu0 %v209
    %1547 = vmatmul.mubr.bf16.gmra.mrb[0].mxu0 %v208
    %v1548 = vpop.f32.mrb[0].mxu0
    %v1549 = vadd.f32 0.0, %v1548
    %v1550 = vpop.f32.mrb[0].mxu0
    %v1551 = vpop.f32.mrb[0].mxu0
    %v1552 = vadd.f32 0.0, %v1551
    %v1553 = vpop.f32.mrb[0].mxu0
    %1554 = vdwg.mxu0
    %v1555 = vpack.c.bf16 %v1432, %v1429
    %v1556 = vpack.c.bf16 %v1440, %v1437
    %v1557 = vpack.c.bf16 %v1448, %v1445
    %v1558 = vpack.c.bf16 %v1456, %v1453
    %v1559 = vpack.c.bf16 %v1464, %v1461
    %v1560 = vpack.c.bf16 %v1472, %v1469
    %v1561 = vpack.c.bf16 %v1480, %v1477
    %v1562 = vpack.c.bf16 %v1488, %v1485
    %v1563 = vpack.c.bf16 %v1496, %v1493
    %v1564 = vpack.c.bf16 %v1504, %v1501
    %v1565 = vpack.c.bf16 %v1512, %v1509
    %v1566 = vpack.c.bf16 %v1520, %v1517
    %v1567 = vpack.c.bf16 %v1528, %v1525
    %v1568 = vpack.c.bf16 %v1536, %v1533
    %v1569 = vpack.c.bf16 %v1544, %v1541
    %v1570 = vpack.c.bf16 %v1552, %v1549
    %v1571 = vld [vmem:[#allocation10] sm:$0xf]
    %v1572 = vld [vmem:[#allocation10 + $0x4] sm:$0xf]
    %v1573 = vld [vmem:[#allocation10 + $0x8] sm:$0xf]
    %v1574 = vld [vmem:[#allocation10 + $0xc] sm:$0xf]
    %v1575 = vld [vmem:[#allocation10 + $0x10] sm:$0xf]
    %v1576 = vld [vmem:[#allocation10 + $0x14] sm:$0xf]
    %v1577 = vld [vmem:[#allocation10 + $0x18] sm:$0xf]
    %v1578 = vld [vmem:[#allocation10 + $0x1c] sm:$0xf]
    %v1579 = vld [vmem:[#allocation10 + $0x20] sm:$0xf]
    %v1580 = vld [vmem:[#allocation10 + $0x24] sm:$0xf]
    %v1581 = vld [vmem:[#allocation10 + $0x28] sm:$0xf]
    %v1582 = vld [vmem:[#allocation10 + $0x2c] sm:$0xf]
    %v1583 = vld [vmem:[#allocation10 + $0x30] sm:$0xf]
    %v1584 = vld [vmem:[#allocation10 + $0x34] sm:$0xf]
    %v1585 = vld [vmem:[#allocation10 + $0x38] sm:$0xf]
    %v1586 = vld [vmem:[#allocation10 + $0x3c] sm:$0xf]
    %v1587 = vld [vmem:[%s7] sm:$0x1]
    %v1589 = vlaneseq
    %v1590 = vshrl.u32 %v1589, 7
    %v1591 = vsub.s32 0, %v1590
    %v1592 = vrot.slane %v1587, %v1591
    %v1610 = vunpack.c.l.b16 %v1571
    %v1611 = vunpack.c.l.b16 %v1572
    %v1612 = vunpack.c.l.b16 %v1573
    %v1613 = vunpack.c.l.b16 %v1574
    %v1614 = vunpack.c.l.b16 %v1575
    %v1615 = vunpack.c.l.b16 %v1576
    %v1616 = vunpack.c.l.b16 %v1577
    %v1617 = vunpack.c.l.b16 %v1578
    %v1618 = vunpack.c.l.b16 %v1579
    %v1619 = vunpack.c.l.b16 %v1580
    %v1620 = vunpack.c.l.b16 %v1581
    %v1621 = vunpack.c.l.b16 %v1582
    %v1622 = vunpack.c.l.b16 %v1583
    %v1623 = vunpack.c.l.b16 %v1584
    %v1624 = vunpack.c.l.b16 %v1585
    %v1625 = vunpack.c.l.b16 %v1586
    %v1626 = vpack.c.b16 %v1611, %v1610
    %v1627 = vpack.c.b16 %v1613, %v1612
    %v1628 = vpack.c.b16 %v1615, %v1614
    %v1629 = vpack.c.b16 %v1617, %v1616
    %v1630 = vpack.c.b16 %v1619, %v1618
    %v1631 = vpack.c.b16 %v1621, %v1620
    %v1632 = vpack.c.b16 %v1623, %v1622
    %v1633 = vpack.c.b16 %v1625, %v1624
    %1642 = vmatprep.subr.bf16.mxu0 0
    %1643 = vmatpush1.bf16.msra.mxu0 %v1626
    %1644 = vmatprep.subr.bf16.mxu0 0
    %1645 = vmatpush1.bf16.msra.mxu0 %v1627
    %1646 = vmatprep.subr.bf16.mxu0 0
    %1647 = vmatpush1.bf16.msra.mxu0 %v1628
    %1648 = vmatprep.subr.bf16.mxu0 0
    %1649 = vmatpush1.bf16.msra.mxu0 %v1629
    %1650 = vmatprep.subr.bf16.mxu0 0
    %1651 = vmatpush1.bf16.msra.mxu0 %v1630
    %1652 = vmatprep.subr.bf16.mxu0 0
    %1653 = vmatpush1.bf16.msra.mxu0 %v1631
    %1654 = vmatprep.subr.bf16.mxu0 0
    %1655 = vmatpush1.bf16.msra.mxu0 %v1632
    %1656 = vmatprep.subr.bf16.mxu0 0
    %1657 = vmatpush1.bf16.msra.mxu0 %v1633
    %1658 = vmatprep.subr.bf16.mxu0 0
    %1659 = vmatpush1.bf16.msra.mxu0 0
    %1660 = vmatprep.subr.bf16.mxu0 0
    %1661 = vmatpush1.bf16.msra.mxu0 0
    %1662 = vmatprep.subr.bf16.mxu0 0
    %1663 = vmatpush1.bf16.msra.mxu0 0
    %1664 = vmatprep.subr.bf16.mxu0 0
    %1665 = vmatpush1.bf16.msra.mxu0 0
    %1666 = vmatprep.subr.bf16.mxu0 0
    %1667 = vmatpush1.bf16.msra.mxu0 0
    %1668 = vmatprep.subr.bf16.mxu0 0
    %1669 = vmatpush1.bf16.msra.mxu0 0
    %1670 = vmatprep.subr.bf16.mxu0 0
    %1671 = vmatpush1.bf16.msra.mxu0 0
    %1672 = vmatprep.subr.bf16.mxu0 0
    %1673 = vmatpush1.bf16.msra.mxu0 0
    %1674 = vmatprep.mubr.bf16.mxu0 0
    %1675 = vmatmul.mubr.bf16.gmra.mrb[0].mxu0 %v1555
    %v1676 = vpop.f32.mrb[0].mxu0
    %v1677 = vadd.f32 %v1592, %v1676
    %v1678 = vpop.f32.mrb[0].mxu0
    %v1679 = vpop.f32.mrb[0].mxu0
    %v1680 = vadd.f32 %v1592, %v1679
    %v1681 = vpop.f32.mrb[0].mxu0
    %1682 = vmatprep.mubr.bf16.mxu0 0
    %1683 = vmatmul.mubr.bf16.gmra.mrb[0].mxu0 %v1556
    %v1684 = vpop.f32.mrb[0].mxu0
    %v1685 = vadd.f32 %v1592, %v1684
    %v1686 = vpop.f32.mrb[0].mxu0
    %v1687 = vpop.f32.mrb[0].mxu0
    %v1688 = vadd.f32 %v1592, %v1687
    %v1689 = vpop.f32.mrb[0].mxu0
    %1690 = vmatprep.mubr.bf16.mxu0 0
    %1691 = vmatmul.mubr.bf16.gmra.mrb[0].mxu0 %v1557
    %v1692 = vpop.f32.mrb[0].mxu0
    %v1693 = vadd.f32 %v1592, %v1692
    %v1694 = vpop.f32.mrb[0].mxu0
    %v1695 = vpop.f32.mrb[0].mxu0
    %v1696 = vadd.f32 %v1592, %v1695
    %v1697 = vpop.f32.mrb[0].mxu0
    %1698 = vmatprep.mubr.bf16.mxu0 0
    %1699 = vmatmul.mubr.bf16.gmra.mrb[0].mxu0 %v1558
    %v1700 = vpop.f32.mrb[0].mxu0
    %v1701 = vadd.f32 %v1592, %v1700
    %v1702 = vpop.f32.mrb[0].mxu0
    %v1703 = vpop.f32.mrb[0].mxu0
    %v1704 = vadd.f32 %v1592, %v1703
    %v1705 = vpop.f32.mrb[0].mxu0
    %1706 = vmatprep.mubr.bf16.mxu0 0
    %1707 = vmatmul.mubr.bf16.gmra.mrb[0].mxu0 %v1559
    %v1708 = vpop.f32.mrb[0].mxu0
    %v1709 = vadd.f32 %v1592, %v1708
    %v1710 = vpop.f32.mrb[0].mxu0
    %v1711 = vpop.f32.mrb[0].mxu0
    %v1712 = vadd.f32 %v1592, %v1711
    %v1713 = vpop.f32.mrb[0].mxu0
    %1714 = vmatprep.mubr.bf16.mxu0 0
    %1715 = vmatmul.mubr.bf16.gmra.mrb[0].mxu0 %v1560
    %v1716 = vpop.f32.mrb[0].mxu0
    %v1717 = vadd.f32 %v1592, %v1716
    %v1718 = vpop.f32.mrb[0].mxu0
    %v1719 = vpop.f32.mrb[0].mxu0
    %v1720 = vadd.f32 %v1592, %v1719
    %v1721 = vpop.f32.mrb[0].mxu0
    %1722 = vmatprep.mubr.bf16.mxu0 0
    %1723 = vmatmul.mubr.bf16.gmra.mrb[0].mxu0 %v1561
    %v1724 = vpop.f32.mrb[0].mxu0
    %v1725 = vadd.f32 %v1592, %v1724
    %v1726 = vpop.f32.mrb[0].mxu0
    %v1727 = vpop.f32.mrb[0].mxu0
    %v1728 = vadd.f32 %v1592, %v1727
    %v1729 = vpop.f32.mrb[0].mxu0
    %1730 = vmatprep.mubr.bf16.mxu0 0
    %1731 = vmatmul.mubr.bf16.gmra.mrb[0].mxu0 %v1562
    %v1732 = vpop.f32.mrb[0].mxu0
    %v1733 = vadd.f32 %v1592, %v1732
    %v1734 = vpop.f32.mrb[0].mxu0
    %v1735 = vpop.f32.mrb[0].mxu0
    %v1736 = vadd.f32 %v1592, %v1735
    %v1737 = vpop.f32.mrb[0].mxu0
    %1738 = vmatprep.mubr.bf16.mxu0 0
    %1739 = vmatmul.mubr.bf16.gmra.mrb[0].mxu0 %v1563
    %v1740 = vpop.f32.mrb[0].mxu0
    %v1741 = vadd.f32 %v1592, %v1740
    %v1742 = vpop.f32.mrb[0].mxu0
    %v1743 = vpop.f32.mrb[0].mxu0
    %v1744 = vadd.f32 %v1592, %v1743
    %v1745 = vpop.f32.mrb[0].mxu0
    %1746 = vmatprep.mubr.bf16.mxu0 0
    %1747 = vmatmul.mubr.bf16.gmra.mrb[0].mxu0 %v1564
    %v1748 = vpop.f32.mrb[0].mxu0
    %v1749 = vadd.f32 %v1592, %v1748
    %v1750 = vpop.f32.mrb[0].mxu0
    %v1751 = vpop.f32.mrb[0].mxu0
    %v1752 = vadd.f32 %v1592, %v1751
    %v1753 = vpop.f32.mrb[0].mxu0
    %1754 = vmatprep.mubr.bf16.mxu0 0
    %1755 = vmatmul.mubr.bf16.gmra.mrb[0].mxu0 %v1565
    %v1756 = vpop.f32.mrb[0].mxu0
    %v1757 = vadd.f32 %v1592, %v1756
    %v1758 = vpop.f32.mrb[0].mxu0
    %v1759 = vpop.f32.mrb[0].mxu0
    %v1760 = vadd.f32 %v1592, %v1759
    %v1761 = vpop.f32.mrb[0].mxu0
    %1762 = vmatprep.mubr.bf16.mxu0 0
    %1763 = vmatmul.mubr.bf16.gmra.mrb[0].mxu0 %v1566
    %v1764 = vpop.f32.mrb[0].mxu0
    %v1765 = vadd.f32 %v1592, %v1764
    %v1766 = vpop.f32.mrb[0].mxu0
    %v1767 = vpop.f32.mrb[0].mxu0
    %v1768 = vadd.f32 %v1592, %v1767
    %v1769 = vpop.f32.mrb[0].mxu0
    %1770 = vmatprep.mubr.bf16.mxu0 0
    %1771 = vmatmul.mubr.bf16.gmra.mrb[0].mxu0 %v1567
    %v1772 = vpop.f32.mrb[0].mxu0
    %v1773 = vadd.f32 %v1592, %v1772
    %v1774 = vpop.f32.mrb[0].mxu0
    %v1775 = vpop.f32.mrb[0].mxu0
    %v1776 = vadd.f32 %v1592, %v1775
    %v1777 = vpop.f32.mrb[0].mxu0
    %1778 = vmatprep.mubr.bf16.mxu0 0
    %1779 = vmatmul.mubr.bf16.gmra.mrb[0].mxu0 %v1568
    %v1780 = vpop.f32.mrb[0].mxu0
    %v1781 = vadd.f32 %v1592, %v1780
    %v1782 = vpop.f32.mrb[0].mxu0
    %v1783 = vpop.f32.mrb[0].mxu0
    %v1784 = vadd.f32 %v1592, %v1783
    %v1785 = vpop.f32.mrb[0].mxu0
    %1786 = vmatprep.mubr.bf16.mxu0 0
    %1787 = vmatmul.mubr.bf16.gmra.mrb[0].mxu0 %v1569
    %v1788 = vpop.f32.mrb[0].mxu0
    %v1789 = vadd.f32 %v1592, %v1788
    %v1790 = vpop.f32.mrb[0].mxu0
    %v1791 = vpop.f32.mrb[0].mxu0
    %v1792 = vadd.f32 %v1592, %v1791
    %v1793 = vpop.f32.mrb[0].mxu0
    %1794 = vmatprep.mubr.bf16.mxu0 0
    %1795 = vmatmul.mubr.bf16.gmra.mrb[0].mxu0 %v1570
    %v1796 = vpop.f32.mrb[0].mxu0
    %v1797 = vadd.f32 %v1592, %v1796
    %v1798 = vpop.f32.mrb[0].mxu0
    %v1799 = vpop.f32.mrb[0].mxu0
    %v1800 = vadd.f32 %v1592, %v1799
    %v1801 = vpop.f32.mrb[0].mxu0
    %1802 = vdwg.mxu0
    %v1803 = vmax.f32 %v1677, 0.0
    %v1804 = vmax.f32 %v1680, 0.0
    %v1805 = vmax.f32 %v1685, 0.0
    %v1806 = vmax.f32 %v1688, 0.0
    %v1807 = vmax.f32 %v1693, 0.0
    %v1808 = vmax.f32 %v1696, 0.0
    %v1809 = vmax.f32 %v1701, 0.0
    %v1810 = vmax.f32 %v1704, 0.0
    %v1811 = vmax.f32 %v1709, 0.0
    %v1812 = vmax.f32 %v1712, 0.0
    %v1813 = vmax.f32 %v1717, 0.0
    %v1814 = vmax.f32 %v1720, 0.0
    %v1815 = vmax.f32 %v1725, 0.0
    %v1816 = vmax.f32 %v1728, 0.0
    %v1817 = vmax.f32 %v1733, 0.0
    %v1818 = vmax.f32 %v1736, 0.0
    %v1819 = vmax.f32 %v1741, 0.0
    %v1820 = vmax.f32 %v1744, 0.0
    %v1821 = vmax.f32 %v1749, 0.0
    %v1822 = vmax.f32 %v1752, 0.0
    %v1823 = vmax.f32 %v1757, 0.0
    %v1824 = vmax.f32 %v1760, 0.0
    %v1825 = vmax.f32 %v1765, 0.0
    %v1826 = vmax.f32 %v1768, 0.0
    %v1827 = vmax.f32 %v1773, 0.0
    %v1828 = vmax.f32 %v1776, 0.0
    %v1829 = vmax.f32 %v1781, 0.0
    %v1830 = vmax.f32 %v1784, 0.0
    %v1831 = vmax.f32 %v1789, 0.0
    %v1832 = vmax.f32 %v1792, 0.0
    %v1833 = vmax.f32 %v1797, 0.0
    %v1834 = vmax.f32 %v1800, 0.0
    %v1835 = vpack.c.bf16 %v1804, %v1803
    %v1836 = vpack.c.bf16 %v1806, %v1805
    %v1837 = vpack.c.bf16 %v1808, %v1807
    %v1838 = vpack.c.bf16 %v1810, %v1809
    %v1839 = vpack.c.bf16 %v1812, %v1811
    %v1840 = vpack.c.bf16 %v1814, %v1813
    %v1841 = vpack.c.bf16 %v1816, %v1815
    %v1842 = vpack.c.bf16 %v1818, %v1817
    %v1843 = vpack.c.bf16 %v1820, %v1819
    %v1844 = vpack.c.bf16 %v1822, %v1821
    %v1845 = vpack.c.bf16 %v1824, %v1823
    %v1846 = vpack.c.bf16 %v1826, %v1825
    %v1847 = vpack.c.bf16 %v1828, %v1827
    %v1848 = vpack.c.bf16 %v1830, %v1829
    %v1849 = vpack.c.bf16 %v1832, %v1831
    %v1850 = vpack.c.bf16 %v1834, %v1833
    %v1851 = vld [vmem:[#allocation11] sm:$0xf]
    %v1852 = vld [vmem:[#allocation11 + $0x4] sm:$0xf]
    %v1853 = vld [vmem:[#allocation11 + $0x8] sm:$0xf]
    %v1854 = vld [vmem:[#allocation11 + $0xc] sm:$0xf]
    %v1855 = vld [vmem:[#allocation11 + $0x10] sm:$0xf]
    %v1856 = vld [vmem:[#allocation11 + $0x14] sm:$0xf]
    %v1857 = vld [vmem:[#allocation11 + $0x18] sm:$0xf]
    %v1858 = vld [vmem:[#allocation11 + $0x1c] sm:$0xf]
    %v1859 = vld [vmem:[#allocation11 + $0x20] sm:$0xf]
    %v1860 = vld [vmem:[#allocation11 + $0x24] sm:$0xf]
    %v1861 = vld [vmem:[#allocation11 + $0x28] sm:$0xf]
    %v1862 = vld [vmem:[#allocation11 + $0x2c] sm:$0xf]
    %v1863 = vld [vmem:[#allocation11 + $0x30] sm:$0xf]
    %v1864 = vld [vmem:[#allocation11 + $0x34] sm:$0xf]
    %v1865 = vld [vmem:[#allocation11 + $0x38] sm:$0xf]
    %v1866 = vld [vmem:[#allocation11 + $0x3c] sm:$0xf]
    %v1867 = vld [vmem:[%s9] sm:$0x1]
    %v1869 = vlaneseq
    %v1870 = vshrl.u32 %v1869, 7
    %v1871 = vsub.s32 0, %v1870
    %v1872 = vrot.slane %v1867, %v1871
    %v1890 = vunpack.c.l.b16 %v1851
    %v1891 = vunpack.c.l.b16 %v1852
    %v1892 = vunpack.c.l.b16 %v1853
    %v1893 = vunpack.c.l.b16 %v1854
    %v1894 = vunpack.c.l.b16 %v1855
    %v1895 = vunpack.c.l.b16 %v1856
    %v1896 = vunpack.c.l.b16 %v1857
    %v1897 = vunpack.c.l.b16 %v1858
    %v1898 = vunpack.c.l.b16 %v1859
    %v1899 = vunpack.c.l.b16 %v1860
    %v1900 = vunpack.c.l.b16 %v1861
    %v1901 = vunpack.c.l.b16 %v1862
    %v1902 = vunpack.c.l.b16 %v1863
    %v1903 = vunpack.c.l.b16 %v1864
    %v1904 = vunpack.c.l.b16 %v1865
    %v1905 = vunpack.c.l.b16 %v1866
    %v1906 = vpack.c.b16 %v1891, %v1890
    %v1907 = vpack.c.b16 %v1893, %v1892
    %v1908 = vpack.c.b16 %v1895, %v1894
    %v1909 = vpack.c.b16 %v1897, %v1896
    %v1910 = vpack.c.b16 %v1899, %v1898
    %v1911 = vpack.c.b16 %v1901, %v1900
    %v1912 = vpack.c.b16 %v1903, %v1902
    %v1913 = vpack.c.b16 %v1905, %v1904
    %1922 = vmatprep.subr.bf16.mxu0 0
    %1923 = vmatpush1.bf16.msra.mxu0 %v1906
    %1924 = vmatprep.subr.bf16.mxu0 0
    %1925 = vmatpush1.bf16.msra.mxu0 %v1907
    %1926 = vmatprep.subr.bf16.mxu0 0
    %1927 = vmatpush1.bf16.msra.mxu0 %v1908
    %1928 = vmatprep.subr.bf16.mxu0 0
    %1929 = vmatpush1.bf16.msra.mxu0 %v1909
    %1930 = vmatprep.subr.bf16.mxu0 0
    %1931 = vmatpush1.bf16.msra.mxu0 %v1910
    %1932 = vmatprep.subr.bf16.mxu0 0
    %1933 = vmatpush1.bf16.msra.mxu0 %v1911
    %1934 = vmatprep.subr.bf16.mxu0 0
    %1935 = vmatpush1.bf16.msra.mxu0 %v1912
    %1936 = vmatprep.subr.bf16.mxu0 0
    %1937 = vmatpush1.bf16.msra.mxu0 %v1913
    %1938 = vmatprep.subr.bf16.mxu0 0
    %1939 = vmatpush1.bf16.msra.mxu0 0
    %1940 = vmatprep.subr.bf16.mxu0 0
    %1941 = vmatpush1.bf16.msra.mxu0 0
    %1942 = vmatprep.subr.bf16.mxu0 0
    %1943 = vmatpush1.bf16.msra.mxu0 0
    %1944 = vmatprep.subr.bf16.mxu0 0
    %1945 = vmatpush1.bf16.msra.mxu0 0
    %1946 = vmatprep.subr.bf16.mxu0 0
    %1947 = vmatpush1.bf16.msra.mxu0 0
    %1948 = vmatprep.subr.bf16.mxu0 0
    %1949 = vmatpush1.bf16.msra.mxu0 0
    %1950 = vmatprep.subr.bf16.mxu0 0
    %1951 = vmatpush1.bf16.msra.mxu0 0
    %1952 = vmatprep.subr.bf16.mxu0 0
    %1953 = vmatpush1.bf16.msra.mxu0 0
    %1954 = vmatprep.mubr.bf16.mxu0 0
    %1955 = vmatmul.mubr.bf16.gmra.mrb[0].mxu0 %v1835
    %v1956 = vpop.f32.mrb[0].mxu0
    %v1957 = vadd.f32 %v1872, %v1956
    %v1958 = vpop.f32.mrb[0].mxu0
    %v1959 = vpop.f32.mrb[0].mxu0
    %v1960 = vadd.f32 %v1872, %v1959
    %v1961 = vpop.f32.mrb[0].mxu0
    %1962 = vmatprep.mubr.bf16.mxu0 0
    %1963 = vmatmul.mubr.bf16.gmra.mrb[0].mxu0 %v1836
    %v1964 = vpop.f32.mrb[0].mxu0
    %v1965 = vadd.f32 %v1872, %v1964
    %v1966 = vpop.f32.mrb[0].mxu0
    %v1967 = vpop.f32.mrb[0].mxu0
    %v1968 = vadd.f32 %v1872, %v1967
    %v1969 = vpop.f32.mrb[0].mxu0
    %1970 = vmatprep.mubr.bf16.mxu0 0
    %1971 = vmatmul.mubr.bf16.gmra.mrb[0].mxu0 %v1837
    %v1972 = vpop.f32.mrb[0].mxu0
    %v1973 = vadd.f32 %v1872, %v1972
    %v1974 = vpop.f32.mrb[0].mxu0
    %v1975 = vpop.f32.mrb[0].mxu0
    %v1976 = vadd.f32 %v1872, %v1975
    %v1977 = vpop.f32.mrb[0].mxu0
    %1978 = vmatprep.mubr.bf16.mxu0 0
    %1979 = vmatmul.mubr.bf16.gmra.mrb[0].mxu0 %v1838
    %v1980 = vpop.f32.mrb[0].mxu0
    %v1981 = vadd.f32 %v1872, %v1980
    %v1982 = vpop.f32.mrb[0].mxu0
    %v1983 = vpop.f32.mrb[0].mxu0
    %v1984 = vadd.f32 %v1872, %v1983
    %v1985 = vpop.f32.mrb[0].mxu0
    %1986 = vmatprep.mubr.bf16.mxu0 0
    %1987 = vmatmul.mubr.bf16.gmra.mrb[0].mxu0 %v1839
    %v1988 = vpop.f32.mrb[0].mxu0
    %v1989 = vadd.f32 %v1872, %v1988
    %v1990 = vpop.f32.mrb[0].mxu0
    %v1991 = vpop.f32.mrb[0].mxu0
    %v1992 = vadd.f32 %v1872, %v1991
    %v1993 = vpop.f32.mrb[0].mxu0
    %1994 = vmatprep.mubr.bf16.mxu0 0
    %1995 = vmatmul.mubr.bf16.gmra.mrb[0].mxu0 %v1840
    %v1996 = vpop.f32.mrb[0].mxu0
    %v1997 = vadd.f32 %v1872, %v1996
    %v1998 = vpop.f32.mrb[0].mxu0
    %v1999 = vpop.f32.mrb[0].mxu0
    %v2000 = vadd.f32 %v1872, %v1999
    %v2001 = vpop.f32.mrb[0].mxu0
    %2002 = vmatprep.mubr.bf16.mxu0 0
    %2003 = vmatmul.mubr.bf16.gmra.mrb[0].mxu0 %v1841
    %v2004 = vpop.f32.mrb[0].mxu0
    %v2005 = vadd.f32 %v1872, %v2004
    %v2006 = vpop.f32.mrb[0].mxu0
    %v2007 = vpop.f32.mrb[0].mxu0
    %v2008 = vadd.f32 %v1872, %v2007
    %v2009 = vpop.f32.mrb[0].mxu0
    %2010 = vmatprep.mubr.bf16.mxu0 0
    %2011 = vmatmul.mubr.bf16.gmra.mrb[0].mxu0 %v1842
    %v2012 = vpop.f32.mrb[0].mxu0
    %v2013 = vadd.f32 %v1872, %v2012
    %v2014 = vpop.f32.mrb[0].mxu0
    %v2015 = vpop.f32.mrb[0].mxu0
    %v2016 = vadd.f32 %v1872, %v2015
    %v2017 = vpop.f32.mrb[0].mxu0
    %2018 = vmatprep.mubr.bf16.mxu0 0
    %2019 = vmatmul.mubr.bf16.gmra.mrb[0].mxu0 %v1843
    %v2020 = vpop.f32.mrb[0].mxu0
    %v2021 = vadd.f32 %v1872, %v2020
    %v2022 = vpop.f32.mrb[0].mxu0
    %v2023 = vpop.f32.mrb[0].mxu0
    %v2024 = vadd.f32 %v1872, %v2023
    %v2025 = vpop.f32.mrb[0].mxu0
    %2026 = vmatprep.mubr.bf16.mxu0 0
    %2027 = vmatmul.mubr.bf16.gmra.mrb[0].mxu0 %v1844
    %v2028 = vpop.f32.mrb[0].mxu0
    %v2029 = vadd.f32 %v1872, %v2028
    %v2030 = vpop.f32.mrb[0].mxu0
    %v2031 = vpop.f32.mrb[0].mxu0
    %v2032 = vadd.f32 %v1872, %v2031
    %v2033 = vpop.f32.mrb[0].mxu0
    %2034 = vmatprep.mubr.bf16.mxu0 0
    %2035 = vmatmul.mubr.bf16.gmra.mrb[0].mxu0 %v1845
    %v2036 = vpop.f32.mrb[0].mxu0
    %v2037 = vadd.f32 %v1872, %v2036
    %v2038 = vpop.f32.mrb[0].mxu0
    %v2039 = vpop.f32.mrb[0].mxu0
    %v2040 = vadd.f32 %v1872, %v2039
    %v2041 = vpop.f32.mrb[0].mxu0
    %2042 = vmatprep.mubr.bf16.mxu0 0
    %2043 = vmatmul.mubr.bf16.gmra.mrb[0].mxu0 %v1846
    %v2044 = vpop.f32.mrb[0].mxu0
    %v2045 = vadd.f32 %v1872, %v2044
    %v2046 = vpop.f32.mrb[0].mxu0
    %v2047 = vpop.f32.mrb[0].mxu0
    %v2048 = vadd.f32 %v1872, %v2047
    %v2049 = vpop.f32.mrb[0].mxu0
    %2050 = vmatprep.mubr.bf16.mxu0 0
    %2051 = vmatmul.mubr.bf16.gmra.mrb[0].mxu0 %v1847
    %v2052 = vpop.f32.mrb[0].mxu0
    %v2053 = vadd.f32 %v1872, %v2052
    %v2054 = vpop.f32.mrb[0].mxu0
    %v2055 = vpop.f32.mrb[0].mxu0
    %v2056 = vadd.f32 %v1872, %v2055
    %v2057 = vpop.f32.mrb[0].mxu0
    %2058 = vmatprep.mubr.bf16.mxu0 0
    %2059 = vmatmul.mubr.bf16.gmra.mrb[0].mxu0 %v1848
    %v2060 = vpop.f32.mrb[0].mxu0
    %v2061 = vadd.f32 %v1872, %v2060
    %v2062 = vpop.f32.mrb[0].mxu0
    %v2063 = vpop.f32.mrb[0].mxu0
    %v2064 = vadd.f32 %v1872, %v2063
    %v2065 = vpop.f32.mrb[0].mxu0
    %2066 = vmatprep.mubr.bf16.mxu0 0
    %2067 = vmatmul.mubr.bf16.gmra.mrb[0].mxu0 %v1849
    %v2068 = vpop.f32.mrb[0].mxu0
    %v2069 = vadd.f32 %v1872, %v2068
    %v2070 = vpop.f32.mrb[0].mxu0
    %v2071 = vpop.f32.mrb[0].mxu0
    %v2072 = vadd.f32 %v1872, %v2071
    %v2073 = vpop.f32.mrb[0].mxu0
    %2074 = vmatprep.mubr.bf16.mxu0 0
    %2075 = vmatmul.mubr.bf16.gmra.mrb[0].mxu0 %v1850
    %v2076 = vpop.f32.mrb[0].mxu0
    %v2077 = vadd.f32 %v1872, %v2076
    %v2078 = vpop.f32.mrb[0].mxu0
    %v2079 = vpop.f32.mrb[0].mxu0
    %v2080 = vadd.f32 %v1872, %v2079
    %v2081 = vpop.f32.mrb[0].mxu0
    %2082 = vdwg.mxu0
    %v2083 = vmax.f32 %v1957, 0.0
    %v2084 = vmax.f32 %v1960, 0.0
    %v2085 = vmax.f32 %v1965, 0.0
    %v2086 = vmax.f32 %v1968, 0.0
    %v2087 = vmax.f32 %v1973, 0.0
    %v2088 = vmax.f32 %v1976, 0.0
    %v2089 = vmax.f32 %v1981, 0.0
    %v2090 = vmax.f32 %v1984, 0.0
    %v2091 = vmax.f32 %v1989, 0.0
    %v2092 = vmax.f32 %v1992, 0.0
    %v2093 = vmax.f32 %v1997, 0.0
    %v2094 = vmax.f32 %v2000, 0.0
    %v2095 = vmax.f32 %v2005, 0.0
    %v2096 = vmax.f32 %v2008, 0.0
    %v2097 = vmax.f32 %v2013, 0.0
    %v2098 = vmax.f32 %v2016, 0.0
    %v2099 = vmax.f32 %v2021, 0.0
    %v2100 = vmax.f32 %v2024, 0.0
    %v2101 = vmax.f32 %v2029, 0.0
    %v2102 = vmax.f32 %v2032, 0.0
    %v2103 = vmax.f32 %v2037, 0.0
    %v2104 = vmax.f32 %v2040, 0.0
    %v2105 = vmax.f32 %v2045, 0.0
    %v2106 = vmax.f32 %v2048, 0.0
    %v2107 = vmax.f32 %v2053, 0.0
    %v2108 = vmax.f32 %v2056, 0.0
    %v2109 = vmax.f32 %v2061, 0.0
    %v2110 = vmax.f32 %v2064, 0.0
    %v2111 = vmax.f32 %v2069, 0.0
    %v2112 = vmax.f32 %v2072, 0.0
    %v2113 = vmax.f32 %v2077, 0.0
    %v2114 = vmax.f32 %v2080, 0.0
    %v2115 = vadd.f32 %v2083, %v2084
    %v2116 = vadd.f32 %v2115, %v2085
    %v2117 = vadd.f32 %v2116, %v2086
    %v2118 = vadd.f32 %v2117, %v2087
    %v2119 = vadd.f32 %v2118, %v2088
    %v2120 = vadd.f32 %v2119, %v2089
    %v2121 = vadd.f32 %v2120, %v2090
    %v2122 = vadd.f32 %v2121, %v2091
    %v2123 = vadd.f32 %v2122, %v2092
    %v2124 = vadd.f32 %v2123, %v2093
    %v2125 = vadd.f32 %v2124, %v2094
    %v2126 = vadd.f32 %v2125, %v2095
    %v2127 = vadd.f32 %v2126, %v2096
    %v2128 = vadd.f32 %v2127, %v2097
    %v2129 = vadd.f32 %v2128, %v2098
    %v2130 = vadd.f32 %v2129, %v2099
    %v2131 = vadd.f32 %v2130, %v2100
    %v2132 = vadd.f32 %v2131, %v2101
    %v2133 = vadd.f32 %v2132, %v2102
    %v2134 = vadd.f32 %v2133, %v2103
    %v2135 = vadd.f32 %v2134, %v2104
    %v2136 = vadd.f32 %v2135, %v2105
    %v2137 = vadd.f32 %v2136, %v2106
    %v2138 = vadd.f32 %v2137, %v2107
    %v2139 = vadd.f32 %v2138, %v2108
    %v2140 = vadd.f32 %v2139, %v2109
    %v2141 = vadd.f32 %v2140, %v2110
    %v2142 = vadd.f32 %v2141, %v2111
    %v2143 = vadd.f32 %v2142, %v2112
    %v2144 = vadd.f32 %v2143, %v2113
    %v2145 = vadd.f32 %v2144, %v2114
    %v2146 = vrot.slane %v2145, 4
    %v2147 = vadd.f32 %v2145, %v2146
    %v2148 = vrot.slane %v2147, 2
    %v2149 = vadd.f32 %v2147, %v2148
    %v2150 = vrot.slane %v2149, 1
    %v2151 = vadd.f32 %v2149, %v2150
    %v2152 = vmul.f32 %v2151, %v1096
    %v2153 = vsub.f32 %v2083, %v2152
    %v2154 = vsub.f32 %v2084, %v2152
    %v2155 = vsub.f32 %v2085, %v2152
    %v2156 = vsub.f32 %v2086, %v2152
    %v2157 = vsub.f32 %v2087, %v2152
    %v2158 = vsub.f32 %v2088, %v2152
    %v2159 = vsub.f32 %v2089, %v2152
    %v2160 = vsub.f32 %v2090, %v2152
    %v2161 = vsub.f32 %v2091, %v2152
    %v2162 = vsub.f32 %v2092, %v2152
    %v2163 = vsub.f32 %v2093, %v2152
    %v2164 = vsub.f32 %v2094, %v2152
    %v2165 = vsub.f32 %v2095, %v2152
    %v2166 = vsub.f32 %v2096, %v2152
    %v2167 = vsub.f32 %v2097, %v2152
    %v2168 = vsub.f32 %v2098, %v2152
    %v2169 = vsub.f32 %v2099, %v2152
    %v2170 = vsub.f32 %v2100, %v2152
    %v2171 = vsub.f32 %v2101, %v2152
    %v2172 = vsub.f32 %v2102, %v2152
    %v2173 = vsub.f32 %v2103, %v2152
    %v2174 = vsub.f32 %v2104, %v2152
    %v2175 = vsub.f32 %v2105, %v2152
    %v2176 = vsub.f32 %v2106, %v2152
    %v2177 = vsub.f32 %v2107, %v2152
    %v2178 = vsub.f32 %v2108, %v2152
    %v2179 = vsub.f32 %v2109, %v2152
    %v2180 = vsub.f32 %v2110, %v2152
    %v2181 = vsub.f32 %v2111, %v2152
    %v2182 = vsub.f32 %v2112, %v2152
    %v2183 = vsub.f32 %v2113, %v2152
    %v2184 = vsub.f32 %v2114, %v2152
    %v2185 = vmul.f32 %v2153, %v2153
    %v2186 = vmul.f32 %v2154, %v2154
    %v2187 = vmul.f32 %v2155, %v2155
    %v2188 = vmul.f32 %v2156, %v2156
    %v2189 = vmul.f32 %v2157, %v2157
    %v2190 = vmul.f32 %v2158, %v2158
    %v2191 = vmul.f32 %v2159, %v2159
    %v2192 = vmul.f32 %v2160, %v2160
    %v2193 = vmul.f32 %v2161, %v2161
    %v2194 = vmul.f32 %v2162, %v2162
    %v2195 = vmul.f32 %v2163, %v2163
    %v2196 = vmul.f32 %v2164, %v2164
    %v2197 = vmul.f32 %v2165, %v2165
    %v2198 = vmul.f32 %v2166, %v2166
    %v2199 = vmul.f32 %v2167, %v2167
    %v2200 = vmul.f32 %v2168, %v2168
    %v2201 = vmul.f32 %v2169, %v2169
    %v2202 = vmul.f32 %v2170, %v2170
    %v2203 = vmul.f32 %v2171, %v2171
    %v2204 = vmul.f32 %v2172, %v2172
    %v2205 = vmul.f32 %v2173, %v2173
    %v2206 = vmul.f32 %v2174, %v2174
    %v2207 = vmul.f32 %v2175, %v2175
    %v2208 = vmul.f32 %v2176, %v2176
    %v2209 = vmul.f32 %v2177, %v2177
    %v2210 = vmul.f32 %v2178, %v2178
    %v2211 = vmul.f32 %v2179, %v2179
    %v2212 = vmul.f32 %v2180, %v2180
    %v2213 = vmul.f32 %v2181, %v2181
    %v2214 = vmul.f32 %v2182, %v2182
    %v2215 = vmul.f32 %v2183, %v2183
    %v2216 = vmul.f32 %v2184, %v2184
    %v2217 = vadd.f32 %v2185, %v2186
    %v2218 = vadd.f32 %v2217, %v2187
    %v2219 = vadd.f32 %v2218, %v2188
    %v2220 = vadd.f32 %v2219, %v2189
    %v2221 = vadd.f32 %v2220, %v2190
    %v2222 = vadd.f32 %v2221, %v2191
    %v2223 = vadd.f32 %v2222, %v2192
    %v2224 = vadd.f32 %v2223, %v2193
    %v2225 = vadd.f32 %v2224, %v2194
    %v2226 = vadd.f32 %v2225, %v2195
    %v2227 = vadd.f32 %v2226, %v2196
    %v2228 = vadd.f32 %v2227, %v2197
    %v2229 = vadd.f32 %v2228, %v2198
    %v2230 = vadd.f32 %v2229, %v2199
    %v2231 = vadd.f32 %v2230, %v2200
    %v2232 = vadd.f32 %v2231, %v2201
    %v2233 = vadd.f32 %v2232, %v2202
    %v2234 = vadd.f32 %v2233, %v2203
    %v2235 = vadd.f32 %v2234, %v2204
    %v2236 = vadd.f32 %v2235, %v2205
    %v2237 = vadd.f32 %v2236, %v2206
    %v2238 = vadd.f32 %v2237, %v2207
    %v2239 = vadd.f32 %v2238, %v2208
    %v2240 = vadd.f32 %v2239, %v2209
    %v2241 = vadd.f32 %v2240, %v2210
    %v2242 = vadd.f32 %v2241, %v2211
    %v2243 = vadd.f32 %v2242, %v2212
    %v2244 = vadd.f32 %v2243, %v2213
    %v2245 = vadd.f32 %v2244, %v2214
    %v2246 = vadd.f32 %v2245, %v2215
    %v2247 = vadd.f32 %v2246, %v2216
    %v2248 = vrot.slane %v2247, 4
    %v2249 = vadd.f32 %v2247, %v2248
    %v2250 = vrot.slane %v2249, 2
    %v2251 = vadd.f32 %v2249, %v2250
    %v2252 = vrot.slane %v2251, 1
    %v2253 = vadd.f32 %v2251, %v2252
    %v2254 = vmul.f32 %v2253, %v1096
    %v2255 = vadd.f32 %v2254, 1e-05
    %v2256 = vrsqrt.pop %v2255
    %v2257 = vmul.f32 %v2153, %v2256
    %v2258 = vmul.f32 %v2154, %v2256
    %v2259 = vmul.f32 %v2155, %v2256
    %v2260 = vmul.f32 %v2156, %v2256
    %v2261 = vmul.f32 %v2157, %v2256
    %v2262 = vmul.f32 %v2158, %v2256
    %v2263 = vmul.f32 %v2159, %v2256
    %v2264 = vmul.f32 %v2160, %v2256
    %v2265 = vmul.f32 %v2161, %v2256
    %v2266 = vmul.f32 %v2162, %v2256
    %v2267 = vmul.f32 %v2163, %v2256
    %v2268 = vmul.f32 %v2164, %v2256
    %v2269 = vmul.f32 %v2165, %v2256
    %v2270 = vmul.f32 %v2166, %v2256
    %v2271 = vmul.f32 %v2167, %v2256
    %v2272 = vmul.f32 %v2168, %v2256
    %v2273 = vmul.f32 %v2169, %v2256
    %v2274 = vmul.f32 %v2170, %v2256
    %v2275 = vmul.f32 %v2171, %v2256
    %v2276 = vmul.f32 %v2172, %v2256
    %v2277 = vmul.f32 %v2173, %v2256
    %v2278 = vmul.f32 %v2174, %v2256
    %v2279 = vmul.f32 %v2175, %v2256
    %v2280 = vmul.f32 %v2176, %v2256
    %v2281 = vmul.f32 %v2177, %v2256
    %v2282 = vmul.f32 %v2178, %v2256
    %v2283 = vmul.f32 %v2179, %v2256
    %v2284 = vmul.f32 %v2180, %v2256
    %v2285 = vmul.f32 %v2181, %v2256
    %v2286 = vmul.f32 %v2182, %v2256
    %v2287 = vmul.f32 %v2183, %v2256
    %v2288 = vmul.f32 %v2184, %v2256
    %v2289 = vpack.c.bf16 %v2258, %v2257
    %v2290 = vpack.c.bf16 %v2260, %v2259
    %v2291 = vpack.c.bf16 %v2262, %v2261
    %v2292 = vpack.c.bf16 %v2264, %v2263
    %v2293 = vpack.c.bf16 %v2266, %v2265
    %v2294 = vpack.c.bf16 %v2268, %v2267
    %v2295 = vpack.c.bf16 %v2270, %v2269
    %v2296 = vpack.c.bf16 %v2272, %v2271
    %v2297 = vpack.c.bf16 %v2274, %v2273
    %v2298 = vpack.c.bf16 %v2276, %v2275
    %v2299 = vpack.c.bf16 %v2278, %v2277
    %v2300 = vpack.c.bf16 %v2280, %v2279
    %v2301 = vpack.c.bf16 %v2282, %v2281
    %v2302 = vpack.c.bf16 %v2284, %v2283
    %v2303 = vpack.c.bf16 %v2286, %v2285
    %v2304 = vpack.c.bf16 %v2288, %v2287
    %v2321 = vunpack.c.l.b16 %v2289
    %v2322 = vunpack.c.h.b16 %v2289
    %v2323 = vunpack.c.l.b16 %v2290
    %v2324 = vunpack.c.h.b16 %v2290
    %v2325 = vunpack.c.l.b16 %v2291
    %v2326 = vunpack.c.h.b16 %v2291
    %v2327 = vunpack.c.l.b16 %v2292
    %v2328 = vunpack.c.h.b16 %v2292
    %v2329 = vunpack.c.l.b16 %v2293
    %v2330 = vunpack.c.h.b16 %v2293
    %v2331 = vunpack.c.l.b16 %v2294
    %v2332 = vunpack.c.h.b16 %v2294
    %v2333 = vunpack.c.l.b16 %v2295
    %v2334 = vunpack.c.h.b16 %v2295
    %v2335 = vunpack.c.l.b16 %v2296
    %v2336 = vunpack.c.h.b16 %v2296
    %v2337 = vunpack.c.l.b16 %v2297
    %v2338 = vunpack.c.h.b16 %v2297
    %v2339 = vunpack.c.l.b16 %v2298
    %v2340 = vunpack.c.h.b16 %v2298
    %v2341 = vunpack.c.l.b16 %v2299
    %v2342 = vunpack.c.h.b16 %v2299
    %v2343 = vunpack.c.l.b16 %v2300
    %v2344 = vunpack.c.h.b16 %v2300
    %v2345 = vunpack.c.l.b16 %v2301
    %v2346 = vunpack.c.h.b16 %v2301
    %v2347 = vunpack.c.l.b16 %v2302
    %v2348 = vunpack.c.h.b16 %v2302
    %v2349 = vunpack.c.l.b16 %v2303
    %v2350 = vunpack.c.h.b16 %v2303
    %v2351 = vunpack.c.l.b16 %v2304
    %v2352 = vunpack.c.h.b16 %v2304
    %v2353 = vpack.c.b16 %v2321, %v2321
    %v2354 = vpack.c.b16 %v2322, %v2322
    %v2355 = vpack.c.b16 %v2323, %v2323
    %v2356 = vpack.c.b16 %v2324, %v2324
    %v2357 = vpack.c.b16 %v2325, %v2325
    %v2358 = vpack.c.b16 %v2326, %v2326
    %v2359 = vpack.c.b16 %v2327, %v2327
    %v2360 = vpack.c.b16 %v2328, %v2328
    %v2361 = vpack.c.b16 %v2329, %v2329
    %v2362 = vpack.c.b16 %v2330, %v2330
    %v2363 = vpack.c.b16 %v2331, %v2331
    %v2364 = vpack.c.b16 %v2332, %v2332
    %v2365 = vpack.c.b16 %v2333, %v2333
    %v2366 = vpack.c.b16 %v2334, %v2334
    %v2367 = vpack.c.b16 %v2335, %v2335
    %v2368 = vpack.c.b16 %v2336, %v2336
    %v2369 = vpack.c.b16 %v2337, %v2337
    %v2370 = vpack.c.b16 %v2338, %v2338
    %v2371 = vpack.c.b16 %v2339, %v2339
    %v2372 = vpack.c.b16 %v2340, %v2340
    %v2373 = vpack.c.b16 %v2341, %v2341
    %v2374 = vpack.c.b16 %v2342, %v2342
    %v2375 = vpack.c.b16 %v2343, %v2343
    %v2376 = vpack.c.b16 %v2344, %v2344
    %v2377 = vpack.c.b16 %v2345, %v2345
    %v2378 = vpack.c.b16 %v2346, %v2346
    %v2379 = vpack.c.b16 %v2347, %v2347
    %v2380 = vpack.c.b16 %v2348, %v2348
    %v2381 = vpack.c.b16 %v2349, %v2349
    %v2382 = vpack.c.b16 %v2350, %v2350
    %v2383 = vpack.c.b16 %v2351, %v2351
    %v2384 = vpack.c.b16 %v2352, %v2352
    %2417 = vst [vmem:[#allocation17] sm:$0xf] %v2353
    %2418 = vst [vmem:[#allocation17 + $0x4] sm:$0xf] %v2354
    %2419 = vst [vmem:[#allocation17 + $0x8] sm:$0xf] %v2355
    %2420 = vst [vmem:[#allocation17 + $0xc] sm:$0xf] %v2356
    %2421 = vst [vmem:[#allocation17 + $0x10] sm:$0xf] %v2357
    %2422 = vst [vmem:[#allocation17 + $0x14] sm:$0xf] %v2358
    %2423 = vst [vmem:[#allocation17 + $0x18] sm:$0xf] %v2359
    %2424 = vst [vmem:[#allocation17 + $0x1c] sm:$0xf] %v2360
    %2425 = vst [vmem:[#allocation17 + $0x20] sm:$0xf] %v2361
    %2426 = vst [vmem:[#allocation17 + $0x24] sm:$0xf] %v2362
    %2427 = vst [vmem:[#allocation17 + $0x28] sm:$0xf] %v2363
    %2428 = vst [vmem:[#allocation17 + $0x2c] sm:$0xf] %v2364
    %2429 = vst [vmem:[#allocation17 + $0x30] sm:$0xf] %v2365
    %2430 = vst [vmem:[#allocation17 + $0x34] sm:$0xf] %v2366
    %2431 = vst [vmem:[#allocation17 + $0x38] sm:$0xf] %v2367
    %2432 = vst [vmem:[#allocation17 + $0x3c] sm:$0xf] %v2368
    %2433 = vst [vmem:[#allocation17 + $0x40] sm:$0xf] %v2369
    %2434 = vst [vmem:[#allocation17 + $0x44] sm:$0xf] %v2370
    %2435 = vst [vmem:[#allocation17 + $0x48] sm:$0xf] %v2371
    %2436 = vst [vmem:[#allocation17 + $0x4c] sm:$0xf] %v2372
    %2437 = vst [vmem:[#allocation17 + $0x50] sm:$0xf] %v2373
    %2438 = vst [vmem:[#allocation17 + $0x54] sm:$0xf] %v2374
    %2439 = vst [vmem:[#allocation17 + $0x58] sm:$0xf] %v2375
    %2440 = vst [vmem:[#allocation17 + $0x5c] sm:$0xf] %v2376
    %2441 = vst [vmem:[#allocation17 + $0x60] sm:$0xf] %v2377
    %2442 = vst [vmem:[#allocation17 + $0x64] sm:$0xf] %v2378
    %2443 = vst [vmem:[#allocation17 + $0x68] sm:$0xf] %v2379
    %2444 = vst [vmem:[#allocation17 + $0x6c] sm:$0xf] %v2380
    %2445 = vst [vmem:[#allocation17 + $0x70] sm:$0xf] %v2381
    %2446 = vst [vmem:[#allocation17 + $0x74] sm:$0xf] %v2382
    %2447 = vst [vmem:[#allocation17 + $0x78] sm:$0xf] %v2383
    %2448 = vst [vmem:[#allocation17 + $0x7c] sm:$0xf] %v2384
    %2449 = vmatprep.subr.bf16.mxu0 0
    %2450 = vmatpush1.bf16.msra.mxu0 %v2289
    %2451 = vmatprep.subr.bf16.mxu0 0
    %2452 = vmatpush1.bf16.msra.mxu0 %v2290
    %2453 = vmatprep.subr.bf16.mxu0 0
    %2454 = vmatpush1.bf16.msra.mxu0 %v2291
    %2455 = vmatprep.subr.bf16.mxu0 0
    %2456 = vmatpush1.bf16.msra.mxu0 %v2292
    %2457 = vmatprep.subr.bf16.mxu0 0
    %2458 = vmatpush1.bf16.msra.mxu0 %v2293
    %2459 = vmatprep.subr.bf16.mxu0 0
    %2460 = vmatpush1.bf16.msra.mxu0 %v2294
    %2461 = vmatprep.subr.bf16.mxu0 0
    %2462 = vmatpush1.bf16.msra.mxu0 %v2295
    %2463 = vmatprep.subr.bf16.mxu0 0
    %2464 = vmatpush1.bf16.msra.mxu0 %v2296
    %2465 = vmatprep.subr.bf16.mxu0 0
    %2466 = vmatpush1.bf16.msra.mxu0 %v2297
    %2467 = vmatprep.subr.bf16.mxu0 0
    %2468 = vmatpush1.bf16.msra.mxu0 %v2298
    %2469 = vmatprep.subr.bf16.mxu0 0
    %2470 = vmatpush1.bf16.msra.mxu0 %v2299
    %2471 = vmatprep.subr.bf16.mxu0 0
    %2472 = vmatpush1.bf16.msra.mxu0 %v2300
    %2473 = vmatprep.subr.bf16.mxu0 0
    %2474 = vmatpush1.bf16.msra.mxu0 %v2301
    %2475 = vmatprep.subr.bf16.mxu0 0
    %2476 = vmatpush1.bf16.msra.mxu0 %v2302
    %2477 = vmatprep.subr.bf16.mxu0 0
    %2478 = vmatpush1.bf16.msra.mxu0 %v2303
    %2479 = vmatprep.subr.bf16.mxu0 0
    %2480 = vmatpush1.bf16.msra.mxu0 %v2304
    %2481 = vmatprep.mubr.bf16.mxu0 %v179
    %2482 = vmatmul.mubr.bf16.gmra.mrb[0].mxu0 %v178
    %v2483 = vpop.f32.mrb[0].mxu0
    %v2484 = vadd.f32 0.0, %v2483
    %v2485 = vpop.f32.mrb[0].mxu0
    %v2486 = vpop.f32.mrb[0].mxu0
    %v2487 = vadd.f32 0.0, %v2486
    %v2488 = vpop.f32.mrb[0].mxu0
    %2489 = vmatprep.mubr.bf16.mxu0 %v181
    %2490 = vmatmul.mubr.bf16.gmra.mrb[0].mxu0 %v180
    %v2491 = vpop.f32.mrb[0].mxu0
    %v2492 = vadd.f32 0.0, %v2491
    %v2493 = vpop.f32.mrb[0].mxu0
    %v2494 = vpop.f32.mrb[0].mxu0
    %v2495 = vadd.f32 0.0, %v2494
    %v2496 = vpop.f32.mrb[0].mxu0
    %2497 = vmatprep.mubr.bf16.mxu0 %v183
    %2498 = vmatmul.mubr.bf16.gmra.mrb[0].mxu0 %v182
    %v2499 = vpop.f32.mrb[0].mxu0
    %v2500 = vadd.f32 0.0, %v2499
    %v2501 = vpop.f32.mrb[0].mxu0
    %v2502 = vpop.f32.mrb[0].mxu0
    %v2503 = vadd.f32 0.0, %v2502
    %v2504 = vpop.f32.mrb[0].mxu0
    %2505 = vmatprep.mubr.bf16.mxu0 %v185
    %2506 = vmatmul.mubr.bf16.gmra.mrb[0].mxu0 %v184
    %v2507 = vpop.f32.mrb[0].mxu0
    %v2508 = vadd.f32 0.0, %v2507
    %v2509 = vpop.f32.mrb[0].mxu0
    %v2510 = vpop.f32.mrb[0].mxu0
    %v2511 = vadd.f32 0.0, %v2510
    %v2512 = vpop.f32.mrb[0].mxu0
    %2513 = vmatprep.mubr.bf16.mxu0 %v187
    %2514 = vmatmul.mubr.bf16.gmra.mrb[0].mxu0 %v186
    %v2515 = vpop.f32.mrb[0].mxu0
    %v2516 = vadd.f32 0.0, %v2515
    %v2517 = vpop.f32.mrb[0].mxu0
    %v2518 = vpop.f32.mrb[0].mxu0
    %v2519 = vadd.f32 0.0, %v2518
    %v2520 = vpop.f32.mrb[0].mxu0
    %2521 = vmatprep.mubr.bf16.mxu0 %v189
    %2522 = vmatmul.mubr.bf16.gmra.mrb[0].mxu0 %v188
    %v2523 = vpop.f32.mrb[0].mxu0
    %v2524 = vadd.f32 0.0, %v2523
    %v2525 = vpop.f32.mrb[0].mxu0
    %v2526 = vpop.f32.mrb[0].mxu0
    %v2527 = vadd.f32 0.0, %v2526
    %v2528 = vpop.f32.mrb[0].mxu0
    %2529 = vmatprep.mubr.bf16.mxu0 %v191
    %2530 = vmatmul.mubr.bf16.gmra.mrb[0].mxu0 %v190
    %v2531 = vpop.f32.mrb[0].mxu0
    %v2532 = vadd.f32 0.0, %v2531
    %v2533 = vpop.f32.mrb[0].mxu0
    %v2534 = vpop.f32.mrb[0].mxu0
    %v2535 = vadd.f32 0.0, %v2534
    %v2536 = vpop.f32.mrb[0].mxu0
    %2537 = vmatprep.mubr.bf16.mxu0 %v193
    %2538 = vmatmul.mubr.bf16.gmra.mrb[0].mxu0 %v192
    %v2539 = vpop.f32.mrb[0].mxu0
    %v2540 = vadd.f32 0.0, %v2539
    %v2541 = vpop.f32.mrb[0].mxu0
    %v2542 = vpop.f32.mrb[0].mxu0
    %v2543 = vadd.f32 0.0, %v2542
    %v2544 = vpop.f32.mrb[0].mxu0
    %2545 = vmatprep.mubr.bf16.mxu0 %v195
    %2546 = vmatmul.mubr.bf16.gmra.mrb[0].mxu0 %v194
    %v2547 = vpop.f32.mrb[0].mxu0
    %v2548 = vadd.f32 0.0, %v2547
    %v2549 = vpop.f32.mrb[0].mxu0
    %v2550 = vpop.f32.mrb[0].mxu0
    %v2551 = vadd.f32 0.0, %v2550
    %v2552 = vpop.f32.mrb[0].mxu0
    %2553 = vmatprep.mubr.bf16.mxu0 %v197
    %2554 = vmatmul.mubr.bf16.gmra.mrb[0].mxu0 %v196
    %v2555 = vpop.f32.mrb[0].mxu0
    %v2556 = vadd.f32 0.0, %v2555
    %v2557 = vpop.f32.mrb[0].mxu0
    %v2558 = vpop.f32.mrb[0].mxu0
    %v2559 = vadd.f32 0.0, %v2558
    %v2560 = vpop.f32.mrb[0].mxu0
    %2561 = vmatprep.mubr.bf16.mxu0 %v199
    %2562 = vmatmul.mubr.bf16.gmra.mrb[0].mxu0 %v198
    %v2563 = vpop.f32.mrb[0].mxu0
    %v2564 = vadd.f32 0.0, %v2563
    %v2565 = vpop.f32.mrb[0].mxu0
    %v2566 = vpop.f32.mrb[0].mxu0
    %v2567 = vadd.f32 0.0, %v2566
    %v2568 = vpop.f32.mrb[0].mxu0
    %2569 = vmatprep.mubr.bf16.mxu0 %v201
    %2570 = vmatmul.mubr.bf16.gmra.mrb[0].mxu0 %v200
    %v2571 = vpop.f32.mrb[0].mxu0
    %v2572 = vadd.f32 0.0, %v2571
    %v2573 = vpop.f32.mrb[0].mxu0
    %v2574 = vpop.f32.mrb[0].mxu0
    %v2575 = vadd.f32 0.0, %v2574
    %v2576 = vpop.f32.mrb[0].mxu0
    %2577 = vmatprep.mubr.bf16.mxu0 %v203
    %2578 = vmatmul.mubr.bf16.gmra.mrb[0].mxu0 %v202
    %v2579 = vpop.f32.mrb[0].mxu0
    %v2580 = vadd.f32 0.0, %v2579
    %v2581 = vpop.f32.mrb[0].mxu0
    %v2582 = vpop.f32.mrb[0].mxu0
    %v2583 = vadd.f32 0.0, %v2582
    %v2584 = vpop.f32.mrb[0].mxu0
    %2585 = vmatprep.mubr.bf16.mxu0 %v205
    %2586 = vmatmul.mubr.bf16.gmra.mrb[0].mxu0 %v204
    %v2587 = vpop.f32.mrb[0].mxu0
    %v2588 = vadd.f32 0.0, %v2587
    %v2589 = vpop.f32.mrb[0].mxu0
    %v2590 = vpop.f32.mrb[0].mxu0
    %v2591 = vadd.f32 0.0, %v2590
    %v2592 = vpop.f32.mrb[0].mxu0
    %2593 = vmatprep.mubr.bf16.mxu0 %v207
    %2594 = vmatmul.mubr.bf16.gmra.mrb[0].mxu0 %v206
    %v2595 = vpop.f32.mrb[0].mxu0
    %v2596 = vadd.f32 0.0, %v2595
    %v2597 = vpop.f32.mrb[0].mxu0
    %v2598 = vpop.f32.mrb[0].mxu0
    %v2599 = vadd.f32 0.0, %v2598
    %v2600 = vpop.f32.mrb[0].mxu0
    %2601 = vmatprep.mubr.bf16.mxu0 %v209
    %2602 = vmatmul.mubr.bf16.gmra.mrb[0].mxu0 %v208
    %v2603 = vpop.f32.mrb[0].mxu0
    %v2604 = vadd.f32 0.0, %v2603
    %v2605 = vpop.f32.mrb[0].mxu0
    %v2606 = vpop.f32.mrb[0].mxu0
    %v2607 = vadd.f32 0.0, %v2606
    %v2608 = vpop.f32.mrb[0].mxu0
    %2609 = vdwg.mxu0
    %v2610 = vpack.c.bf16 %v2487, %v2484
    %v2611 = vpack.c.bf16 %v2495, %v2492
    %v2612 = vpack.c.bf16 %v2503, %v2500
    %v2613 = vpack.c.bf16 %v2511, %v2508
    %v2614 = vpack.c.bf16 %v2519, %v2516
    %v2615 = vpack.c.bf16 %v2527, %v2524
    %v2616 = vpack.c.bf16 %v2535, %v2532
    %v2617 = vpack.c.bf16 %v2543, %v2540
    %v2618 = vpack.c.bf16 %v2551, %v2548
    %v2619 = vpack.c.bf16 %v2559, %v2556
    %v2620 = vpack.c.bf16 %v2567, %v2564
    %v2621 = vpack.c.bf16 %v2575, %v2572
    %v2622 = vpack.c.bf16 %v2583, %v2580
    %v2623 = vpack.c.bf16 %v2591, %v2588
    %v2624 = vpack.c.bf16 %v2599, %v2596
    %v2625 = vpack.c.bf16 %v2607, %v2604
    %v2626 = vld [vmem:[#allocation13] sm:$0xf]
    %v2627 = vld [vmem:[#allocation13 + $0x4] sm:$0xf]
    %v2628 = vld [vmem:[#allocation13 + $0x8] sm:$0xf]
    %v2629 = vld [vmem:[#allocation13 + $0xc] sm:$0xf]
    %v2630 = vld [vmem:[#allocation13 + $0x10] sm:$0xf]
    %v2631 = vld [vmem:[#allocation13 + $0x14] sm:$0xf]
    %v2632 = vld [vmem:[#allocation13 + $0x18] sm:$0xf]
    %v2633 = vld [vmem:[#allocation13 + $0x1c] sm:$0xf]
    %v2634 = vld [vmem:[#allocation13 + $0x20] sm:$0xf]
    %v2635 = vld [vmem:[#allocation13 + $0x24] sm:$0xf]
    %v2636 = vld [vmem:[#allocation13 + $0x28] sm:$0xf]
    %v2637 = vld [vmem:[#allocation13 + $0x2c] sm:$0xf]
    %v2638 = vld [vmem:[#allocation13 + $0x30] sm:$0xf]
    %v2639 = vld [vmem:[#allocation13 + $0x34] sm:$0xf]
    %v2640 = vld [vmem:[#allocation13 + $0x38] sm:$0xf]
    %v2641 = vld [vmem:[#allocation13 + $0x3c] sm:$0xf]
    %v2642 = vld [vmem:[%s11] sm:$0x1]
    %v2644 = vlaneseq
    %v2645 = vshrl.u32 %v2644, 7
    %v2646 = vsub.s32 0, %v2645
    %v2647 = vrot.slane %v2642, %v2646
    %v2665 = vunpack.c.l.b16 %v2626
    %v2666 = vunpack.c.l.b16 %v2627
    %v2667 = vunpack.c.l.b16 %v2628
    %v2668 = vunpack.c.l.b16 %v2629
    %v2669 = vunpack.c.l.b16 %v2630
    %v2670 = vunpack.c.l.b16 %v2631
    %v2671 = vunpack.c.l.b16 %v2632
    %v2672 = vunpack.c.l.b16 %v2633
    %v2673 = vunpack.c.l.b16 %v2634
    %v2674 = vunpack.c.l.b16 %v2635
    %v2675 = vunpack.c.l.b16 %v2636
    %v2676 = vunpack.c.l.b16 %v2637
    %v2677 = vunpack.c.l.b16 %v2638
    %v2678 = vunpack.c.l.b16 %v2639
    %v2679 = vunpack.c.l.b16 %v2640
    %v2680 = vunpack.c.l.b16 %v2641
    %v2681 = vpack.c.b16 %v2666, %v2665
    %v2682 = vpack.c.b16 %v2668, %v2667
    %v2683 = vpack.c.b16 %v2670, %v2669
    %v2684 = vpack.c.b16 %v2672, %v2671
    %v2685 = vpack.c.b16 %v2674, %v2673
    %v2686 = vpack.c.b16 %v2676, %v2675
    %v2687 = vpack.c.b16 %v2678, %v2677
    %v2688 = vpack.c.b16 %v2680, %v2679
    %2697 = vmatprep.subr.bf16.mxu0 0
    %2698 = vmatpush1.bf16.msra.mxu0 %v2681
    %2699 = vmatprep.subr.bf16.mxu0 0
    %2700 = vmatpush1.bf16.msra.mxu0 %v2682
    %2701 = vmatprep.subr.bf16.mxu0 0
    %2702 = vmatpush1.bf16.msra.mxu0 %v2683
    %2703 = vmatprep.subr.bf16.mxu0 0
    %2704 = vmatpush1.bf16.msra.mxu0 %v2684
    %2705 = vmatprep.subr.bf16.mxu0 0
    %2706 = vmatpush1.bf16.msra.mxu0 %v2685
    %2707 = vmatprep.subr.bf16.mxu0 0
    %2708 = vmatpush1.bf16.msra.mxu0 %v2686
    %2709 = vmatprep.subr.bf16.mxu0 0
    %2710 = vmatpush1.bf16.msra.mxu0 %v2687
    %2711 = vmatprep.subr.bf16.mxu0 0
    %2712 = vmatpush1.bf16.msra.mxu0 %v2688
    %2713 = vmatprep.subr.bf16.mxu0 0
    %2714 = vmatpush1.bf16.msra.mxu0 0
    %2715 = vmatprep.subr.bf16.mxu0 0
    %2716 = vmatpush1.bf16.msra.mxu0 0
    %2717 = vmatprep.subr.bf16.mxu0 0
    %2718 = vmatpush1.bf16.msra.mxu0 0
    %2719 = vmatprep.subr.bf16.mxu0 0
    %2720 = vmatpush1.bf16.msra.mxu0 0
    %2721 = vmatprep.subr.bf16.mxu0 0
    %2722 = vmatpush1.bf16.msra.mxu0 0
    %2723 = vmatprep.subr.bf16.mxu0 0
    %2724 = vmatpush1.bf16.msra.mxu0 0
    %2725 = vmatprep.subr.bf16.mxu0 0
    %2726 = vmatpush1.bf16.msra.mxu0 0
    %2727 = vmatprep.subr.bf16.mxu0 0
    %2728 = vmatpush1.bf16.msra.mxu0 0
    %2729 = vmatprep.mubr.bf16.mxu0 0
    %2730 = vmatmul.mubr.bf16.gmra.mrb[0].mxu0 %v2610
    %v2731 = vpop.f32.mrb[0].mxu0
    %v2732 = vadd.f32 %v2647, %v2731
    %v2733 = vpop.f32.mrb[0].mxu0
    %v2734 = vpop.f32.mrb[0].mxu0
    %v2735 = vadd.f32 %v2647, %v2734
    %v2736 = vpop.f32.mrb[0].mxu0
    %2737 = vmatprep.mubr.bf16.mxu0 0
    %2738 = vmatmul.mubr.bf16.gmra.mrb[0].mxu0 %v2611
    %v2739 = vpop.f32.mrb[0].mxu0
    %v2740 = vadd.f32 %v2647, %v2739
    %v2741 = vpop.f32.mrb[0].mxu0
    %v2742 = vpop.f32.mrb[0].mxu0
    %v2743 = vadd.f32 %v2647, %v2742
    %v2744 = vpop.f32.mrb[0].mxu0
    %2745 = vmatprep.mubr.bf16.mxu0 0
    %2746 = vmatmul.mubr.bf16.gmra.mrb[0].mxu0 %v2612
    %v2747 = vpop.f32.mrb[0].mxu0
    %v2748 = vadd.f32 %v2647, %v2747
    %v2749 = vpop.f32.mrb[0].mxu0
    %v2750 = vpop.f32.mrb[0].mxu0
    %v2751 = vadd.f32 %v2647, %v2750
    %v2752 = vpop.f32.mrb[0].mxu0
    %2753 = vmatprep.mubr.bf16.mxu0 0
    %2754 = vmatmul.mubr.bf16.gmra.mrb[0].mxu0 %v2613
    %v2755 = vpop.f32.mrb[0].mxu0
    %v2756 = vadd.f32 %v2647, %v2755
    %v2757 = vpop.f32.mrb[0].mxu0
    %v2758 = vpop.f32.mrb[0].mxu0
    %v2759 = vadd.f32 %v2647, %v2758
    %v2760 = vpop.f32.mrb[0].mxu0
    %2761 = vmatprep.mubr.bf16.mxu0 0
    %2762 = vmatmul.mubr.bf16.gmra.mrb[0].mxu0 %v2614
    %v2763 = vpop.f32.mrb[0].mxu0
    %v2764 = vadd.f32 %v2647, %v2763
    %v2765 = vpop.f32.mrb[0].mxu0
    %v2766 = vpop.f32.mrb[0].mxu0
    %v2767 = vadd.f32 %v2647, %v2766
    %v2768 = vpop.f32.mrb[0].mxu0
    %2769 = vmatprep.mubr.bf16.mxu0 0
    %2770 = vmatmul.mubr.bf16.gmra.mrb[0].mxu0 %v2615
    %v2771 = vpop.f32.mrb[0].mxu0
    %v2772 = vadd.f32 %v2647, %v2771
    %v2773 = vpop.f32.mrb[0].mxu0
    %v2774 = vpop.f32.mrb[0].mxu0
    %v2775 = vadd.f32 %v2647, %v2774
    %v2776 = vpop.f32.mrb[0].mxu0
    %2777 = vmatprep.mubr.bf16.mxu0 0
    %2778 = vmatmul.mubr.bf16.gmra.mrb[0].mxu0 %v2616
    %v2779 = vpop.f32.mrb[0].mxu0
    %v2780 = vadd.f32 %v2647, %v2779
    %v2781 = vpop.f32.mrb[0].mxu0
    %v2782 = vpop.f32.mrb[0].mxu0
    %v2783 = vadd.f32 %v2647, %v2782
    %v2784 = vpop.f32.mrb[0].mxu0
    %2785 = vmatprep.mubr.bf16.mxu0 0
    %2786 = vmatmul.mubr.bf16.gmra.mrb[0].mxu0 %v2617
    %v2787 = vpop.f32.mrb[0].mxu0
    %v2788 = vadd.f32 %v2647, %v2787
    %v2789 = vpop.f32.mrb[0].mxu0
    %v2790 = vpop.f32.mrb[0].mxu0
    %v2791 = vadd.f32 %v2647, %v2790
    %v2792 = vpop.f32.mrb[0].mxu0
    %2793 = vmatprep.mubr.bf16.mxu0 0
    %2794 = vmatmul.mubr.bf16.gmra.mrb[0].mxu0 %v2618
    %v2795 = vpop.f32.mrb[0].mxu0
    %v2796 = vadd.f32 %v2647, %v2795
    %v2797 = vpop.f32.mrb[0].mxu0
    %v2798 = vpop.f32.mrb[0].mxu0
    %v2799 = vadd.f32 %v2647, %v2798
    %v2800 = vpop.f32.mrb[0].mxu0
    %2801 = vmatprep.mubr.bf16.mxu0 0
    %2802 = vmatmul.mubr.bf16.gmra.mrb[0].mxu0 %v2619
    %v2803 = vpop.f32.mrb[0].mxu0
    %v2804 = vadd.f32 %v2647, %v2803
    %v2805 = vpop.f32.mrb[0].mxu0
    %v2806 = vpop.f32.mrb[0].mxu0
    %v2807 = vadd.f32 %v2647, %v2806
    %v2808 = vpop.f32.mrb[0].mxu0
    %2809 = vmatprep.mubr.bf16.mxu0 0
    %2810 = vmatmul.mubr.bf16.gmra.mrb[0].mxu0 %v2620
    %v2811 = vpop.f32.mrb[0].mxu0
    %v2812 = vadd.f32 %v2647, %v2811
    %v2813 = vpop.f32.mrb[0].mxu0
    %v2814 = vpop.f32.mrb[0].mxu0
    %v2815 = vadd.f32 %v2647, %v2814
    %v2816 = vpop.f32.mrb[0].mxu0
    %2817 = vmatprep.mubr.bf16.mxu0 0
    %2818 = vmatmul.mubr.bf16.gmra.mrb[0].mxu0 %v2621
    %v2819 = vpop.f32.mrb[0].mxu0
    %v2820 = vadd.f32 %v2647, %v2819
    %v2821 = vpop.f32.mrb[0].mxu0
    %v2822 = vpop.f32.mrb[0].mxu0
    %v2823 = vadd.f32 %v2647, %v2822
    %v2824 = vpop.f32.mrb[0].mxu0
    %2825 = vmatprep.mubr.bf16.mxu0 0
    %2826 = vmatmul.mubr.bf16.gmra.mrb[0].mxu0 %v2622
    %v2827 = vpop.f32.mrb[0].mxu0
    %v2828 = vadd.f32 %v2647, %v2827
    %v2829 = vpop.f32.mrb[0].mxu0
    %v2830 = vpop.f32.mrb[0].mxu0
    %v2831 = vadd.f32 %v2647, %v2830
    %v2832 = vpop.f32.mrb[0].mxu0
    %2833 = vmatprep.mubr.bf16.mxu0 0
    %2834 = vmatmul.mubr.bf16.gmra.mrb[0].mxu0 %v2623
    %v2835 = vpop.f32.mrb[0].mxu0
    %v2836 = vadd.f32 %v2647, %v2835
    %v2837 = vpop.f32.mrb[0].mxu0
    %v2838 = vpop.f32.mrb[0].mxu0
    %v2839 = vadd.f32 %v2647, %v2838
    %v2840 = vpop.f32.mrb[0].mxu0
    %2841 = vmatprep.mubr.bf16.mxu0 0
    %2842 = vmatmul.mubr.bf16.gmra.mrb[0].mxu0 %v2624
    %v2843 = vpop.f32.mrb[0].mxu0
    %v2844 = vadd.f32 %v2647, %v2843
    %v2845 = vpop.f32.mrb[0].mxu0
    %v2846 = vpop.f32.mrb[0].mxu0
    %v2847 = vadd.f32 %v2647, %v2846
    %v2848 = vpop.f32.mrb[0].mxu0
    %2849 = vmatprep.mubr.bf16.mxu0 0
    %2850 = vmatmul.mubr.bf16.gmra.mrb[0].mxu0 %v2625
    %v2851 = vpop.f32.mrb[0].mxu0
    %v2852 = vadd.f32 %v2647, %v2851
    %v2853 = vpop.f32.mrb[0].mxu0
    %v2854 = vpop.f32.mrb[0].mxu0
    %v2855 = vadd.f32 %v2647, %v2854
    %v2856 = vpop.f32.mrb[0].mxu0
    %2857 = vdwg.mxu0
    %v2858 = vmax.f32 %v2732, 0.0
    %v2859 = vmax.f32 %v2735, 0.0
    %v2860 = vmax.f32 %v2740, 0.0
    %v2861 = vmax.f32 %v2743, 0.0
    %v2862 = vmax.f32 %v2748, 0.0
    %v2863 = vmax.f32 %v2751, 0.0
    %v2864 = vmax.f32 %v2756, 0.0
    %v2865 = vmax.f32 %v2759, 0.0
    %v2866 = vmax.f32 %v2764, 0.0
    %v2867 = vmax.f32 %v2767, 0.0
    %v2868 = vmax.f32 %v2772, 0.0
    %v2869 = vmax.f32 %v2775, 0.0
    %v2870 = vmax.f32 %v2780, 0.0
    %v2871 = vmax.f32 %v2783, 0.0
    %v2872 = vmax.f32 %v2788, 0.0
    %v2873 = vmax.f32 %v2791, 0.0
    %v2874 = vmax.f32 %v2796, 0.0
    %v2875 = vmax.f32 %v2799, 0.0
    %v2876 = vmax.f32 %v2804, 0.0
    %v2877 = vmax.f32 %v2807, 0.0
    %v2878 = vmax.f32 %v2812, 0.0
    %v2879 = vmax.f32 %v2815, 0.0
    %v2880 = vmax.f32 %v2820, 0.0
    %v2881 = vmax.f32 %v2823, 0.0
    %v2882 = vmax.f32 %v2828, 0.0
    %v2883 = vmax.f32 %v2831, 0.0
    %v2884 = vmax.f32 %v2836, 0.0
    %v2885 = vmax.f32 %v2839, 0.0
    %v2886 = vmax.f32 %v2844, 0.0
    %v2887 = vmax.f32 %v2847, 0.0
    %v2888 = vmax.f32 %v2852, 0.0
    %v2889 = vmax.f32 %v2855, 0.0
    %v2890 = vpack.c.bf16 %v2859, %v2858
    %v2891 = vpack.c.bf16 %v2861, %v2860
    %v2892 = vpack.c.bf16 %v2863, %v2862
    %v2893 = vpack.c.bf16 %v2865, %v2864
    %v2894 = vpack.c.bf16 %v2867, %v2866
    %v2895 = vpack.c.bf16 %v2869, %v2868
    %v2896 = vpack.c.bf16 %v2871, %v2870
    %v2897 = vpack.c.bf16 %v2873, %v2872
    %v2898 = vpack.c.bf16 %v2875, %v2874
    %v2899 = vpack.c.bf16 %v2877, %v2876
    %v2900 = vpack.c.bf16 %v2879, %v2878
    %v2901 = vpack.c.bf16 %v2881, %v2880
    %v2902 = vpack.c.bf16 %v2883, %v2882
    %v2903 = vpack.c.bf16 %v2885, %v2884
    %v2904 = vpack.c.bf16 %v2887, %v2886
    %v2905 = vpack.c.bf16 %v2889, %v2888
    %v2906 = vld [vmem:[#allocation14] sm:$0xf]
    %v2907 = vld [vmem:[#allocation14 + $0x4] sm:$0xf]
    %v2908 = vld [vmem:[#allocation14 + $0x8] sm:$0xf]
    %v2909 = vld [vmem:[#allocation14 + $0xc] sm:$0xf]
    %v2910 = vld [vmem:[#allocation14 + $0x10] sm:$0xf]
    %v2911 = vld [vmem:[#allocation14 + $0x14] sm:$0xf]
    %v2912 = vld [vmem:[#allocation14 + $0x18] sm:$0xf]
    %v2913 = vld [vmem:[#allocation14 + $0x1c] sm:$0xf]
    %v2914 = vld [vmem:[#allocation14 + $0x20] sm:$0xf]
    %v2915 = vld [vmem:[#allocation14 + $0x24] sm:$0xf]
    %v2916 = vld [vmem:[#allocation14 + $0x28] sm:$0xf]
    %v2917 = vld [vmem:[#allocation14 + $0x2c] sm:$0xf]
    %v2918 = vld [vmem:[#allocation14 + $0x30] sm:$0xf]
    %v2919 = vld [vmem:[#allocation14 + $0x34] sm:$0xf]
    %v2920 = vld [vmem:[#allocation14 + $0x38] sm:$0xf]
    %v2921 = vld [vmem:[#allocation14 + $0x3c] sm:$0xf]
    %v2922 = vld [vmem:[%s13] sm:$0x1]
    %v2924 = vlaneseq
    %v2925 = vshrl.u32 %v2924, 7
    %v2926 = vsub.s32 0, %v2925
    %v2927 = vrot.slane %v2922, %v2926
    %v2945 = vunpack.c.l.b16 %v2906
    %v2946 = vunpack.c.l.b16 %v2907
    %v2947 = vunpack.c.l.b16 %v2908
    %v2948 = vunpack.c.l.b16 %v2909
    %v2949 = vunpack.c.l.b16 %v2910
    %v2950 = vunpack.c.l.b16 %v2911
    %v2951 = vunpack.c.l.b16 %v2912
    %v2952 = vunpack.c.l.b16 %v2913
    %v2953 = vunpack.c.l.b16 %v2914
    %v2954 = vunpack.c.l.b16 %v2915
    %v2955 = vunpack.c.l.b16 %v2916
    %v2956 = vunpack.c.l.b16 %v2917
    %v2957 = vunpack.c.l.b16 %v2918
    %v2958 = vunpack.c.l.b16 %v2919
    %v2959 = vunpack.c.l.b16 %v2920
    %v2960 = vunpack.c.l.b16 %v2921
    %v2961 = vpack.c.b16 %v2946, %v2945
    %v2962 = vpack.c.b16 %v2948, %v2947
    %v2963 = vpack.c.b16 %v2950, %v2949
    %v2964 = vpack.c.b16 %v2952, %v2951
    %v2965 = vpack.c.b16 %v2954, %v2953
    %v2966 = vpack.c.b16 %v2956, %v2955
    %v2967 = vpack.c.b16 %v2958, %v2957
    %v2968 = vpack.c.b16 %v2960, %v2959
    %2977 = vmatprep.subr.bf16.mxu0 0
    %2978 = vmatpush1.bf16.msra.mxu0 %v2961
    %2979 = vmatprep.subr.bf16.mxu0 0
    %2980 = vmatpush1.bf16.msra.mxu0 %v2962
    %2981 = vmatprep.subr.bf16.mxu0 0
    %2982 = vmatpush1.bf16.msra.mxu0 %v2963
    %2983 = vmatprep.subr.bf16.mxu0 0
    %2984 = vmatpush1.bf16.msra.mxu0 %v2964
    %2985 = vmatprep.subr.bf16.mxu0 0
    %2986 = vmatpush1.bf16.msra.mxu0 %v2965
    %2987 = vmatprep.subr.bf16.mxu0 0
    %2988 = vmatpush1.bf16.msra.mxu0 %v2966
    %2989 = vmatprep.subr.bf16.mxu0 0
    %2990 = vmatpush1.bf16.msra.mxu0 %v2967
    %2991 = vmatprep.subr.bf16.mxu0 0
    %2992 = vmatpush1.bf16.msra.mxu0 %v2968
    %2993 = vmatprep.subr.bf16.mxu0 0
    %2994 = vmatpush1.bf16.msra.mxu0 0
    %2995 = vmatprep.subr.bf16.mxu0 0
    %2996 = vmatpush1.bf16.msra.mxu0 0
    %2997 = vmatprep.subr.bf16.mxu0 0
    %2998 = vmatpush1.bf16.msra.mxu0 0
    %2999 = vmatprep.subr.bf16.mxu0 0
    %3000 = vmatpush1.bf16.msra.mxu0 0
    %3001 = vmatprep.subr.bf16.mxu0 0
    %3002 = vmatpush1.bf16.msra.mxu0 0
    %3003 = vmatprep.subr.bf16.mxu0 0
    %3004 = vmatpush1.bf16.msra.mxu0 0
    %3005 = vmatprep.subr.bf16.mxu0 0
    %3006 = vmatpush1.bf16.msra.mxu0 0
    %3007 = vmatprep.subr.bf16.mxu0 0
    %3008 = vmatpush1.bf16.msra.mxu0 0
    %3009 = vmatprep.mubr.bf16.mxu0 0
    %3010 = vmatmul.mubr.bf16.gmra.mrb[0].mxu0 %v2890
    %v3011 = vpop.f32.mrb[0].mxu0
    %v3012 = vadd.f32 %v2927, %v3011
    %v3013 = vpop.f32.mrb[0].mxu0
    %v3014 = vpop.f32.mrb[0].mxu0
    %v3015 = vadd.f32 %v2927, %v3014
    %v3016 = vpop.f32.mrb[0].mxu0
    %3017 = vmatprep.mubr.bf16.mxu0 0
    %3018 = vmatmul.mubr.bf16.gmra.mrb[0].mxu0 %v2891
    %v3019 = vpop.f32.mrb[0].mxu0
    %v3020 = vadd.f32 %v2927, %v3019
    %v3021 = vpop.f32.mrb[0].mxu0
    %v3022 = vpop.f32.mrb[0].mxu0
    %v3023 = vadd.f32 %v2927, %v3022
    %v3024 = vpop.f32.mrb[0].mxu0
    %3025 = vmatprep.mubr.bf16.mxu0 0
    %3026 = vmatmul.mubr.bf16.gmra.mrb[0].mxu0 %v2892
    %v3027 = vpop.f32.mrb[0].mxu0
    %v3028 = vadd.f32 %v2927, %v3027
    %v3029 = vpop.f32.mrb[0].mxu0
    %v3030 = vpop.f32.mrb[0].mxu0
    %v3031 = vadd.f32 %v2927, %v3030
    %v3032 = vpop.f32.mrb[0].mxu0
    %3033 = vmatprep.mubr.bf16.mxu0 0
    %3034 = vmatmul.mubr.bf16.gmra.mrb[0].mxu0 %v2893
    %v3035 = vpop.f32.mrb[0].mxu0
    %v3036 = vadd.f32 %v2927, %v3035
    %v3037 = vpop.f32.mrb[0].mxu0
    %v3038 = vpop.f32.mrb[0].mxu0
    %v3039 = vadd.f32 %v2927, %v3038
    %v3040 = vpop.f32.mrb[0].mxu0
    %3041 = vmatprep.mubr.bf16.mxu0 0
    %3042 = vmatmul.mubr.bf16.gmra.mrb[0].mxu0 %v2894
    %v3043 = vpop.f32.mrb[0].mxu0
    %v3044 = vadd.f32 %v2927, %v3043
    %v3045 = vpop.f32.mrb[0].mxu0
    %v3046 = vpop.f32.mrb[0].mxu0
    %v3047 = vadd.f32 %v2927, %v3046
    %v3048 = vpop.f32.mrb[0].mxu0
    %3049 = vmatprep.mubr.bf16.mxu0 0
    %3050 = vmatmul.mubr.bf16.gmra.mrb[0].mxu0 %v2895
    %v3051 = vpop.f32.mrb[0].mxu0
    %v3052 = vadd.f32 %v2927, %v3051
    %v3053 = vpop.f32.mrb[0].mxu0
    %v3054 = vpop.f32.mrb[0].mxu0
    %v3055 = vadd.f32 %v2927, %v3054
    %v3056 = vpop.f32.mrb[0].mxu0
    %3057 = vmatprep.mubr.bf16.mxu0 0
    %3058 = vmatmul.mubr.bf16.gmra.mrb[0].mxu0 %v2896
    %v3059 = vpop.f32.mrb[0].mxu0
    %v3060 = vadd.f32 %v2927, %v3059
    %v3061 = vpop.f32.mrb[0].mxu0
    %v3062 = vpop.f32.mrb[0].mxu0
    %v3063 = vadd.f32 %v2927, %v3062
    %v3064 = vpop.f32.mrb[0].mxu0
    %3065 = vmatprep.mubr.bf16.mxu0 0
    %3066 = vmatmul.mubr.bf16.gmra.mrb[0].mxu0 %v2897
    %v3067 = vpop.f32.mrb[0].mxu0
    %v3068 = vadd.f32 %v2927, %v3067
    %v3069 = vpop.f32.mrb[0].mxu0
    %v3070 = vpop.f32.mrb[0].mxu0
    %v3071 = vadd.f32 %v2927, %v3070
    %v3072 = vpop.f32.mrb[0].mxu0
    %3073 = vmatprep.mubr.bf16.mxu0 0
    %3074 = vmatmul.mubr.bf16.gmra.mrb[0].mxu0 %v2898
    %v3075 = vpop.f32.mrb[0].mxu0
    %v3076 = vadd.f32 %v2927, %v3075
    %v3077 = vpop.f32.mrb[0].mxu0
    %v3078 = vpop.f32.mrb[0].mxu0
    %v3079 = vadd.f32 %v2927, %v3078
    %v3080 = vpop.f32.mrb[0].mxu0
    %3081 = vmatprep.mubr.bf16.mxu0 0
    %3082 = vmatmul.mubr.bf16.gmra.mrb[0].mxu0 %v2899
    %v3083 = vpop.f32.mrb[0].mxu0
    %v3084 = vadd.f32 %v2927, %v3083
    %v3085 = vpop.f32.mrb[0].mxu0
    %v3086 = vpop.f32.mrb[0].mxu0
    %v3087 = vadd.f32 %v2927, %v3086
    %v3088 = vpop.f32.mrb[0].mxu0
    %3089 = vmatprep.mubr.bf16.mxu0 0
    %3090 = vmatmul.mubr.bf16.gmra.mrb[0].mxu0 %v2900
    %v3091 = vpop.f32.mrb[0].mxu0
    %v3092 = vadd.f32 %v2927, %v3091
    %v3093 = vpop.f32.mrb[0].mxu0
    %v3094 = vpop.f32.mrb[0].mxu0
    %v3095 = vadd.f32 %v2927, %v3094
    %v3096 = vpop.f32.mrb[0].mxu0
    %3097 = vmatprep.mubr.bf16.mxu0 0
    %3098 = vmatmul.mubr.bf16.gmra.mrb[0].mxu0 %v2901
    %v3099 = vpop.f32.mrb[0].mxu0
    %v3100 = vadd.f32 %v2927, %v3099
    %v3101 = vpop.f32.mrb[0].mxu0
    %v3102 = vpop.f32.mrb[0].mxu0
    %v3103 = vadd.f32 %v2927, %v3102
    %v3104 = vpop.f32.mrb[0].mxu0
    %3105 = vmatprep.mubr.bf16.mxu0 0
    %3106 = vmatmul.mubr.bf16.gmra.mrb[0].mxu0 %v2902
    %v3107 = vpop.f32.mrb[0].mxu0
    %v3108 = vadd.f32 %v2927, %v3107
    %v3109 = vpop.f32.mrb[0].mxu0
    %v3110 = vpop.f32.mrb[0].mxu0
    %v3111 = vadd.f32 %v2927, %v3110
    %v3112 = vpop.f32.mrb[0].mxu0
    %3113 = vmatprep.mubr.bf16.mxu0 0
    %3114 = vmatmul.mubr.bf16.gmra.mrb[0].mxu0 %v2903
    %v3115 = vpop.f32.mrb[0].mxu0
    %v3116 = vadd.f32 %v2927, %v3115
    %v3117 = vpop.f32.mrb[0].mxu0
    %v3118 = vpop.f32.mrb[0].mxu0
    %v3119 = vadd.f32 %v2927, %v3118
    %v3120 = vpop.f32.mrb[0].mxu0
    %3121 = vmatprep.mubr.bf16.mxu0 0
    %3122 = vmatmul.mubr.bf16.gmra.mrb[0].mxu0 %v2904
    %v3123 = vpop.f32.mrb[0].mxu0
    %v3124 = vadd.f32 %v2927, %v3123
    %v3125 = vpop.f32.mrb[0].mxu0
    %v3126 = vpop.f32.mrb[0].mxu0
    %v3127 = vadd.f32 %v2927, %v3126
    %v3128 = vpop.f32.mrb[0].mxu0
    %3129 = vmatprep.mubr.bf16.mxu0 0
    %3130 = vmatmul.mubr.bf16.gmra.mrb[0].mxu0 %v2905
    %v3131 = vpop.f32.mrb[0].mxu0
    %v3132 = vadd.f32 %v2927, %v3131
    %v3133 = vpop.f32.mrb[0].mxu0
    %v3134 = vpop.f32.mrb[0].mxu0
    %v3135 = vadd.f32 %v2927, %v3134
    %v3136 = vpop.f32.mrb[0].mxu0
    %3137 = vdwg.mxu0
    %v3138 = vmax.f32 %v3012, 0.0
    %v3139 = vmax.f32 %v3015, 0.0
    %v3140 = vmax.f32 %v3020, 0.0
    %v3141 = vmax.f32 %v3023, 0.0
    %v3142 = vmax.f32 %v3028, 0.0
    %v3143 = vmax.f32 %v3031, 0.0
    %v3144 = vmax.f32 %v3036, 0.0
    %v3145 = vmax.f32 %v3039, 0.0
    %v3146 = vmax.f32 %v3044, 0.0
    %v3147 = vmax.f32 %v3047, 0.0
    %v3148 = vmax.f32 %v3052, 0.0
    %v3149 = vmax.f32 %v3055, 0.0
    %v3150 = vmax.f32 %v3060, 0.0
    %v3151 = vmax.f32 %v3063, 0.0
    %v3152 = vmax.f32 %v3068, 0.0
    %v3153 = vmax.f32 %v3071, 0.0
    %v3154 = vmax.f32 %v3076, 0.0
    %v3155 = vmax.f32 %v3079, 0.0
    %v3156 = vmax.f32 %v3084, 0.0
    %v3157 = vmax.f32 %v3087, 0.0
    %v3158 = vmax.f32 %v3092, 0.0
    %v3159 = vmax.f32 %v3095, 0.0
    %v3160 = vmax.f32 %v3100, 0.0
    %v3161 = vmax.f32 %v3103, 0.0
    %v3162 = vmax.f32 %v3108, 0.0
    %v3163 = vmax.f32 %v3111, 0.0
    %v3164 = vmax.f32 %v3116, 0.0
    %v3165 = vmax.f32 %v3119, 0.0
    %v3166 = vmax.f32 %v3124, 0.0
    %v3167 = vmax.f32 %v3127, 0.0
    %v3168 = vmax.f32 %v3132, 0.0
    %v3169 = vmax.f32 %v3135, 0.0
    %v3170 = vadd.f32 %v3138, %v3139
    %v3171 = vadd.f32 %v3170, %v3140
    %v3172 = vadd.f32 %v3171, %v3141
    %v3173 = vadd.f32 %v3172, %v3142
    %v3174 = vadd.f32 %v3173, %v3143
    %v3175 = vadd.f32 %v3174, %v3144
    %v3176 = vadd.f32 %v3175, %v3145
    %v3177 = vadd.f32 %v3176, %v3146
    %v3178 = vadd.f32 %v3177, %v3147
    %v3179 = vadd.f32 %v3178, %v3148
    %v3180 = vadd.f32 %v3179, %v3149
    %v3181 = vadd.f32 %v3180, %v3150
    %v3182 = vadd.f32 %v3181, %v3151
    %v3183 = vadd.f32 %v3182, %v3152
    %v3184 = vadd.f32 %v3183, %v3153
    %v3185 = vadd.f32 %v3184, %v3154
    %v3186 = vadd.f32 %v3185, %v3155
    %v3187 = vadd.f32 %v3186, %v3156
    %v3188 = vadd.f32 %v3187, %v3157
    %v3189 = vadd.f32 %v3188, %v3158
    %v3190 = vadd.f32 %v3189, %v3159
    %v3191 = vadd.f32 %v3190, %v3160
    %v3192 = vadd.f32 %v3191, %v3161
    %v3193 = vadd.f32 %v3192, %v3162
    %v3194 = vadd.f32 %v3193, %v3163
    %v3195 = vadd.f32 %v3194, %v3164
    %v3196 = vadd.f32 %v3195, %v3165
    %v3197 = vadd.f32 %v3196, %v3166
    %v3198 = vadd.f32 %v3197, %v3167
    %v3199 = vadd.f32 %v3198, %v3168
    %v3200 = vadd.f32 %v3199, %v3169
    %v3201 = vrot.slane %v3200, 4
    %v3202 = vadd.f32 %v3200, %v3201
    %v3203 = vrot.slane %v3202, 2
    %v3204 = vadd.f32 %v3202, %v3203
    %v3205 = vrot.slane %v3204, 1
    %v3206 = vadd.f32 %v3204, %v3205
    %v3207 = vmul.f32 %v3206, %v1096
    %v3208 = vsub.f32 %v3138, %v3207
    %v3209 = vsub.f32 %v3139, %v3207
    %v3210 = vsub.f32 %v3140, %v3207
    %v3211 = vsub.f32 %v3141, %v3207
    %v3212 = vsub.f32 %v3142, %v3207
    %v3213 = vsub.f32 %v3143, %v3207
    %v3214 = vsub.f32 %v3144, %v3207
    %v3215 = vsub.f32 %v3145, %v3207
    %v3216 = vsub.f32 %v3146, %v3207
    %v3217 = vsub.f32 %v3147, %v3207
    %v3218 = vsub.f32 %v3148, %v3207
    %v3219 = vsub.f32 %v3149, %v3207
    %v3220 = vsub.f32 %v3150, %v3207
    %v3221 = vsub.f32 %v3151, %v3207
    %v3222 = vsub.f32 %v3152, %v3207
    %v3223 = vsub.f32 %v3153, %v3207
    %v3224 = vsub.f32 %v3154, %v3207
    %v3225 = vsub.f32 %v3155, %v3207
    %v3226 = vsub.f32 %v3156, %v3207
    %v3227 = vsub.f32 %v3157, %v3207
    %v3228 = vsub.f32 %v3158, %v3207
    %v3229 = vsub.f32 %v3159, %v3207
    %v3230 = vsub.f32 %v3160, %v3207
    %v3231 = vsub.f32 %v3161, %v3207
    %v3232 = vsub.f32 %v3162, %v3207
    %v3233 = vsub.f32 %v3163, %v3207
    %v3234 = vsub.f32 %v3164, %v3207
    %v3235 = vsub.f32 %v3165, %v3207
    %v3236 = vsub.f32 %v3166, %v3207
    %v3237 = vsub.f32 %v3167, %v3207
    %v3238 = vsub.f32 %v3168, %v3207
    %v3239 = vsub.f32 %v3169, %v3207
    %v3240 = vmul.f32 %v3208, %v3208
    %v3241 = vmul.f32 %v3209, %v3209
    %v3242 = vmul.f32 %v3210, %v3210
    %v3243 = vmul.f32 %v3211, %v3211
    %v3244 = vmul.f32 %v3212, %v3212
    %v3245 = vmul.f32 %v3213, %v3213
    %v3246 = vmul.f32 %v3214, %v3214
    %v3247 = vmul.f32 %v3215, %v3215
    %v3248 = vmul.f32 %v3216, %v3216
    %v3249 = vmul.f32 %v3217, %v3217
    %v3250 = vmul.f32 %v3218, %v3218
    %v3251 = vmul.f32 %v3219, %v3219
    %v3252 = vmul.f32 %v3220, %v3220
    %v3253 = vmul.f32 %v3221, %v3221
    %v3254 = vmul.f32 %v3222, %v3222
    %v3255 = vmul.f32 %v3223, %v3223
    %v3256 = vmul.f32 %v3224, %v3224
    %v3257 = vmul.f32 %v3225, %v3225
    %v3258 = vmul.f32 %v3226, %v3226
    %v3259 = vmul.f32 %v3227, %v3227
    %v3260 = vmul.f32 %v3228, %v3228
    %v3261 = vmul.f32 %v3229, %v3229
    %v3262 = vmul.f32 %v3230, %v3230
    %v3263 = vmul.f32 %v3231, %v3231
    %v3264 = vmul.f32 %v3232, %v3232
    %v3265 = vmul.f32 %v3233, %v3233
    %v3266 = vmul.f32 %v3234, %v3234
    %v3267 = vmul.f32 %v3235, %v3235
    %v3268 = vmul.f32 %v3236, %v3236
    %v3269 = vmul.f32 %v3237, %v3237
    %v3270 = vmul.f32 %v3238, %v3238
    %v3271 = vmul.f32 %v3239, %v3239
    %v3272 = vadd.f32 %v3240, %v3241
    %v3273 = vadd.f32 %v3272, %v3242
    %v3274 = vadd.f32 %v3273, %v3243
    %v3275 = vadd.f32 %v3274, %v3244
    %v3276 = vadd.f32 %v3275, %v3245
    %v3277 = vadd.f32 %v3276, %v3246
    %v3278 = vadd.f32 %v3277, %v3247
    %v3279 = vadd.f32 %v3278, %v3248
    %v3280 = vadd.f32 %v3279, %v3249
    %v3281 = vadd.f32 %v3280, %v3250
    %v3282 = vadd.f32 %v3281, %v3251
    %v3283 = vadd.f32 %v3282, %v3252
    %v3284 = vadd.f32 %v3283, %v3253
    %v3285 = vadd.f32 %v3284, %v3254
    %v3286 = vadd.f32 %v3285, %v3255
    %v3287 = vadd.f32 %v3286, %v3256
    %v3288 = vadd.f32 %v3287, %v3257
    %v3289 = vadd.f32 %v3288, %v3258
    %v3290 = vadd.f32 %v3289, %v3259
    %v3291 = vadd.f32 %v3290, %v3260
    %v3292 = vadd.f32 %v3291, %v3261
    %v3293 = vadd.f32 %v3292, %v3262
    %v3294 = vadd.f32 %v3293, %v3263
    %v3295 = vadd.f32 %v3294, %v3264
    %v3296 = vadd.f32 %v3295, %v3265
    %v3297 = vadd.f32 %v3296, %v3266
    %v3298 = vadd.f32 %v3297, %v3267
    %v3299 = vadd.f32 %v3298, %v3268
    %v3300 = vadd.f32 %v3299, %v3269
    %v3301 = vadd.f32 %v3300, %v3270
    %v3302 = vadd.f32 %v3301, %v3271
    %v3303 = vrot.slane %v3302, 4
    %v3304 = vadd.f32 %v3302, %v3303
    %v3305 = vrot.slane %v3304, 2
    %v3306 = vadd.f32 %v3304, %v3305
    %v3307 = vrot.slane %v3306, 1
    %v3308 = vadd.f32 %v3306, %v3307
    %v3309 = vmul.f32 %v3308, %v1096
    %v3310 = vadd.f32 %v3309, 1e-05
    %v3311 = vrsqrt.pop %v3310
    %v3312 = vmul.f32 %v3208, %v3311
    %v3313 = vmul.f32 %v3209, %v3311
    %v3314 = vmul.f32 %v3210, %v3311
    %v3315 = vmul.f32 %v3211, %v3311
    %v3316 = vmul.f32 %v3212, %v3311
    %v3317 = vmul.f32 %v3213, %v3311
    %v3318 = vmul.f32 %v3214, %v3311
    %v3319 = vmul.f32 %v3215, %v3311
    %v3320 = vmul.f32 %v3216, %v3311
    %v3321 = vmul.f32 %v3217, %v3311
    %v3322 = vmul.f32 %v3218, %v3311
    %v3323 = vmul.f32 %v3219, %v3311
    %v3324 = vmul.f32 %v3220, %v3311
    %v3325 = vmul.f32 %v3221, %v3311
    %v3326 = vmul.f32 %v3222, %v3311
    %v3327 = vmul.f32 %v3223, %v3311
    %v3328 = vmul.f32 %v3224, %v3311
    %v3329 = vmul.f32 %v3225, %v3311
    %v3330 = vmul.f32 %v3226, %v3311
    %v3331 = vmul.f32 %v3227, %v3311
    %v3332 = vmul.f32 %v3228, %v3311
    %v3333 = vmul.f32 %v3229, %v3311
    %v3334 = vmul.f32 %v3230, %v3311
    %v3335 = vmul.f32 %v3231, %v3311
    %v3336 = vmul.f32 %v3232, %v3311
    %v3337 = vmul.f32 %v3233, %v3311
    %v3338 = vmul.f32 %v3234, %v3311
    %v3339 = vmul.f32 %v3235, %v3311
    %v3340 = vmul.f32 %v3236, %v3311
    %v3341 = vmul.f32 %v3237, %v3311
    %v3342 = vmul.f32 %v3238, %v3311
    %v3343 = vmul.f32 %v3239, %v3311
    %v3344 = vpack.c.bf16 %v3313, %v3312
    %v3345 = vpack.c.bf16 %v3315, %v3314
    %v3346 = vpack.c.bf16 %v3317, %v3316
    %v3347 = vpack.c.bf16 %v3319, %v3318
    %v3348 = vpack.c.bf16 %v3321, %v3320
    %v3349 = vpack.c.bf16 %v3323, %v3322
    %v3350 = vpack.c.bf16 %v3325, %v3324
    %v3351 = vpack.c.bf16 %v3327, %v3326
    %v3352 = vpack.c.bf16 %v3329, %v3328
    %v3353 = vpack.c.bf16 %v3331, %v3330
    %v3354 = vpack.c.bf16 %v3333, %v3332
    %v3355 = vpack.c.bf16 %v3335, %v3334
    %v3356 = vpack.c.bf16 %v3337, %v3336
    %v3357 = vpack.c.bf16 %v3339, %v3338
    %v3358 = vpack.c.bf16 %v3341, %v3340
    %v3359 = vpack.c.bf16 %v3343, %v3342
    %v3376 = vunpack.c.l.b16 %v3344
    %v3377 = vunpack.c.h.b16 %v3344
    %v3378 = vunpack.c.l.b16 %v3345
    %v3379 = vunpack.c.h.b16 %v3345
    %v3380 = vunpack.c.l.b16 %v3346
    %v3381 = vunpack.c.h.b16 %v3346
    %v3382 = vunpack.c.l.b16 %v3347
    %v3383 = vunpack.c.h.b16 %v3347
    %v3384 = vunpack.c.l.b16 %v3348
    %v3385 = vunpack.c.h.b16 %v3348
    %v3386 = vunpack.c.l.b16 %v3349
    %v3387 = vunpack.c.h.b16 %v3349
    %v3388 = vunpack.c.l.b16 %v3350
    %v3389 = vunpack.c.h.b16 %v3350
    %v3390 = vunpack.c.l.b16 %v3351
    %v3391 = vunpack.c.h.b16 %v3351
    %v3392 = vunpack.c.l.b16 %v3352
    %v3393 = vunpack.c.h.b16 %v3352
    %v3394 = vunpack.c.l.b16 %v3353
    %v3395 = vunpack.c.h.b16 %v3353
    %v3396 = vunpack.c.l.b16 %v3354
    %v3397 = vunpack.c.h.b16 %v3354
    %v3398 = vunpack.c.l.b16 %v3355
    %v3399 = vunpack.c.h.b16 %v3355
    %v3400 = vunpack.c.l.b16 %v3356
    %v3401 = vunpack.c.h.b16 %v3356
    %v3402 = vunpack.c.l.b16 %v3357
    %v3403 = vunpack.c.h.b16 %v3357
    %v3404 = vunpack.c.l.b16 %v3358
    %v3405 = vunpack.c.h.b16 %v3358
    %v3406 = vunpack.c.l.b16 %v3359
    %v3407 = vunpack.c.h.b16 %v3359
    %v3408 = vpack.c.b16 %v3376, %v3376
    %v3409 = vpack.c.b16 %v3377, %v3377
    %v3410 = vpack.c.b16 %v3378, %v3378
    %v3411 = vpack.c.b16 %v3379, %v3379
    %v3412 = vpack.c.b16 %v3380, %v3380
    %v3413 = vpack.c.b16 %v3381, %v3381
    %v3414 = vpack.c.b16 %v3382, %v3382
    %v3415 = vpack.c.b16 %v3383, %v3383
    %v3416 = vpack.c.b16 %v3384, %v3384
    %v3417 = vpack.c.b16 %v3385, %v3385
    %v3418 = vpack.c.b16 %v3386, %v3386
    %v3419 = vpack.c.b16 %v3387, %v3387
    %v3420 = vpack.c.b16 %v3388, %v3388
    %v3421 = vpack.c.b16 %v3389, %v3389
    %v3422 = vpack.c.b16 %v3390, %v3390
    %v3423 = vpack.c.b16 %v3391, %v3391
    %v3424 = vpack.c.b16 %v3392, %v3392
    %v3425 = vpack.c.b16 %v3393, %v3393
    %v3426 = vpack.c.b16 %v3394, %v3394
    %v3427 = vpack.c.b16 %v3395, %v3395
    %v3428 = vpack.c.b16 %v3396, %v3396
    %v3429 = vpack.c.b16 %v3397, %v3397
    %v3430 = vpack.c.b16 %v3398, %v3398
    %v3431 = vpack.c.b16 %v3399, %v3399
    %v3432 = vpack.c.b16 %v3400, %v3400
    %v3433 = vpack.c.b16 %v3401, %v3401
    %v3434 = vpack.c.b16 %v3402, %v3402
    %v3435 = vpack.c.b16 %v3403, %v3403
    %v3436 = vpack.c.b16 %v3404, %v3404
    %v3437 = vpack.c.b16 %v3405, %v3405
    %v3438 = vpack.c.b16 %v3406, %v3406
    %v3439 = vpack.c.b16 %v3407, %v3407
    %3472 = vst [vmem:[#allocation19] sm:$0xf] %v3408
    %3473 = vst [vmem:[#allocation19 + $0x4] sm:$0xf] %v3409
    %3474 = vst [vmem:[#allocation19 + $0x8] sm:$0xf] %v3410
    %3475 = vst [vmem:[#allocation19 + $0xc] sm:$0xf] %v3411
    %3476 = vst [vmem:[#allocation19 + $0x10] sm:$0xf] %v3412
    %3477 = vst [vmem:[#allocation19 + $0x14] sm:$0xf] %v3413
    %3478 = vst [vmem:[#allocation19 + $0x18] sm:$0xf] %v3414
    %3479 = vst [vmem:[#allocation19 + $0x1c] sm:$0xf] %v3415
    %3480 = vst [vmem:[#allocation19 + $0x20] sm:$0xf] %v3416
    %3481 = vst [vmem:[#allocation19 + $0x24] sm:$0xf] %v3417
    %3482 = vst [vmem:[#allocation19 + $0x28] sm:$0xf] %v3418
    %3483 = vst [vmem:[#allocation19 + $0x2c] sm:$0xf] %v3419
    %3484 = vst [vmem:[#allocation19 + $0x30] sm:$0xf] %v3420
    %3485 = vst [vmem:[#allocation19 + $0x34] sm:$0xf] %v3421
    %3486 = vst [vmem:[#allocation19 + $0x38] sm:$0xf] %v3422
    %3487 = vst [vmem:[#allocation19 + $0x3c] sm:$0xf] %v3423
    %3488 = vst [vmem:[#allocation19 + $0x40] sm:$0xf] %v3424
    %3489 = vst [vmem:[#allocation19 + $0x44] sm:$0xf] %v3425
    %3490 = vst [vmem:[#allocation19 + $0x48] sm:$0xf] %v3426
    %3491 = vst [vmem:[#allocation19 + $0x4c] sm:$0xf] %v3427
    %3492 = vst [vmem:[#allocation19 + $0x50] sm:$0xf] %v3428
    %3493 = vst [vmem:[#allocation19 + $0x54] sm:$0xf] %v3429
    %3494 = vst [vmem:[#allocation19 + $0x58] sm:$0xf] %v3430
    %3495 = vst [vmem:[#allocation19 + $0x5c] sm:$0xf] %v3431
    %3496 = vst [vmem:[#allocation19 + $0x60] sm:$0xf] %v3432
    %3497 = vst [vmem:[#allocation19 + $0x64] sm:$0xf] %v3433
    %3498 = vst [vmem:[#allocation19 + $0x68] sm:$0xf] %v3434
    %3499 = vst [vmem:[#allocation19 + $0x6c] sm:$0xf] %v3435
    %3500 = vst [vmem:[#allocation19 + $0x70] sm:$0xf] %v3436
    %3501 = vst [vmem:[#allocation19 + $0x74] sm:$0xf] %v3437
    %3502 = vst [vmem:[#allocation19 + $0x78] sm:$0xf] %v3438
    %3503 = vst [vmem:[#allocation19 + $0x7c] sm:$0xf] %v3439
    // Predicated region
    $region90: #{tpu_custom_call.1} parent=1 // pred_check
      _
    $region91: #{tpu_custom_call.1} parent=1 // pred_check_branch
      %3505 = sbr.rel (0) target = $region93
    $region92: #{tpu_custom_call.1} parent=1 // pred_region
      %s3507 = ssub.s32 2048, 2048
      %3508 = vsyncadd [#allocation4], %s3507
      %s3509 = sshll.u32 [#allocation16], 4
      %s3510 = int_to_ptr.vmem [resolvable:$true] %s3509
      %3515 = dma.vmem_to_hbm [thread:$0]  %s3510, 2048, %s14, [#allocation4], 64, 64, 4
    $region93: #{tpu_custom_call.1} parent=1 // pred_fallthru
      _
    // Predicated region
    $region94: #{tpu_custom_call.1} parent=1 // pred_check
      _
    $region95: #{tpu_custom_call.1} parent=1 // pred_check_branch
      %3517 = sbr.rel (0) target = $region97
    $region96: #{tpu_custom_call.1} parent=1 // pred_region
      %s3519 = ssub.s32 2048, 2048
      %3520 = vsyncadd [#allocation18], %s3519
      %s3521 = sshll.u32 [#allocation17], 4
      %s3522 = int_to_ptr.vmem [resolvable:$true] %s3521
      %3527 = dma.vmem_to_hbm [thread:$0]  %s3522, 2048, %s15, [#allocation18], 64, 64, 4
    $region97: #{tpu_custom_call.1} parent=1 // pred_fallthru
      _
    // Predicated region
    $region98: #{tpu_custom_call.1} parent=1 // pred_check
      _
    $region99: #{tpu_custom_call.1} parent=1 // pred_check_branch
      %3529 = sbr.rel (0) target = $region101
    $region100: #{tpu_custom_call.1} parent=1 // pred_region
      %s3531 = ssub.s32 2048, 2048
      %3532 = vsyncadd [#allocation18], %s3531
      %s3533 = sshll.u32 [#allocation19], 4
      %s3534 = int_to_ptr.vmem [resolvable:$true] %s3533
      %3539 = dma.vmem_to_hbm [thread:$0]  %s3534, 2048, %s16, [#allocation18], 64, 64, 4
    $region101: #{tpu_custom_call.1} parent=1 // pred_fallthru
      _
    // Predicated region
    $region102: #{tpu_custom_call.1} parent=1 // pred_check
      _
    $region103: #{tpu_custom_call.1} parent=1 // pred_check_branch
      %3541 = sbr.rel (0) target = $region105
    $region104: #{tpu_custom_call.1} parent=1 // pred_region
      %3542 = dma.done [#allocation4], 2048
    $region105: #{tpu_custom_call.1} parent=1 // pred_fallthru
      _
    // Predicated region
    $region106: #{tpu_custom_call.1} parent=1 // pred_check
      _
    $region107: #{tpu_custom_call.1} parent=1 // pred_check_branch
      %3544 = sbr.rel (0) target = $region109
    $region108: #{tpu_custom_call.1} parent=1 // pred_region
      %3545 = dma.done [#allocation18], 2048
    $region109: #{tpu_custom_call.1} parent=1 // pred_fallthru
      _
    // Predicated region
    $region110: #{tpu_custom_call.1} parent=1 // pred_check
      _
    $region111: #{tpu_custom_call.1} parent=1 // pred_check_branch
      %3547 = sbr.rel (0) target = $region113
    $region112: #{tpu_custom_call.1} parent=1 // pred_region
      %3548 = dma.done [#allocation18], 2048
    $region113: #{tpu_custom_call.1} parent=1 // pred_fallthru
      _
    %3549 = vsyncpa [#allocation3], 1
    %3550 = vsyncpa [#allocation6], 1
    %3551 = vsyncpa [#allocation9], 1
    %3552 = vsyncpa [#allocation12], 1
    %3553 = vsyncpa [#allocation15], 1
    %3554 = vsyncpa [#allocation4], 1
    %3555 = vsyncpa [#allocation18], 1

</llo_original>
